<compile_context>
chip_gen: v6e
topology: v6e:2x2x1
jax: 0.10.0
libtpu: 0.0.40
codegen_flags: <defaults>
</compile_context>

<pallas_src>
import jax
import jax.numpy as jnp
from jax.experimental import pallas as pl
from jax.experimental.pallas import tpu as pltpu


# ---------------------------------------------------------------------------
# Kernel
# ---------------------------------------------------------------------------
def _scm_kernel(x_ref, t1_ref, b1_ref, w2_ref, b2_ref, t3_ref, b3_ref,
                w4_ref, b4_ref, w5x_ref, w5y_ref, b5_ref, out_ref):
    f32 = jnp.float32
    h = x_ref.shape[1]

    def conv3x3(inp, t_ref, b_ref):
        # inp: (H, W*Cin); t_ref: (3, W*Cin, W*Cout) banded block-Toeplitz
        # matrices (dx taps + W zero-padding already folded in).
        g0 = jnp.dot(inp, t_ref[0], preferred_element_type=f32)
        g1 = jnp.dot(inp, t_ref[1], preferred_element_type=f32)
        g2 = jnp.dot(inp, t_ref[2], preferred_element_type=f32)
        rows = jax.lax.broadcasted_iota(jnp.int32, g1.shape, 0)
        # dy=0 term needs input row h-1 -> shift g0 down one row (zero row 0).
        down = jnp.where(rows == 0, 0.0, pltpu.roll(g0, shift=1, axis=0))
        # dy=2 term needs input row h+1 -> shift g2 up one row (zero last row).
        up = jnp.where(rows == h - 1, 0.0,
                       pltpu.roll(g2, shift=h - 1, axis=0))
        return down + g1 + up + b_ref[...].astype(f32)

    def conv1x1(inp, w_ref, b_ref):
        return (jnp.dot(inp, w_ref[...], preferred_element_type=f32)
                + b_ref[...].astype(f32))

    x2d = x_ref[0].astype(f32)                             # (H, W*Cin)
    y1 = jnp.maximum(conv3x3(x2d, t1_ref, b1_ref), 0.0)    # (H, W*C1)
    y2 = jnp.maximum(conv1x1(y1, w2_ref, b2_ref), 0.0)     # (H, W*C2)
    y3 = jnp.maximum(conv3x3(y2, t3_ref, b3_ref), 0.0)     # (H, W*C2)
    y4 = jnp.maximum(conv1x1(y3, w4_ref, b4_ref), 0.0)     # (H, W*(P-Cin))
    # Final 1x1 conv on concat([x, y4], channel), folded into two matmuls.
    out = (jnp.dot(x2d, w5x_ref[...], preferred_element_type=f32)
           + jnp.dot(y4, w5y_ref[...], preferred_element_type=f32)
           + b5_ref[...].astype(f32))                      # (H, W*P)
    out_ref[0] = out.astype(out_ref.dtype)


# ---------------------------------------------------------------------------
# Lane-dense weight construction (runs once per call in the wrapper; exact).
# ---------------------------------------------------------------------------
def _toeplitz_3x3(w_oihw, width):
    """(Cout, Cin, 3, 3) -> (3, W*Cin, W*Cout) banded block-Toeplitz (per dy)."""
    k = jnp.transpose(w_oihw, (2, 3, 1, 0))                # (dy, dx, ci, co)
    cin, cout = k.shape[2], k.shape[3]
    u = jnp.arange(width)[:, None, None]
    dx = jnp.arange(3)[None, :, None]
    w = jnp.arange(width)[None, None, :]
    sel = (u == w + dx - 1).astype(k.dtype)                # (W, 3, W)
    t = jnp.einsum("udw,ydio->yuiwo", sel, k)              # (3, W, Cin, W, Cout)
    return t.reshape(3, width * cin, width * cout)


def _block_diag(m_io, width):
    """(Cin, Cout) 1x1-conv matrix -> (W*Cin, W*Cout) block-diagonal."""
    cin, cout = m_io.shape
    eye = jnp.eye(width, dtype=m_io.dtype)
    bd = jnp.einsum("uw,io->uiwo", eye, m_io)
    return bd.reshape(width * cin, width * cout)


def _tile_bias(b, width):
    return jnp.tile(b, width)[None, :]                     # (1, W*Cout)


# ---------------------------------------------------------------------------
# Wrapper
# ---------------------------------------------------------------------------
@jax.jit
def scm_forward(x_nchw, params):
    """SCM forward. x is NCHW; conv weights are PyTorch OIHW, biases 1-D."""
    w1, b1, w2, b2, w3, b3, w4, b4, w5, b5 = params
    n, c_in, hh, ww = x_nchw.shape
    p = w5.shape[0]

    # NCHW -> lane-dense (N, H, W*Cin).  In an NHWC model pipeline the
    # transpose disappears (the trailing reshape is contiguous / free).
    x_ld = jnp.transpose(x_nchw, (0, 2, 3, 1)).reshape(n, hh, ww * c_in)

    t1 = _toeplitz_3x3(w1, ww)                             # (3, W*Cin, W*C1)
    bd2 = _block_diag(w2[:, :, 0, 0].T, ww)                # (W*C1, W*C2)
    t3 = _toeplitz_3x3(w3, ww)                             # (3, W*C2, W*C2)
    bd4 = _block_diag(w4[:, :, 0, 0].T, ww)                # (W*C2, W*C4)
    m5 = w5[:, :, 0, 0].T                                  # (P_in, P_out)
    bd5x = _block_diag(m5[:c_in, :], ww)                   # acts on x
    bd5y = _block_diag(m5[c_in:, :], ww)                   # acts on y4
    b1t, b2t, b3t = _tile_bias(b1, ww), _tile_bias(b2, ww), _tile_bias(b3, ww)
    b4t, b5t = _tile_bias(b4, ww), _tile_bias(b5, ww)

    out_ld = pl.pallas_call(
        _scm_kernel,
        out_shape=jax.ShapeDtypeStruct((n, hh, ww * p), x_nchw.dtype),
        grid_spec=pltpu.PrefetchScalarGridSpec(
            num_scalar_prefetch=0,
            grid=(n,),
            in_specs=[
                pl.BlockSpec((1, hh, ww * c_in), lambda i: (i, 0, 0)),
                pl.BlockSpec(t1.shape, lambda i: (0, 0, 0)),
                pl.BlockSpec(b1t.shape, lambda i: (0, 0)),
                pl.BlockSpec(bd2.shape, lambda i: (0, 0)),
                pl.BlockSpec(b2t.shape, lambda i: (0, 0)),
                pl.BlockSpec(t3.shape, lambda i: (0, 0, 0)),
                pl.BlockSpec(b3t.shape, lambda i: (0, 0)),
                pl.BlockSpec(bd4.shape, lambda i: (0, 0)),
                pl.BlockSpec(b4t.shape, lambda i: (0, 0)),
                pl.BlockSpec(bd5x.shape, lambda i: (0, 0)),
                pl.BlockSpec(bd5y.shape, lambda i: (0, 0)),
                pl.BlockSpec(b5t.shape, lambda i: (0, 0)),
            ],
            out_specs=pl.BlockSpec((1, hh, ww * p), lambda i: (i, 0, 0)),
        ),
        compiler_params=pltpu.CompilerParams(
            dimension_semantics=("parallel",)),
    )(x_ld, t1, b1t, bd2, b2t, t3, b3t, bd4, b4t, bd5x, bd5y, b5t)

    # lane-dense (N, H, W*P) -> NCHW (glue for the NCHW reference).
    return jnp.transpose(out_ld.reshape(n, hh, ww, p), (0, 3, 1, 2))


# ---------------------------------------------------------------------------
# Pure-JAX reference of the PyTorch forward (NCHW).
# ---------------------------------------------------------------------------
def _conv_bias_nchw(x, w, b, pad):
    out = jax.lax.conv_general_dilated(
        x, w, window_strides=(1, 1), padding=((pad, pad), (pad, pad)),
        dimension_numbers=("NCHW", "OIHW", "NCHW"),
        precision=jax.lax.Precision.HIGHEST)
    return out + b.reshape(1, -1, 1, 1)


def _scm_reference(x, params):
    w1, b1, w2, b2, w3, b3, w4, b4, w5, b5 = params
    y = jax.nn.relu(_conv_bias_nchw(x, w1, b1, 1))
    y = jax.nn.relu(_conv_bias_nchw(y, w2, b2, 0))
    y = jax.nn.relu(_conv_bias_nchw(y, w3, b3, 1))
    y = jax.nn.relu(_conv_bias_nchw(y, w4, b4, 0))
    z = jnp.concatenate([x, y], axis=1)
    return _conv_bias_nchw(z, w5, b5, 0)


if __name__ == "__main__":
    # SCM(in_channel=4, out_plane=32) on 16x16 features, batch=2.
    N, C_IN, H, W = 2, 4, 16, 16
    OUT_PLANE = 32
    c1, c2, c4 = OUT_PLANE // 4, OUT_PLANE // 2, OUT_PLANE - C_IN

    key = jax.random.PRNGKey(0)
    keys = jax.random.split(key, 6)

    def conv_params(kk, cout, cin, ksz):
        fan_in = cin * ksz * ksz
        bound = 1.0 / (fan_in ** 0.5)
        kw, kb = jax.random.split(kk)
        w = jax.random.uniform(kw, (cout, cin, ksz, ksz), jnp.float32,
                               -bound, bound)
        b = jax.random.uniform(kb, (cout,), jnp.float32, -bound, bound)
        return w, b

    x = jax.random.normal(keys[0], (N, C_IN, H, W), dtype=jnp.float32)
    w1, b1 = conv_params(keys[1], c1, C_IN, 3)
    w2, b2 = conv_params(keys[2], c2, c1, 1)
    w3, b3 = conv_params(keys[3], c2, c2, 3)
    w4, b4 = conv_params(keys[4], c4, c2, 1)
    w5, b5 = conv_params(keys[5], OUT_PLANE, OUT_PLANE, 1)
    params = (w1, b1, w2, b2, w3, b3, w4, b4, w5, b5)

    out = scm_forward(x, params)
    out = jax.block_until_ready(out)

    ref = _scm_reference(x, params)
    assert out.shape == (N, OUT_PLANE, H, W)
    # Tolerance covers MXU f32 multi-pass precision inside the kernel.
    err = float(jnp.max(jnp.abs(out - ref)))
    assert jnp.allclose(out, ref, atol=2e-2, rtol=2e-2), f"max |err| = {err}"

    print("KERNEL_OK")
</pallas_src>

<mosaic_0001>
module attributes {stable_mosaic.version = 11 : i64} {
  func.func @_scm_kernel(%arg0: i32, %arg1: memref<1x16x64xf32, #tpu.memory_space<vmem>>, %arg2: memref<3x64x128xf32, #tpu.memory_space<vmem>>, %arg3: memref<1x128xf32, #tpu.memory_space<vmem>>, %arg4: memref<128x256xf32, #tpu.memory_space<vmem>>, %arg5: memref<1x256xf32, #tpu.memory_space<vmem>>, %arg6: memref<3x256x256xf32, #tpu.memory_space<vmem>>, %arg7: memref<1x256xf32, #tpu.memory_space<vmem>>, %arg8: memref<256x448xf32, #tpu.memory_space<vmem>>, %arg9: memref<1x448xf32, #tpu.memory_space<vmem>>, %arg10: memref<64x512xf32, #tpu.memory_space<vmem>>, %arg11: memref<448x512xf32, #tpu.memory_space<vmem>>, %arg12: memref<1x512xf32, #tpu.memory_space<vmem>>, %arg13: memref<1x16x512xf32, #tpu.memory_space<vmem>>) attributes {dimension_semantics = [#tpu.dimension_semantics<parallel>], iteration_bounds = array<i64: 2>, scalar_prefetch = 0 : i64, scratch_operands = 0 : i64, tpu.core_type = #tpu.core_type<tc>, window_params = [{transform_indices = @transform_0, window_bounds = array<i64: 1, 16, 64>}, {pipeline_mode = #tpu.pipeline_mode<synchronous>, transform_indices = @transform_1, window_bounds = array<i64: 3, 64, 128>}, {pipeline_mode = #tpu.pipeline_mode<synchronous>, transform_indices = @transform_2, window_bounds = array<i64: 1, 128>}, {pipeline_mode = #tpu.pipeline_mode<synchronous>, transform_indices = @transform_3, window_bounds = array<i64: 128, 256>}, {pipeline_mode = #tpu.pipeline_mode<synchronous>, transform_indices = @transform_4, window_bounds = array<i64: 1, 256>}, {pipeline_mode = #tpu.pipeline_mode<synchronous>, transform_indices = @transform_5, window_bounds = array<i64: 3, 256, 256>}, {pipeline_mode = #tpu.pipeline_mode<synchronous>, transform_indices = @transform_6, window_bounds = array<i64: 1, 256>}, {pipeline_mode = #tpu.pipeline_mode<synchronous>, transform_indices = @transform_7, window_bounds = array<i64: 256, 448>}, {pipeline_mode = #tpu.pipeline_mode<synchronous>, transform_indices = @transform_8, window_bounds = array<i64: 1, 448>}, {pipeline_mode = #tpu.pipeline_mode<synchronous>, transform_indices = @transform_9, window_bounds = array<i64: 64, 512>}, {pipeline_mode = #tpu.pipeline_mode<synchronous>, transform_indices = @transform_10, window_bounds = array<i64: 448, 512>}, {pipeline_mode = #tpu.pipeline_mode<synchronous>, transform_indices = @transform_11, window_bounds = array<i64: 1, 512>}, {transform_indices = @transform_12, window_bounds = array<i64: 1, 16, 512>}]} {
    %c0 = arith.constant 0 : index
    %c0_0 = arith.constant 0 : index
    %c0_1 = arith.constant 0 : index
    %0 = vector.load %arg1[%c0, %c0_0, %c0_1] : memref<1x16x64xf32, #tpu.memory_space<vmem>>, vector<1x16x64xf32>
    %1 = vector.shape_cast %0 : vector<1x16x64xf32> to vector<16x64xf32>
    %c0_2 = arith.constant 0 : index
    %c0_3 = arith.constant 0 : index
    %c0_4 = arith.constant 0 : index
    %2 = vector.load %arg2[%c0_2, %c0_3, %c0_4] : memref<3x64x128xf32, #tpu.memory_space<vmem>>, vector<1x64x128xf32>
    %3 = vector.shape_cast %2 : vector<1x64x128xf32> to vector<64x128xf32>
    %cst = arith.constant dense<0.000000e+00> : vector<16x128xf32>
    %4 = tpu.matmul %1, %3, %cst {dimension_numbers = #tpu.dot_dimension_numbers<[1], [0], [0], [1], [0, 0, 1, 1], [], []>} : vector<16x64xf32>, vector<64x128xf32>, vector<16x128xf32> -> vector<16x128xf32>
    %c1 = arith.constant 1 : index
    %c0_5 = arith.constant 0 : index
    %c0_6 = arith.constant 0 : index
    %5 = vector.load %arg2[%c1, %c0_5, %c0_6] : memref<3x64x128xf32, #tpu.memory_space<vmem>>, vector<1x64x128xf32>
    %6 = vector.shape_cast %5 : vector<1x64x128xf32> to vector<64x128xf32>
    %cst_7 = arith.constant dense<0.000000e+00> : vector<16x128xf32>
    %7 = tpu.matmul %1, %6, %cst_7 {dimension_numbers = #tpu.dot_dimension_numbers<[1], [0], [0], [1], [0, 0, 1, 1], [], []>} : vector<16x64xf32>, vector<64x128xf32>, vector<16x128xf32> -> vector<16x128xf32>
    %c2 = arith.constant 2 : index
    %c0_8 = arith.constant 0 : index
    %c0_9 = arith.constant 0 : index
    %8 = vector.load %arg2[%c2, %c0_8, %c0_9] : memref<3x64x128xf32, #tpu.memory_space<vmem>>, vector<1x64x128xf32>
    %9 = vector.shape_cast %8 : vector<1x64x128xf32> to vector<64x128xf32>
    %cst_10 = arith.constant dense<0.000000e+00> : vector<16x128xf32>
    %10 = tpu.matmul %1, %9, %cst_10 {dimension_numbers = #tpu.dot_dimension_numbers<[1], [0], [0], [1], [0, 0, 1, 1], [], []>} : vector<16x64xf32>, vector<64x128xf32>, vector<16x128xf32> -> vector<16x128xf32>
    %11 = tpu.iota {dimensions = array<i32: 0>} : vector<16x128xi32>
    %c0_i32 = arith.constant 0 : i32
    %12 = vector.broadcast %c0_i32 : i32 to vector<16x128xi32>
    %13 = arith.cmpi eq, %11, %12 : vector<16x128xi32>
    %c1_i32 = arith.constant 1 : i32
    %14 = tpu.dynamic_rotate %4 by %c1_i32 dim 0 : vector<16x128xf32>, i32 -> vector<16x128xf32>
    %cst_11 = arith.constant 0.000000e+00 : f32
    %15 = vector.broadcast %cst_11 : f32 to vector<16x128xf32>
    %16 = arith.select %13, %15, %14 : vector<16x128xi1>, vector<16x128xf32>
    %c15_i32 = arith.constant 15 : i32
    %17 = vector.broadcast %c15_i32 : i32 to vector<16x128xi32>
    %18 = arith.cmpi eq, %11, %17 : vector<16x128xi32>
    %c15_i32_12 = arith.constant 15 : i32
    %19 = tpu.dynamic_rotate %10 by %c15_i32_12 dim 0 : vector<16x128xf32>, i32 -> vector<16x128xf32>
    %cst_13 = arith.constant 0.000000e+00 : f32
    %20 = vector.broadcast %cst_13 : f32 to vector<16x128xf32>
    %21 = arith.select %18, %20, %19 : vector<16x128xi1>, vector<16x128xf32>
    %22 = arith.addf %16, %7 : vector<16x128xf32>
    %23 = arith.addf %22, %21 : vector<16x128xf32>
    %c0_14 = arith.constant 0 : index
    %c0_15 = arith.constant 0 : index
    %24 = vector.load %arg3[%c0_14, %c0_15] : memref<1x128xf32, #tpu.memory_space<vmem>>, vector<1x128xf32>
    %25 = vector.broadcast %24 : vector<1x128xf32> to vector<16x128xf32>
    %26 = arith.addf %23, %25 : vector<16x128xf32>
    %cst_16 = arith.constant 0.000000e+00 : f32
    %27 = vector.broadcast %cst_16 : f32 to vector<16x128xf32>
    %28 = arith.maximumf %26, %27 : vector<16x128xf32>
    %c0_17 = arith.constant 0 : index
    %c0_18 = arith.constant 0 : index
    %29 = vector.load %arg4[%c0_17, %c0_18] : memref<128x256xf32, #tpu.memory_space<vmem>>, vector<128x256xf32>
    %cst_19 = arith.constant dense<0.000000e+00> : vector<16x256xf32>
    %30 = tpu.matmul %28, %29, %cst_19 {dimension_numbers = #tpu.dot_dimension_numbers<[1], [0], [0], [1], [0, 0, 1, 1], [], []>} : vector<16x128xf32>, vector<128x256xf32>, vector<16x256xf32> -> vector<16x256xf32>
    %c0_20 = arith.constant 0 : index
    %c0_21 = arith.constant 0 : index
    %31 = vector.load %arg5[%c0_20, %c0_21] : memref<1x256xf32, #tpu.memory_space<vmem>>, vector<1x256xf32>
    %32 = vector.broadcast %31 : vector<1x256xf32> to vector<16x256xf32>
    %33 = arith.addf %30, %32 : vector<16x256xf32>
    %cst_22 = arith.constant 0.000000e+00 : f32
    %34 = vector.broadcast %cst_22 : f32 to vector<16x256xf32>
    %35 = arith.maximumf %33, %34 : vector<16x256xf32>
    %c0_23 = arith.constant 0 : index
    %c0_24 = arith.constant 0 : index
    %c0_25 = arith.constant 0 : index
    %36 = vector.load %arg6[%c0_23, %c0_24, %c0_25] : memref<3x256x256xf32, #tpu.memory_space<vmem>>, vector<1x256x256xf32>
    %37 = vector.shape_cast %36 : vector<1x256x256xf32> to vector<256x256xf32>
    %cst_26 = arith.constant dense<0.000000e+00> : vector<16x256xf32>
    %38 = tpu.matmul %35, %37, %cst_26 {dimension_numbers = #tpu.dot_dimension_numbers<[1], [0], [0], [1], [0, 0, 1, 1], [], []>} : vector<16x256xf32>, vector<256x256xf32>, vector<16x256xf32> -> vector<16x256xf32>
    %c1_27 = arith.constant 1 : index
    %c0_28 = arith.constant 0 : index
    %c0_29 = arith.constant 0 : index
    %39 = vector.load %arg6[%c1_27, %c0_28, %c0_29] : memref<3x256x256xf32, #tpu.memory_space<vmem>>, vector<1x256x256xf32>
    %40 = vector.shape_cast %39 : vector<1x256x256xf32> to vector<256x256xf32>
    %cst_30 = arith.constant dense<0.000000e+00> : vector<16x256xf32>
    %41 = tpu.matmul %35, %40, %cst_30 {dimension_numbers = #tpu.dot_dimension_numbers<[1], [0], [0], [1], [0, 0, 1, 1], [], []>} : vector<16x256xf32>, vector<256x256xf32>, vector<16x256xf32> -> vector<16x256xf32>
    %c2_31 = arith.constant 2 : index
    %c0_32 = arith.constant 0 : index
    %c0_33 = arith.constant 0 : index
    %42 = vector.load %arg6[%c2_31, %c0_32, %c0_33] : memref<3x256x256xf32, #tpu.memory_space<vmem>>, vector<1x256x256xf32>
    %43 = vector.shape_cast %42 : vector<1x256x256xf32> to vector<256x256xf32>
    %cst_34 = arith.constant dense<0.000000e+00> : vector<16x256xf32>
    %44 = tpu.matmul %35, %43, %cst_34 {dimension_numbers = #tpu.dot_dimension_numbers<[1], [0], [0], [1], [0, 0, 1, 1], [], []>} : vector<16x256xf32>, vector<256x256xf32>, vector<16x256xf32> -> vector<16x256xf32>
    %45 = tpu.iota {dimensions = array<i32: 0>} : vector<16x256xi32>
    %c0_i32_35 = arith.constant 0 : i32
    %46 = vector.broadcast %c0_i32_35 : i32 to vector<16x256xi32>
    %47 = arith.cmpi eq, %45, %46 : vector<16x256xi32>
    %c1_i32_36 = arith.constant 1 : i32
    %48 = tpu.dynamic_rotate %38 by %c1_i32_36 dim 0 : vector<16x256xf32>, i32 -> vector<16x256xf32>
    %cst_37 = arith.constant 0.000000e+00 : f32
    %49 = vector.broadcast %cst_37 : f32 to vector<16x256xf32>
    %50 = arith.select %47, %49, %48 : vector<16x256xi1>, vector<16x256xf32>
    %c15_i32_38 = arith.constant 15 : i32
    %51 = vector.broadcast %c15_i32_38 : i32 to vector<16x256xi32>
    %52 = arith.cmpi eq, %45, %51 : vector<16x256xi32>
    %c15_i32_39 = arith.constant 15 : i32
    %53 = tpu.dynamic_rotate %44 by %c15_i32_39 dim 0 : vector<16x256xf32>, i32 -> vector<16x256xf32>
    %cst_40 = arith.constant 0.000000e+00 : f32
    %54 = vector.broadcast %cst_40 : f32 to vector<16x256xf32>
    %55 = arith.select %52, %54, %53 : vector<16x256xi1>, vector<16x256xf32>
    %56 = arith.addf %50, %41 : vector<16x256xf32>
    %57 = arith.addf %56, %55 : vector<16x256xf32>
    %c0_41 = arith.constant 0 : index
    %c0_42 = arith.constant 0 : index
    %58 = vector.load %arg7[%c0_41, %c0_42] : memref<1x256xf32, #tpu.memory_space<vmem>>, vector<1x256xf32>
    %59 = vector.broadcast %58 : vector<1x256xf32> to vector<16x256xf32>
    %60 = arith.addf %57, %59 : vector<16x256xf32>
    %cst_43 = arith.constant 0.000000e+00 : f32
    %61 = vector.broadcast %cst_43 : f32 to vector<16x256xf32>
    %62 = arith.maximumf %60, %61 : vector<16x256xf32>
    %c0_44 = arith.constant 0 : index
    %c0_45 = arith.constant 0 : index
    %63 = vector.load %arg8[%c0_44, %c0_45] : memref<256x448xf32, #tpu.memory_space<vmem>>, vector<256x448xf32>
    %cst_46 = arith.constant dense<0.000000e+00> : vector<16x448xf32>
    %64 = tpu.matmul %62, %63, %cst_46 {dimension_numbers = #tpu.dot_dimension_numbers<[1], [0], [0], [1], [0, 0, 1, 1], [], []>} : vector<16x256xf32>, vector<256x448xf32>, vector<16x448xf32> -> vector<16x448xf32>
    %c0_47 = arith.constant 0 : index
    %c0_48 = arith.constant 0 : index
    %65 = vector.load %arg9[%c0_47, %c0_48] : memref<1x448xf32, #tpu.memory_space<vmem>>, vector<1x448xf32>
    %66 = vector.broadcast %65 : vector<1x448xf32> to vector<16x448xf32>
    %67 = arith.addf %64, %66 : vector<16x448xf32>
    %cst_49 = arith.constant 0.000000e+00 : f32
    %68 = vector.broadcast %cst_49 : f32 to vector<16x448xf32>
    %69 = arith.maximumf %67, %68 : vector<16x448xf32>
    %c0_50 = arith.constant 0 : index
    %c0_51 = arith.constant 0 : index
    %70 = vector.load %arg10[%c0_50, %c0_51] : memref<64x512xf32, #tpu.memory_space<vmem>>, vector<64x512xf32>
    %cst_52 = arith.constant dense<0.000000e+00> : vector<16x512xf32>
    %71 = tpu.matmul %1, %70, %cst_52 {dimension_numbers = #tpu.dot_dimension_numbers<[1], [0], [0], [1], [0, 0, 1, 1], [], []>} : vector<16x64xf32>, vector<64x512xf32>, vector<16x512xf32> -> vector<16x512xf32>
    %c0_53 = arith.constant 0 : index
    %c0_54 = arith.constant 0 : index
    %72 = vector.load %arg11[%c0_53, %c0_54] : memref<448x512xf32, #tpu.memory_space<vmem>>, vector<448x512xf32>
    %cst_55 = arith.constant dense<0.000000e+00> : vector<16x512xf32>
    %73 = tpu.matmul %69, %72, %cst_55 {dimension_numbers = #tpu.dot_dimension_numbers<[1], [0], [0], [1], [0, 0, 1, 1], [], []>} : vector<16x448xf32>, vector<448x512xf32>, vector<16x512xf32> -> vector<16x512xf32>
    %74 = arith.addf %71, %73 : vector<16x512xf32>
    %c0_56 = arith.constant 0 : index
    %c0_57 = arith.constant 0 : index
    %75 = vector.load %arg12[%c0_56, %c0_57] : memref<1x512xf32, #tpu.memory_space<vmem>>, vector<1x512xf32>
    %76 = vector.broadcast %75 : vector<1x512xf32> to vector<16x512xf32>
    %77 = arith.addf %74, %76 : vector<16x512xf32>
    %c0_58 = arith.constant 0 : index
    %c0_59 = arith.constant 0 : index
    %c0_60 = arith.constant 0 : index
    %78 = vector.load %arg13[%c0_58, %c0_59, %c0_60] : memref<1x16x512xf32, #tpu.memory_space<vmem>>, vector<1x16x512xf32>
    %79 = vector.shape_cast %78 : vector<1x16x512xf32> to vector<16x512xf32>
    %80 = vector.shape_cast %77 : vector<16x512xf32> to vector<1x16x512xf32>
    tpu.vector_store %arg13[%c0_58, %c0_59, %c0_60], %80 {strides = array<i32>} : memref<1x16x512xf32, #tpu.memory_space<vmem>>, vector<1x16x512xf32>,
    return
  }
  func.func @transform_0(%arg0: i32) -> (i32, i32, i32) {
    %c0_i32 = arith.constant 0 : i32
    %c0_i32_0 = arith.constant 0 : i32
    %c0_i32_1 = arith.constant 0 : i32
    return %arg0, %c0_i32, %c0_i32_0 : i32, i32, i32
  }
  func.func @transform_1(%arg0: i32) -> (i32, i32, i32) {
    %c0_i32 = arith.constant 0 : i32
    %c0_i32_0 = arith.constant 0 : i32
    %c0_i32_1 = arith.constant 0 : i32
    %c0_i32_2 = arith.constant 0 : i32
    return %c0_i32, %c0_i32_0, %c0_i32_1 : i32, i32, i32
  }
  func.func @transform_2(%arg0: i32) -> (i32, i32) {
    %c0_i32 = arith.constant 0 : i32
    %c0_i32_0 = arith.constant 0 : i32
    %c0_i32_1 = arith.constant 0 : i32
    return %c0_i32, %c0_i32_0 : i32, i32
  }
  func.func @transform_3(%arg0: i32) -> (i32, i32) {
    %c0_i32 = arith.constant 0 : i32
    %c0_i32_0 = arith.constant 0 : i32
    %c0_i32_1 = arith.constant 0 : i32
    return %c0_i32, %c0_i32_0 : i32, i32
  }
  func.func @transform_4(%arg0: i32) -> (i32, i32) {
    %c0_i32 = arith.constant 0 : i32
    %c0_i32_0 = arith.constant 0 : i32
    %c0_i32_1 = arith.constant 0 : i32
    return %c0_i32, %c0_i32_0 : i32, i32
  }
  func.func @transform_5(%arg0: i32) -> (i32, i32, i32) {
    %c0_i32 = arith.constant 0 : i32
    %c0_i32_0 = arith.constant 0 : i32
    %c0_i32_1 = arith.constant 0 : i32
    %c0_i32_2 = arith.constant 0 : i32
    return %c0_i32, %c0_i32_0, %c0_i32_1 : i32, i32, i32
  }
  func.func @transform_6(%arg0: i32) -> (i32, i32) {
    %c0_i32 = arith.constant 0 : i32
    %c0_i32_0 = arith.constant 0 : i32
    %c0_i32_1 = arith.constant 0 : i32
    return %c0_i32, %c0_i32_0 : i32, i32
  }
  func.func @transform_7(%arg0: i32) -> (i32, i32) {
    %c0_i32 = arith.constant 0 : i32
    %c0_i32_0 = arith.constant 0 : i32
    %c0_i32_1 = arith.constant 0 : i32
    return %c0_i32, %c0_i32_0 : i32, i32
  }
  func.func @transform_8(%arg0: i32) -> (i32, i32) {
    %c0_i32 = arith.constant 0 : i32
    %c0_i32_0 = arith.constant 0 : i32
    %c0_i32_1 = arith.constant 0 : i32
    return %c0_i32, %c0_i32_0 : i32, i32
  }
  func.func @transform_9(%arg0: i32) -> (i32, i32) {
    %c0_i32 = arith.constant 0 : i32
    %c0_i32_0 = arith.constant 0 : i32
    %c0_i32_1 = arith.constant 0 : i32
    return %c0_i32, %c0_i32_0 : i32, i32
  }
  func.func @transform_10(%arg0: i32) -> (i32, i32) {
    %c0_i32 = arith.constant 0 : i32
    %c0_i32_0 = arith.constant 0 : i32
    %c0_i32_1 = arith.constant 0 : i32
    return %c0_i32, %c0_i32_0 : i32, i32
  }
  func.func @transform_11(%arg0: i32) -> (i32, i32) {
    %c0_i32 = arith.constant 0 : i32
    %c0_i32_0 = arith.constant 0 : i32
    %c0_i32_1 = arith.constant 0 : i32
    return %c0_i32, %c0_i32_0 : i32, i32
  }
  func.func @transform_12(%arg0: i32) -> (i32, i32, i32) {
    %c0_i32 = arith.constant 0 : i32
    %c0_i32_0 = arith.constant 0 : i32
    %c0_i32_1 = arith.constant 0 : i32
    return %arg0, %c0_i32, %c0_i32_0 : i32, i32, i32
  }
}

</mosaic_0001>

<llo_original>
// kernel: tile.28
$region0: #{tile.28}
  #allocation0 [shape = 's32[1]{0}', space=sflag, size = 0x4, scoped, tag = 'scoped memory for tile.28']
  %s0 = inlined_call_operand.vmem [shape: f32[8], index: 0, kind: input, shape index: {}]
  %s1 = inlined_call_operand.vmem [shape: f32[16,8], index: 1, kind: output, shape index: {}]
  // Predicated region
  $region2: #{tile.28} parent=0 // pred_check
    _
  $region3: #{tile.28} parent=0 // pred_check_branch
    %3 = sbr.rel (0) target = $region5
  $region4: #{tile.28} parent=0 // pred_region
    _
  $region5: #{tile.28} parent=0 // pred_fallthru
    _
  %v4 = vld [vmem:[%s0] ss:$0 sm:$0xff]
  %5 = vst [vmem:[%s1] sm:$0xff] %v4
  %s6 = scalar_lea.vmem %s1, 8
  %7 = vst [vmem:[%s6] sm:$0xff] %v4

// kernel: tile.29
$region0: #{tile.29}
  %s0 = inlined_call_operand.vmem [shape: f32[16,8], index: 0, kind: input, shape index: {}]
  %s1 = inlined_call_operand.vmem [shape: f32[1,128], index: 1, kind: output, shape index: {}]
  $region1: #{tile.29} parent=0
    #allocation0 [shape = 'u8[4096]{0}', space=vmem, size = 0x1000, scoped, tag = 'scoped mem for output reshape']
    %v2 = vld [vmem:[%s0] sm:$0x1]
    %vm3 = vcmask 64512
    %4 = vst.msk [vmem:[#allocation0] sm:$0x1] %vm3, %v2
    %s5 = scalar_lea.vmem %s0, 15
    %v6 = vld [vmem:[%s5] sm:$0x1]
    %7 = vrot.lane.b32.xlu0 %v6, 120
    %v8 = vpop.permute.xlu0 %7
    %vm9 = vcmask 1048512
    %10 = vst.msk [vmem:[#allocation0] sm:$0x1] %vm9, %v8
    %s11 = scalar_lea.vmem %s0, 14
    %v12 = vld [vmem:[%s11] sm:$0x1]
    %13 = vrot.lane.b32.xlu0 %v12, 112
    %v14 = vpop.permute.xlu0 %13
    %vm15 = vcmask 982912
    %16 = vst.msk [vmem:[#allocation0] sm:$0x1] %vm15, %v14
    %s17 = scalar_lea.vmem %s0, 13
    %v18 = vld [vmem:[%s17] sm:$0x1]
    %19 = vrot.lane.b32.xlu0 %v18, 104
    %v20 = vpop.permute.xlu0 %19
    %vm21 = vcmask 917312
    %22 = vst.msk [vmem:[#allocation0] sm:$0x1] %vm21, %v20
    %s23 = scalar_lea.vmem %s0, 12
    %v24 = vld [vmem:[%s23] sm:$0x1]
    %25 = vrot.lane.b32.xlu0 %v24, 96
    %v26 = vpop.permute.xlu0 %25
    %vm27 = vcmask 851712
    %28 = vst.msk [vmem:[#allocation0] sm:$0x1] %vm27, %v26
    %s29 = scalar_lea.vmem %s0, 11
    %v30 = vld [vmem:[%s29] sm:$0x1]
    %31 = vrot.lane.b32.xlu0 %v30, 88
    %v32 = vpop.permute.xlu0 %31
    %vm33 = vcmask 786112
    %34 = vst.msk [vmem:[#allocation0] sm:$0x1] %vm33, %v32
    %s35 = scalar_lea.vmem %s0, 10
    %v36 = vld [vmem:[%s35] sm:$0x1]
    %37 = vrot.lane.b32.xlu0 %v36, 80
    %v38 = vpop.permute.xlu0 %37
    %vm39 = vcmask 720512
    %40 = vst.msk [vmem:[#allocation0] sm:$0x1] %vm39, %v38
    %s41 = scalar_lea.vmem %s0, 9
    %v42 = vld [vmem:[%s41] sm:$0x1]
    %43 = vrot.lane.b32.xlu0 %v42, 72
    %v44 = vpop.permute.xlu0 %43
    %vm45 = vcmask 654912
    %46 = vst.msk [vmem:[#allocation0] sm:$0x1] %vm45, %v44
    %s47 = scalar_lea.vmem %s0, 8
    %v48 = vld [vmem:[%s47] sm:$0x1]
    %49 = vrot.lane.b32.xlu0 %v48, 64
    %v50 = vpop.permute.xlu0 %49
    %vm51 = vcmask 589312
    %52 = vst.msk [vmem:[#allocation0] sm:$0x1] %vm51, %v50
    %s53 = scalar_lea.vmem %s0, 7
    %v54 = vld [vmem:[%s53] sm:$0x1]
    %55 = vrot.lane.b32.xlu0 %v54, 56
    %v56 = vpop.permute.xlu0 %55
    %vm57 = vcmask 523712
    %58 = vst.msk [vmem:[#allocation0] sm:$0x1] %vm57, %v56
    %s59 = scalar_lea.vmem %s0, 6
    %v60 = vld [vmem:[%s59] sm:$0x1]
    %61 = vrot.lane.b32.xlu0 %v60, 48
    %v62 = vpop.permute.xlu0 %61
    %vm63 = vcmask 458112
    %64 = vst.msk [vmem:[#allocation0] sm:$0x1] %vm63, %v62
    %s65 = scalar_lea.vmem %s0, 5
    %v66 = vld [vmem:[%s65] sm:$0x1]
    %67 = vrot.lane.b32.xlu0 %v66, 40
    %v68 = vpop.permute.xlu0 %67
    %vm69 = vcmask 392512
    %70 = vst.msk [vmem:[#allocation0] sm:$0x1] %vm69, %v68
    %s71 = scalar_lea.vmem %s0, 4
    %v72 = vld [vmem:[%s71] sm:$0x1]
    %73 = vrot.lane.b32.xlu0 %v72, 32
    %v74 = vpop.permute.xlu0 %73
    %vm75 = vcmask 326912
    %76 = vst.msk [vmem:[#allocation0] sm:$0x1] %vm75, %v74
    %s77 = scalar_lea.vmem %s0, 3
    %v78 = vld [vmem:[%s77] sm:$0x1]
    %79 = vrot.lane.b32.xlu0 %v78, 24
    %v80 = vpop.permute.xlu0 %79
    %vm81 = vcmask 261312
    %82 = vst.msk [vmem:[#allocation0] sm:$0x1] %vm81, %v80
    %s83 = scalar_lea.vmem %s0, 2
    %v84 = vld [vmem:[%s83] sm:$0x1]
    %85 = vrot.lane.b32.xlu0 %v84, 16
    %v86 = vpop.permute.xlu0 %85
    %vm87 = vcmask 195712
    %88 = vst.msk [vmem:[#allocation0] sm:$0x1] %vm87, %v86
    %s89 = scalar_lea.vmem %s0, 1
    %v90 = vld [vmem:[%s89] sm:$0x1]
    %91 = vrot.lane.b32.xlu0 %v90, 8
    %v92 = vpop.permute.xlu0 %91
    %vm93 = vcmask 130112
    %94 = vst.msk [vmem:[#allocation0] sm:$0x1] %vm93, %v92
    %s96 = sshll.u32 1, 1
    %s97 = ssub.s32 %s96, 1
    %v99 = vld [vmem:[#allocation0] sm:%s97]
    %s100 = sshll.u32 1, 1
    %s101 = ssub.s32 %s100, 1
    %102 = vst [vmem:[%s1] sm:%s101] %v99

// kernel: tile.33
$region0: #{tile.33}
  #allocation0 [shape = 's32[1]{0}', space=sflag, size = 0x4, scoped, tag = 'scoped memory for tile.33']
  %s0 = inlined_call_operand.vmem [shape: f32[16], index: 0, kind: input, shape index: {}]
  %s1 = inlined_call_operand.vmem [shape: f32[16,16], index: 1, kind: output, shape index: {}]
  // Predicated region
  $region2: #{tile.33} parent=0 // pred_check
    _
  $region3: #{tile.33} parent=0 // pred_check_branch
    %3 = sbr.rel (0) target = $region5
  $region4: #{tile.33} parent=0 // pred_region
    _
  $region5: #{tile.33} parent=0 // pred_fallthru
    _
  %v4 = vld [vmem:[%s0] ss:$0 sm:$0xff]
  %5 = vst [vmem:[%s1] sm:$0xff] %v4
  %s6 = scalar_lea.vmem %s1, 8
  %7 = vst [vmem:[%s6] sm:$0xff] %v4

// kernel: tile.34
$region0: #{tile.34}
  %s0 = inlined_call_operand.vmem [shape: f32[16,16], index: 0, kind: input, shape index: {}]
  %s1 = inlined_call_operand.vmem [shape: f32[1,256], index: 1, kind: output, shape index: {}]
  $region1: #{tile.34} parent=0
    #allocation0 [shape = 'u8[8192]{0}', space=vmem, size = 0x2000, scoped, tag = 'scoped mem for output reshape']
    %s2 = smov 3
    %v3 = vld [vmem:[%s0] ss:$8 sm:%s2]
    %vm4 = vcmask 130048
    %5 = vst.msk [vmem:[#allocation0] ss:$8 sm:$0x3] %vm4, %v3
    %s6 = scalar_lea.vmem %s0, 7
    %s7 = smov 3
    %v8 = vld [vmem:[%s6] ss:$8 sm:%s7]
    %9 = vrot.lane.b32.xlu0 %v8, 112
    %v10 = vpop.permute.xlu0 %9
    %vm11 = vcmask 1048448
    %12 = vst.msk [vmem:[#allocation0] ss:$8 sm:$0x3] %vm11, %v10
    %s13 = scalar_lea.vmem %s0, 6
    %s14 = smov 3
    %v15 = vld [vmem:[%s13] ss:$8 sm:%s14]
    %16 = vrot.lane.b32.xlu0 %v15, 96
    %v17 = vpop.permute.xlu0 %16
    %vm18 = vcmask 917248
    %19 = vst.msk [vmem:[#allocation0] ss:$8 sm:$0x3] %vm18, %v17
    %s20 = scalar_lea.vmem %s0, 5
    %s21 = smov 3
    %v22 = vld [vmem:[%s20] ss:$8 sm:%s21]
    %23 = vrot.lane.b32.xlu0 %v22, 80
    %v24 = vpop.permute.xlu0 %23
    %vm25 = vcmask 786048
    %26 = vst.msk [vmem:[#allocation0] ss:$8 sm:$0x3] %vm25, %v24
    %s27 = scalar_lea.vmem %s0, 4
    %s28 = smov 3
    %v29 = vld [vmem:[%s27] ss:$8 sm:%s28]
    %30 = vrot.lane.b32.xlu0 %v29, 64
    %v31 = vpop.permute.xlu0 %30
    %vm32 = vcmask 654848
    %33 = vst.msk [vmem:[#allocation0] ss:$8 sm:$0x3] %vm32, %v31
    %s34 = scalar_lea.vmem %s0, 3
    %s35 = smov 3
    %v36 = vld [vmem:[%s34] ss:$8 sm:%s35]
    %37 = vrot.lane.b32.xlu0 %v36, 48
    %v38 = vpop.permute.xlu0 %37
    %vm39 = vcmask 523648
    %40 = vst.msk [vmem:[#allocation0] ss:$8 sm:$0x3] %vm39, %v38
    %s41 = scalar_lea.vmem %s0, 2
    %s42 = smov 3
    %v43 = vld [vmem:[%s41] ss:$8 sm:%s42]
    %44 = vrot.lane.b32.xlu0 %v43, 32
    %v45 = vpop.permute.xlu0 %44
    %vm46 = vcmask 392448
    %47 = vst.msk [vmem:[#allocation0] ss:$8 sm:$0x3] %vm46, %v45
    %s48 = scalar_lea.vmem %s0, 1
    %s49 = smov 3
    %v50 = vld [vmem:[%s48] ss:$8 sm:%s49]
    %51 = vrot.lane.b32.xlu0 %v50, 16
    %v52 = vpop.permute.xlu0 %51
    %vm53 = vcmask 261248
    %54 = vst.msk [vmem:[#allocation0] ss:$8 sm:$0x3] %vm53, %v52
    %s56 = sshll.u32 1, 1
    %s57 = ssub.s32 %s56, 1
    %v59 = vld [vmem:[#allocation0] sm:%s57]
    %s60 = sshll.u32 1, 1
    %s61 = ssub.s32 %s60, 1
    %62 = vst [vmem:[%s1] sm:%s61] %v59
    %s63 = scalar_lea.vmem [#allocation0], 8
    %v64 = vld [vmem:[%s63] sm:%s57]
    %s65 = sshll.u32 1, 1
    %s66 = ssub.s32 %s65, 1
    %s67 = scalar_lea.vmem %s1, 1
    %68 = vst [vmem:[%s67] sm:%s66] %v64

// kernel: tile.43
$region0: #{tile.43}
  #allocation0 [shape = 's32[1]{0}', space=sflag, size = 0x4, scoped, tag = 'scoped memory for tile.43']
  %s0 = inlined_call_operand.vmem [shape: f32[28], index: 0, kind: input, shape index: {}]
  %s1 = inlined_call_operand.vmem [shape: f32[16,28], index: 1, kind: output, shape index: {}]
  // Predicated region
  $region2: #{tile.43} parent=0 // pred_check
    _
  $region3: #{tile.43} parent=0 // pred_check_branch
    %3 = sbr.rel (0) target = $region5
  $region4: #{tile.43} parent=0 // pred_region
    _
  $region5: #{tile.43} parent=0 // pred_fallthru
    _
  %v4 = vld [vmem:[%s0] ss:$0 sm:$0xff]
  %5 = vst [vmem:[%s1] sm:$0xff] %v4
  %s6 = scalar_lea.vmem %s1, 8
  %7 = vst [vmem:[%s6] sm:$0xff] %v4

// kernel: tile.44
$region0: #{tile.44}
  %s0 = inlined_call_operand.vmem [shape: f32[16,28], index: 0, kind: input, shape index: {}]
  %s1 = inlined_call_operand.vmem [shape: f32[1,448], index: 1, kind: output, shape index: {}]
  $region1: #{tile.44} parent=0
    #allocation0 [shape = 'u8[16384]{0}', space=vmem, size = 0x4000, scoped, tag = 'scoped mem for output reshape']
    %v2 = vld [vmem:[%s0] sm:$0x1]
    %vm3 = vcmask 228352
    %4 = vst.msk [vmem:[#allocation0] sm:$0x1] %vm3, %v2
    %s5 = scalar_lea.vmem %s0, 9
    %v6 = vld [vmem:[%s5] sm:$0x1]
    %s7 = scalar_lea.vmem %s0, 9
    %v8 = vld [vmem:[%s7] sm:$0x1]
    %vm9 = vcmask 31744
    %v10 = vsel %vm9, %v8, %v6
    %11 = vrot.lane.b32.xlu0 %v10, 124
    %v12 = vpop.permute.xlu0 %11
    %vm13 = vcmask 195584
    %s14 = scalar_lea.vmem [#allocation0], 16
    %15 = vst.msk [vmem:[%s14] sm:$0x1] %vm13, %v12
    %vm16 = vcmask 1048544
    %s17 = scalar_lea.vmem [#allocation0], 8
    %18 = vst.msk [vmem:[%s17] sm:$0x1] %vm16, %v12
    %s19 = scalar_lea.vmem %s0, 4
    %v20 = vld [vmem:[%s19] sm:$0x1]
    %s21 = scalar_lea.vmem %s0, 4
    %v22 = vld [vmem:[%s21] sm:$0x1]
    %vm23 = vcmask 130048
    %v24 = vsel %vm23, %v22, %v20
    %25 = vrot.lane.b32.xlu0 %v24, 112
    %v26 = vpop.permute.xlu0 %25
    %vm27 = vcmask 97280
    %s28 = scalar_lea.vmem [#allocation0], 8
    %29 = vst.msk [vmem:[%s28] sm:$0x1] %vm27, %v26
    %vm30 = vcmask 1048448
    %31 = vst.msk [vmem:[#allocation0] sm:$0x1] %vm30, %v26
    %s32 = scalar_lea.vmem %s0, 13
    %v33 = vld [vmem:[%s32] sm:$0x1]
    %s34 = scalar_lea.vmem %s0, 13
    %v35 = vld [vmem:[%s34] sm:$0x1]
    %vm36 = vcmask 162816
    %v37 = vsel %vm36, %v35, %v33
    %38 = vrot.lane.b32.xlu0 %v37, 108
    %v39 = vpop.permute.xlu0 %38
    %vm40 = vcmask 64512
    %s41 = scalar_lea.vmem [#allocation0], 24
    %42 = vst.msk [vmem:[%s41] sm:$0x1] %vm40, %v39
    %vm43 = vcmask 1048416
    %s44 = scalar_lea.vmem [#allocation0], 16
    %45 = vst.msk [vmem:[%s44] sm:$0x1] %vm43, %v39
    %s46 = scalar_lea.vmem %s0, 8
    %v47 = vld [vmem:[%s46] sm:$0x1]
    %48 = vrot.lane.b32.xlu0 %v47, 96
    %v49 = vpop.permute.xlu0 %48
    %vm50 = vcmask 1015552
    %s51 = scalar_lea.vmem [#allocation0], 8
    %52 = vst.msk [vmem:[%s51] sm:$0x1] %vm50, %v49
    %s53 = scalar_lea.vmem %s0, 3
    %v54 = vld [vmem:[%s53] sm:$0x1]
    %55 = vrot.lane.b32.xlu0 %v54, 84
    %v56 = vpop.permute.xlu0 %55
    %vm57 = vcmask 917152
    %58 = vst.msk [vmem:[#allocation0] sm:$0x1] %vm57, %v56
    %s59 = scalar_lea.vmem %s0, 12
    %v60 = vld [vmem:[%s59] sm:$0x1]
    %61 = vrot.lane.b32.xlu0 %v60, 80
    %v62 = vpop.permute.xlu0 %61
    %vm63 = vcmask 884352
    %s64 = scalar_lea.vmem [#allocation0], 16
    %65 = vst.msk [vmem:[%s64] sm:$0x1] %vm63, %v62
    %s66 = scalar_lea.vmem %s0, 7
    %v67 = vld [vmem:[%s66] sm:$0x1]
    %68 = vrot.lane.b32.xlu0 %v67, 68
    %v69 = vpop.permute.xlu0 %68
    %vm70 = vcmask 785952
    %s71 = scalar_lea.vmem [#allocation0], 8
    %72 = vst.msk [vmem:[%s71] sm:$0x1] %vm70, %v69
    %s73 = scalar_lea.vmem %s0, 2
    %v74 = vld [vmem:[%s73] sm:$0x1]
    %75 = vrot.lane.b32.xlu0 %v74, 56
    %v76 = vpop.permute.xlu0 %75
    %vm77 = vcmask 687552
    %78 = vst.msk [vmem:[#allocation0] sm:$0x1] %vm77, %v76
    %s79 = scalar_lea.vmem %s0, 11
    %v80 = vld [vmem:[%s79] sm:$0x1]
    %81 = vrot.lane.b32.xlu0 %v80, 52
    %v82 = vpop.permute.xlu0 %81
    %vm83 = vcmask 654752
    %s84 = scalar_lea.vmem [#allocation0], 16
    %85 = vst.msk [vmem:[%s84] sm:$0x1] %vm83, %v82
    %s86 = scalar_lea.vmem %s0, 6
    %v87 = vld [vmem:[%s86] sm:$0x1]
    %88 = vrot.lane.b32.xlu0 %v87, 40
    %v89 = vpop.permute.xlu0 %88
    %vm90 = vcmask 556352
    %s91 = scalar_lea.vmem [#allocation0], 8
    %92 = vst.msk [vmem:[%s91] sm:$0x1] %vm90, %v89
    %s93 = scalar_lea.vmem %s0, 15
    %v94 = vld [vmem:[%s93] sm:$0x1]
    %95 = vrot.lane.b32.xlu0 %v94, 36
    %v96 = vpop.permute.xlu0 %95
    %vm97 = vcmask 523552
    %s98 = scalar_lea.vmem [#allocation0], 24
    %99 = vst.msk [vmem:[%s98] sm:$0x1] %vm97, %v96
    %s100 = scalar_lea.vmem %s0, 1
    %v101 = vld [vmem:[%s100] sm:$0x1]
    %102 = vrot.lane.b32.xlu0 %v101, 28
    %v103 = vpop.permute.xlu0 %102
    %vm104 = vcmask 457952
    %105 = vst.msk [vmem:[#allocation0] sm:$0x1] %vm104, %v103
    %s106 = scalar_lea.vmem %s0, 10
    %v107 = vld [vmem:[%s106] sm:$0x1]
    %108 = vrot.lane.b32.xlu0 %v107, 24
    %v109 = vpop.permute.xlu0 %108
    %vm110 = vcmask 425152
    %s111 = scalar_lea.vmem [#allocation0], 16
    %112 = vst.msk [vmem:[%s111] sm:$0x1] %vm110, %v109
    %s113 = scalar_lea.vmem %s0, 5
    %v114 = vld [vmem:[%s113] sm:$0x1]
    %115 = vrot.lane.b32.xlu0 %v114, 12
    %v116 = vpop.permute.xlu0 %115
    %vm117 = vcmask 326752
    %s118 = scalar_lea.vmem [#allocation0], 8
    %119 = vst.msk [vmem:[%s118] sm:$0x1] %vm117, %v116
    %s120 = scalar_lea.vmem %s0, 14
    %v121 = vld [vmem:[%s120] sm:$0x1]
    %122 = vrot.lane.b32.xlu0 %v121, 8
    %v123 = vpop.permute.xlu0 %122
    %vm124 = vcmask 293952
    %s125 = scalar_lea.vmem [#allocation0], 24
    %126 = vst.msk [vmem:[%s125] sm:$0x1] %vm124, %v123
    %s128 = sshll.u32 1, 1
    %s129 = ssub.s32 %s128, 1
    %v131 = vld [vmem:[#allocation0] sm:%s129]
    %s132 = sshll.u32 1, 1
    %s133 = ssub.s32 %s132, 1
    %134 = vst [vmem:[%s1] sm:%s133] %v131
    %s135 = scalar_lea.vmem [#allocation0], 8
    %v136 = vld [vmem:[%s135] sm:%s129]
    %s137 = sshll.u32 1, 1
    %s138 = ssub.s32 %s137, 1
    %s139 = scalar_lea.vmem %s1, 1
    %140 = vst [vmem:[%s139] sm:%s138] %v136
    %s141 = scalar_lea.vmem [#allocation0], 16
    %v142 = vld [vmem:[%s141] sm:%s129]
    %s143 = sshll.u32 1, 1
    %s144 = ssub.s32 %s143, 1
    %s145 = smul.addr 1, 2
    %s146 = scalar_lea.vmem %s1, %s145
    %147 = vst [vmem:[%s146] sm:%s144] %v142
    %s148 = scalar_lea.vmem [#allocation0], 24
    %v149 = vld [vmem:[%s148] sm:%s129]
    %s150 = sshll.u32 1, 1
    %s151 = ssub.s32 %s150, 1
    %s152 = smul.addr 1, 3
    %s153 = scalar_lea.vmem %s1, %s152
    %154 = vst [vmem:[%s153] sm:%s151] %v149

// kernel: tile.48
$region0: #{tile.48}
  #allocation0 [shape = 's32[1]{0}', space=sflag, size = 0x4, scoped, tag = 'scoped memory for tile.48']
  %s0 = inlined_call_operand.vmem [shape: f32[32], index: 0, kind: input, shape index: {}]
  %s1 = inlined_call_operand.vmem [shape: f32[16,32], index: 1, kind: output, shape index: {}]
  // Predicated region
  $region2: #{tile.48} parent=0 // pred_check
    _
  $region3: #{tile.48} parent=0 // pred_check_branch
    %3 = sbr.rel (0) target = $region5
  $region4: #{tile.48} parent=0 // pred_region
    _
  $region5: #{tile.48} parent=0 // pred_fallthru
    _
  %v4 = vld [vmem:[%s0] ss:$0 sm:$0xff]
  %5 = vst [vmem:[%s1] sm:$0xff] %v4
  %s6 = scalar_lea.vmem %s1, 8
  %7 = vst [vmem:[%s6] sm:$0xff] %v4

// kernel: tile.49
$region0: #{tile.49}
  %s0 = inlined_call_operand.vmem [shape: f32[16,32], index: 0, kind: input, shape index: {}]
  %s1 = inlined_call_operand.vmem [shape: f32[1,512], index: 1, kind: output, shape index: {}]
  $region1: #{tile.49} parent=0
    #allocation0 [shape = 'u8[16384]{0}', space=vmem, size = 0x4000, scoped, tag = 'scoped mem for output reshape']
    %v2 = vld [vmem:[%s0] ss:$4 sm:$0xf]
    %vm3 = vcmask 261120
    %4 = vst.msk [vmem:[#allocation0] ss:$8 sm:$0xf] %vm3, %v2
    %s5 = scalar_lea.vmem %s0, 3
    %v6 = vld [vmem:[%s5] ss:$4 sm:$0xf]
    %7 = vrot.lane.b32.xlu0 %v6, 96
    %v8 = vpop.permute.xlu0 %7
    %vm9 = vcmask 1048320
    %10 = vst.msk [vmem:[#allocation0] ss:$8 sm:$0xf] %vm9, %v8
    %s11 = scalar_lea.vmem %s0, 2
    %v12 = vld [vmem:[%s11] ss:$4 sm:$0xf]
    %13 = vrot.lane.b32.xlu0 %v12, 64
    %v14 = vpop.permute.xlu0 %13
    %vm15 = vcmask 785920
    %16 = vst.msk [vmem:[#allocation0] ss:$8 sm:$0xf] %vm15, %v14
    %s17 = scalar_lea.vmem %s0, 1
    %v18 = vld [vmem:[%s17] ss:$4 sm:$0xf]
    %19 = vrot.lane.b32.xlu0 %v18, 32
    %v20 = vpop.permute.xlu0 %19
    %vm21 = vcmask 523520
    %22 = vst.msk [vmem:[#allocation0] ss:$8 sm:$0xf] %vm21, %v20
    %s24 = sshll.u32 1, 1
    %s25 = ssub.s32 %s24, 1
    %v27 = vld [vmem:[#allocation0] sm:%s25]
    %s28 = sshll.u32 1, 1
    %s29 = ssub.s32 %s28, 1
    %30 = vst [vmem:[%s1] sm:%s29] %v27
    %s31 = scalar_lea.vmem [#allocation0], 8
    %v32 = vld [vmem:[%s31] sm:%s25]
    %s33 = sshll.u32 1, 1
    %s34 = ssub.s32 %s33, 1
    %s35 = scalar_lea.vmem %s1, 1
    %36 = vst [vmem:[%s35] sm:%s34] %v32
    %s37 = scalar_lea.vmem [#allocation0], 16
    %v38 = vld [vmem:[%s37] sm:%s25]
    %s39 = sshll.u32 1, 1
    %s40 = ssub.s32 %s39, 1
    %s41 = smul.addr 1, 2
    %s42 = scalar_lea.vmem %s1, %s41
    %43 = vst [vmem:[%s42] sm:%s40] %v38
    %s44 = scalar_lea.vmem [#allocation0], 24
    %v45 = vld [vmem:[%s44] sm:%s25]
    %s46 = sshll.u32 1, 1
    %s47 = ssub.s32 %s46, 1
    %s48 = smul.addr 1, 3
    %s49 = scalar_lea.vmem %s1, %s48
    %50 = vst [vmem:[%s49] sm:%s47] %v45

// kernel: scm_forward.1
$region0: #{scm_forward.1}
  #allocation0 [shape = 'u32[]', space=smem, size = 0x4, offset = 0x4, fixed_abs, tag = 'smem constant byte address 0x4 - core index']
  #allocation1 [shape = 'u32[144,128]{1,0:T(1,128)}', space=vmem, size = 0x12000, scoped, tag = 'internal scratch']
  %s0 = inlined_call_operand.vmem [shape: f32[2,16,64], index: 0, kind: input, shape index: {}]
  %s1 = inlined_call_operand.vmem [shape: f32[3,64,128], index: 1, kind: input, shape index: {}]
  %s2 = inlined_call_operand.vmem [shape: f32[1,128], index: 2, kind: input, shape index: {}]
  %s3 = inlined_call_operand.vmem [shape: f32[128,256], index: 3, kind: input, shape index: {}]
  %s4 = inlined_call_operand.vmem [shape: f32[1,256], index: 4, kind: input, shape index: {}]
  %s5 = inlined_call_operand.vmem [shape: f32[3,256,256], index: 5, kind: input, shape index: {}]
  %s6 = inlined_call_operand.vmem [shape: f32[1,256], index: 6, kind: input, shape index: {}]
  %s7 = inlined_call_operand.vmem [shape: f32[256,448], index: 7, kind: input, shape index: {}]
  %s8 = inlined_call_operand.vmem [shape: f32[1,448], index: 8, kind: input, shape index: {}]
  %s9 = inlined_call_operand.vmem [shape: f32[64,512], index: 9, kind: input, shape index: {}]
  %s10 = inlined_call_operand.vmem [shape: f32[448,512], index: 10, kind: input, shape index: {}]
  %s11 = inlined_call_operand.vmem [shape: f32[1,512], index: 11, kind: input, shape index: {}]
  %s12 = inlined_call_operand.vmem [shape: f32[2,16,512], index: 12, kind: output, shape index: {}]
  %s13 = sld [smem:[#allocation0]]
  $region81: #{scm_forward.1} parent=0
    _
  %s15 = ssub.s32 1, %s13
  %s16 = scalar_select 0, %s15, %s13
  loop: start=0, step=1, limit=4
  $region2: #{scm_forward.1} parent=0 // loop_pre_header
    _
  $region3: #{scm_forward.1} parent=0 // loop_header
    %s18 = sphi 0, %s22
    %p19 = scmp.ge.s32.totalorder %s18, 4
    %s28 = sphi 0, %s30
    %s31 = sphi 0, %s28
    %s32 = sphi 0, %s31
    %s48 = sphi 0, %s32
    %s52 = sphi 0, %s52
    %s54 = sphi 0, %s52
    %s55 = sphi 0, %s54
    %s69 = sphi 0, %s55
    %s73 = sphi 0, %s73
    %s75 = sphi 0, %s73
    %s76 = sphi 0, %s75
    %s90 = sphi 0, %s76
    %s94 = sphi 0, %s94
    %s96 = sphi 0, %s94
    %s97 = sphi 0, %s96
    %s111 = sphi 0, %s97
    %s115 = sphi 0, %s115
    %s117 = sphi 0, %s115
    %s118 = sphi 0, %s117
    %s132 = sphi 0, %s118
    %s136 = sphi 0, %s136
    %s138 = sphi 0, %s136
    %s139 = sphi 0, %s138
    %s153 = sphi 0, %s139
    %s157 = sphi 0, %s157
    %s159 = sphi 0, %s157
    %s160 = sphi 0, %s159
    %s174 = sphi 0, %s160
    %s178 = sphi 0, %s178
    %s180 = sphi 0, %s178
    %s181 = sphi 0, %s180
    %s195 = sphi 0, %s181
    %s199 = sphi 0, %s199
    %s201 = sphi 0, %s199
    %s202 = sphi 0, %s201
    %s216 = sphi 0, %s202
    %s220 = sphi 0, %s220
    %s222 = sphi 0, %s220
    %s223 = sphi 0, %s222
    %s237 = sphi 0, %s223
    %s241 = sphi 0, %s241
    %s243 = sphi 0, %s241
    %s244 = sphi 0, %s243
    %s258 = sphi 0, %s244
    %s262 = sphi 0, %s262
    %s264 = sphi 0, %s262
    %s265 = sphi 0, %s264
    %s279 = sphi 0, %s265
    %s285 = sphi 0, %s287
    %s288 = sphi 0, %s285
    %s289 = sphi 0, %s288
    %s305 = sphi 0, %s289
  $region4: #{scm_forward.1} parent=0 // loop_header_branch
    %21 = sbr.rel (%p19) target = $region8
  $region5: #{scm_forward.1} parent=0 // loop_body
    %s23 = ssub.s32 %s18, 1
    %s24 = ssub.s32 %s18, 2
    %s25 = sadd.s32 %s18, 1
    %s26 = ssub.s32 %s18, %s25
    %p27 = scmp.eq.s32.totalorder %s26, 0
    %s29 = sadd.s32 %s28, 1
    %s30 = scalar_select %p27, %s28, %s29
    %p33 = pneg %p27
    %p34 = scmp.eq.s32.totalorder %s18, 1
    %p35 = por %p33, %p34
    %p36 = scmp.ne.s32.totalorder %s28, %s31
    %p37 = scmp.eq.s32.totalorder %s18, 0
    %p38 = por %p36, %p37
    %p39 = scmp.ne.s32.totalorder %s28, %s31
    %p40 = scmp.eq.s32.totalorder %s23, 1
    %p41 = por %p39, %p40
    %p42 = scmp.ne.s32.totalorder %s31, %s32
    %p43 = scmp.eq.s32.totalorder %s23, 0
    %p44 = por %p42, %p43
    %p45 = scmp.ne.s32.totalorder %s31, %s32
    %p46 = scmp.eq.s32.totalorder %s24, 1
    %p47 = por %p45, %p46
    %p49 = scmp.ne.s32.totalorder %s32, %s48
    %p50 = scmp.eq.s32.totalorder %s24, 0
    %p51 = por %p49, %p50
    %s53 = sadd.s32 %s52, 1
    %p56 = scmp.eq.s32.totalorder %s18, 1
    %p57 = scmp.ne.s32.totalorder %s52, %s54
    %p58 = scmp.eq.s32.totalorder %s18, 0
    %p59 = por %p57, %p58
    %p60 = scmp.ne.s32.totalorder %s52, %s54
    %p61 = scmp.eq.s32.totalorder %s23, 1
    %p62 = por %p60, %p61
    %p63 = scmp.ne.s32.totalorder %s54, %s55
    %p64 = scmp.eq.s32.totalorder %s23, 0
    %p65 = por %p63, %p64
    %p66 = scmp.ne.s32.totalorder %s54, %s55
    %p67 = scmp.eq.s32.totalorder %s24, 1
    %p68 = por %p66, %p67
    %p70 = scmp.ne.s32.totalorder %s55, %s69
    %p71 = scmp.eq.s32.totalorder %s24, 0
    %p72 = por %p70, %p71
    %s74 = sadd.s32 %s73, 1
    %p77 = scmp.eq.s32.totalorder %s18, 1
    %p78 = scmp.ne.s32.totalorder %s73, %s75
    %p79 = scmp.eq.s32.totalorder %s18, 0
    %p80 = por %p78, %p79
    %p81 = scmp.ne.s32.totalorder %s73, %s75
    %p82 = scmp.eq.s32.totalorder %s23, 1
    %p83 = por %p81, %p82
    %p84 = scmp.ne.s32.totalorder %s75, %s76
    %p85 = scmp.eq.s32.totalorder %s23, 0
    %p86 = por %p84, %p85
    %p87 = scmp.ne.s32.totalorder %s75, %s76
    %p88 = scmp.eq.s32.totalorder %s24, 1
    %p89 = por %p87, %p88
    %p91 = scmp.ne.s32.totalorder %s76, %s90
    %p92 = scmp.eq.s32.totalorder %s24, 0
    %p93 = por %p91, %p92
    %s95 = sadd.s32 %s94, 1
    %p98 = scmp.eq.s32.totalorder %s18, 1
    %p99 = scmp.ne.s32.totalorder %s94, %s96
    %p100 = scmp.eq.s32.totalorder %s18, 0
    %p101 = por %p99, %p100
    %p102 = scmp.ne.s32.totalorder %s94, %s96
    %p103 = scmp.eq.s32.totalorder %s23, 1
    %p104 = por %p102, %p103
    %p105 = scmp.ne.s32.totalorder %s96, %s97
    %p106 = scmp.eq.s32.totalorder %s23, 0
    %p107 = por %p105, %p106
    %p108 = scmp.ne.s32.totalorder %s96, %s97
    %p109 = scmp.eq.s32.totalorder %s24, 1
    %p110 = por %p108, %p109
    %p112 = scmp.ne.s32.totalorder %s97, %s111
    %p113 = scmp.eq.s32.totalorder %s24, 0
    %p114 = por %p112, %p113
    %s116 = sadd.s32 %s115, 1
    %p119 = scmp.eq.s32.totalorder %s18, 1
    %p120 = scmp.ne.s32.totalorder %s115, %s117
    %p121 = scmp.eq.s32.totalorder %s18, 0
    %p122 = por %p120, %p121
    %p123 = scmp.ne.s32.totalorder %s115, %s117
    %p124 = scmp.eq.s32.totalorder %s23, 1
    %p125 = por %p123, %p124
    %p126 = scmp.ne.s32.totalorder %s117, %s118
    %p127 = scmp.eq.s32.totalorder %s23, 0
    %p128 = por %p126, %p127
    %p129 = scmp.ne.s32.totalorder %s117, %s118
    %p130 = scmp.eq.s32.totalorder %s24, 1
    %p131 = por %p129, %p130
    %p133 = scmp.ne.s32.totalorder %s118, %s132
    %p134 = scmp.eq.s32.totalorder %s24, 0
    %p135 = por %p133, %p134
    %s137 = sadd.s32 %s136, 1
    %p140 = scmp.eq.s32.totalorder %s18, 1
    %p141 = scmp.ne.s32.totalorder %s136, %s138
    %p142 = scmp.eq.s32.totalorder %s18, 0
    %p143 = por %p141, %p142
    %p144 = scmp.ne.s32.totalorder %s136, %s138
    %p145 = scmp.eq.s32.totalorder %s23, 1
    %p146 = por %p144, %p145
    %p147 = scmp.ne.s32.totalorder %s138, %s139
    %p148 = scmp.eq.s32.totalorder %s23, 0
    %p149 = por %p147, %p148
    %p150 = scmp.ne.s32.totalorder %s138, %s139
    %p151 = scmp.eq.s32.totalorder %s24, 1
    %p152 = por %p150, %p151
    %p154 = scmp.ne.s32.totalorder %s139, %s153
    %p155 = scmp.eq.s32.totalorder %s24, 0
    %p156 = por %p154, %p155
    %s158 = sadd.s32 %s157, 1
    %p161 = scmp.eq.s32.totalorder %s18, 1
    %p162 = scmp.ne.s32.totalorder %s157, %s159
    %p163 = scmp.eq.s32.totalorder %s18, 0
    %p164 = por %p162, %p163
    %p165 = scmp.ne.s32.totalorder %s157, %s159
    %p166 = scmp.eq.s32.totalorder %s23, 1
    %p167 = por %p165, %p166
    %p168 = scmp.ne.s32.totalorder %s159, %s160
    %p169 = scmp.eq.s32.totalorder %s23, 0
    %p170 = por %p168, %p169
    %p171 = scmp.ne.s32.totalorder %s159, %s160
    %p172 = scmp.eq.s32.totalorder %s24, 1
    %p173 = por %p171, %p172
    %p175 = scmp.ne.s32.totalorder %s160, %s174
    %p176 = scmp.eq.s32.totalorder %s24, 0
    %p177 = por %p175, %p176
    %s179 = sadd.s32 %s178, 1
    %p182 = scmp.eq.s32.totalorder %s18, 1
    %p183 = scmp.ne.s32.totalorder %s178, %s180
    %p184 = scmp.eq.s32.totalorder %s18, 0
    %p185 = por %p183, %p184
    %p186 = scmp.ne.s32.totalorder %s178, %s180
    %p187 = scmp.eq.s32.totalorder %s23, 1
    %p188 = por %p186, %p187
    %p189 = scmp.ne.s32.totalorder %s180, %s181
    %p190 = scmp.eq.s32.totalorder %s23, 0
    %p191 = por %p189, %p190
    %p192 = scmp.ne.s32.totalorder %s180, %s181
    %p193 = scmp.eq.s32.totalorder %s24, 1
    %p194 = por %p192, %p193
    %p196 = scmp.ne.s32.totalorder %s181, %s195
    %p197 = scmp.eq.s32.totalorder %s24, 0
    %p198 = por %p196, %p197
    %s200 = sadd.s32 %s199, 1
    %p203 = scmp.eq.s32.totalorder %s18, 1
    %p204 = scmp.ne.s32.totalorder %s199, %s201
    %p205 = scmp.eq.s32.totalorder %s18, 0
    %p206 = por %p204, %p205
    %p207 = scmp.ne.s32.totalorder %s199, %s201
    %p208 = scmp.eq.s32.totalorder %s23, 1
    %p209 = por %p207, %p208
    %p210 = scmp.ne.s32.totalorder %s201, %s202
    %p211 = scmp.eq.s32.totalorder %s23, 0
    %p212 = por %p210, %p211
    %p213 = scmp.ne.s32.totalorder %s201, %s202
    %p214 = scmp.eq.s32.totalorder %s24, 1
    %p215 = por %p213, %p214
    %p217 = scmp.ne.s32.totalorder %s202, %s216
    %p218 = scmp.eq.s32.totalorder %s24, 0
    %p219 = por %p217, %p218
    %s221 = sadd.s32 %s220, 1
    %p224 = scmp.eq.s32.totalorder %s18, 1
    %p225 = scmp.ne.s32.totalorder %s220, %s222
    %p226 = scmp.eq.s32.totalorder %s18, 0
    %p227 = por %p225, %p226
    %p228 = scmp.ne.s32.totalorder %s220, %s222
    %p229 = scmp.eq.s32.totalorder %s23, 1
    %p230 = por %p228, %p229
    %p231 = scmp.ne.s32.totalorder %s222, %s223
    %p232 = scmp.eq.s32.totalorder %s23, 0
    %p233 = por %p231, %p232
    %p234 = scmp.ne.s32.totalorder %s222, %s223
    %p235 = scmp.eq.s32.totalorder %s24, 1
    %p236 = por %p234, %p235
    %p238 = scmp.ne.s32.totalorder %s223, %s237
    %p239 = scmp.eq.s32.totalorder %s24, 0
    %p240 = por %p238, %p239
    %s242 = sadd.s32 %s241, 1
    %p245 = scmp.eq.s32.totalorder %s18, 1
    %p246 = scmp.ne.s32.totalorder %s241, %s243
    %p247 = scmp.eq.s32.totalorder %s18, 0
    %p248 = por %p246, %p247
    %p249 = scmp.ne.s32.totalorder %s241, %s243
    %p250 = scmp.eq.s32.totalorder %s23, 1
    %p251 = por %p249, %p250
    %p252 = scmp.ne.s32.totalorder %s243, %s244
    %p253 = scmp.eq.s32.totalorder %s23, 0
    %p254 = por %p252, %p253
    %p255 = scmp.ne.s32.totalorder %s243, %s244
    %p256 = scmp.eq.s32.totalorder %s24, 1
    %p257 = por %p255, %p256
    %p259 = scmp.ne.s32.totalorder %s244, %s258
    %p260 = scmp.eq.s32.totalorder %s24, 0
    %p261 = por %p259, %p260
    %s263 = sadd.s32 %s262, 1
    %p266 = scmp.eq.s32.totalorder %s18, 1
    %p267 = scmp.ne.s32.totalorder %s262, %s264
    %p268 = scmp.eq.s32.totalorder %s18, 0
    %p269 = por %p267, %p268
    %p270 = scmp.ne.s32.totalorder %s262, %s264
    %p271 = scmp.eq.s32.totalorder %s23, 1
    %p272 = por %p270, %p271
    %p273 = scmp.ne.s32.totalorder %s264, %s265
    %p274 = scmp.eq.s32.totalorder %s23, 0
    %p275 = por %p273, %p274
    %p276 = scmp.ne.s32.totalorder %s264, %s265
    %p277 = scmp.eq.s32.totalorder %s24, 1
    %p278 = por %p276, %p277
    %p280 = scmp.ne.s32.totalorder %s265, %s279
    %p281 = scmp.eq.s32.totalorder %s24, 0
    %p282 = por %p280, %p281
    %s283 = ssub.s32 %s18, %s25
    %p284 = scmp.eq.s32.totalorder %s283, 0
    %s286 = sadd.s32 %s285, 1
    %s287 = scalar_select %p284, %s285, %s286
    %p290 = pneg %p284
    %p291 = scmp.eq.s32.totalorder %s18, 1
    %p292 = por %p290, %p291
    %p293 = scmp.ne.s32.totalorder %s285, %s288
    %p294 = scmp.eq.s32.totalorder %s18, 0
    %p295 = por %p293, %p294
    %p296 = scmp.ne.s32.totalorder %s285, %s288
    %p297 = scmp.eq.s32.totalorder %s23, 1
    %p298 = por %p296, %p297
    %p299 = scmp.ne.s32.totalorder %s288, %s289
    %p300 = scmp.eq.s32.totalorder %s23, 0
    %p301 = por %p299, %p300
    %p302 = scmp.ne.s32.totalorder %s288, %s289
    %p303 = scmp.eq.s32.totalorder %s24, 1
    %p304 = por %p302, %p303
    %p306 = scmp.ne.s32.totalorder %s289, %s305
    %p307 = scmp.eq.s32.totalorder %s24, 0
    %p308 = por %p306, %p307
    %p309 = scmp.le.s32.totalorder 1, %s18
    %p310 = scmp.lt.s32.totalorder %s18, 3
    %p311 = pnand %p309, %p310
    %p312 = pneg %p311
    // Predicated region
    $region9: #{scm_forward.1} parent=5 // pred_check
      _
    $region10: #{scm_forward.1} parent=5 // pred_check_branch
      %314 = sbr.rel (%p311) target = $region12
    $region11: #{scm_forward.1} parent=5 // pred_region
      %s315 = ssub.s32 %s18, 1
      // Predicated region
      $region13: #{scm_forward.1} parent=11 // pred_check
        %p316 = pneg %p65
      $region14: #{scm_forward.1} parent=11 // pred_check_branch
        %318 = sbr.rel (%p316) target = $region16
      $region15: #{scm_forward.1} parent=11 // pred_region
        _
      $region16: #{scm_forward.1} parent=11 // pred_fallthru
        _
      // Predicated region
      $region17: #{scm_forward.1} parent=11 // pred_check
        %p319 = pneg %p86
      $region18: #{scm_forward.1} parent=11 // pred_check_branch
        %321 = sbr.rel (%p319) target = $region20
      $region19: #{scm_forward.1} parent=11 // pred_region
        _
      $region20: #{scm_forward.1} parent=11 // pred_fallthru
        _
      // Predicated region
      $region21: #{scm_forward.1} parent=11 // pred_check
        %p322 = pneg %p107
      $region22: #{scm_forward.1} parent=11 // pred_check_branch
        %324 = sbr.rel (%p322) target = $region24
      $region23: #{scm_forward.1} parent=11 // pred_region
        _
      $region24: #{scm_forward.1} parent=11 // pred_fallthru
        _
      // Predicated region
      $region25: #{scm_forward.1} parent=11 // pred_check
        %p325 = pneg %p128
      $region26: #{scm_forward.1} parent=11 // pred_check_branch
        %327 = sbr.rel (%p325) target = $region28
      $region27: #{scm_forward.1} parent=11 // pred_region
        _
      $region28: #{scm_forward.1} parent=11 // pred_fallthru
        _
      // Predicated region
      $region29: #{scm_forward.1} parent=11 // pred_check
        %p328 = pneg %p149
      $region30: #{scm_forward.1} parent=11 // pred_check_branch
        %330 = sbr.rel (%p328) target = $region32
      $region31: #{scm_forward.1} parent=11 // pred_region
        _
      $region32: #{scm_forward.1} parent=11 // pred_fallthru
        _
      // Predicated region
      $region33: #{scm_forward.1} parent=11 // pred_check
        %p331 = pneg %p170
      $region34: #{scm_forward.1} parent=11 // pred_check_branch
        %333 = sbr.rel (%p331) target = $region36
      $region35: #{scm_forward.1} parent=11 // pred_region
        _
      $region36: #{scm_forward.1} parent=11 // pred_fallthru
        _
      // Predicated region
      $region37: #{scm_forward.1} parent=11 // pred_check
        %p334 = pneg %p191
      $region38: #{scm_forward.1} parent=11 // pred_check_branch
        %336 = sbr.rel (%p334) target = $region40
      $region39: #{scm_forward.1} parent=11 // pred_region
        _
      $region40: #{scm_forward.1} parent=11 // pred_fallthru
        _
      // Predicated region
      $region41: #{scm_forward.1} parent=11 // pred_check
        %p337 = pneg %p212
      $region42: #{scm_forward.1} parent=11 // pred_check_branch
        %339 = sbr.rel (%p337) target = $region44
      $region43: #{scm_forward.1} parent=11 // pred_region
        _
      $region44: #{scm_forward.1} parent=11 // pred_fallthru
        _
      // Predicated region
      $region45: #{scm_forward.1} parent=11 // pred_check
        %p340 = pneg %p233
      $region46: #{scm_forward.1} parent=11 // pred_check_branch
        %342 = sbr.rel (%p340) target = $region48
      $region47: #{scm_forward.1} parent=11 // pred_region
        _
      $region48: #{scm_forward.1} parent=11 // pred_fallthru
        _
      // Predicated region
      $region49: #{scm_forward.1} parent=11 // pred_check
        %p343 = pneg %p254
      $region50: #{scm_forward.1} parent=11 // pred_check_branch
        %345 = sbr.rel (%p343) target = $region52
      $region51: #{scm_forward.1} parent=11 // pred_region
        _
      $region52: #{scm_forward.1} parent=11 // pred_fallthru
        _
      // Predicated region
      $region53: #{scm_forward.1} parent=11 // pred_check
        %p346 = pneg %p275
      $region54: #{scm_forward.1} parent=11 // pred_check_branch
        %348 = sbr.rel (%p346) target = $region56
      $region55: #{scm_forward.1} parent=11 // pred_region
        _
      $region56: #{scm_forward.1} parent=11 // pred_fallthru
        _
    $region12: #{scm_forward.1} parent=5 // pred_fallthru
      _
    %p349 = scmp.lt.s32.totalorder %s18, 2
    // Predicated region
    $region57: #{scm_forward.1} parent=5 // pred_check
      %p350 = pneg %p349
    $region58: #{scm_forward.1} parent=5 // pred_check_branch
      %352 = sbr.rel (%p350) target = $region60
    $region59: #{scm_forward.1} parent=5 // pred_region
      // Predicated region
      $region61: #{scm_forward.1} parent=59 // pred_check
        %p353 = pneg %p38
      $region62: #{scm_forward.1} parent=59 // pred_check_branch
        %355 = sbr.rel (%p353) target = $region64
      $region63: #{scm_forward.1} parent=59 // pred_region
        %p356 = scmp.lt.s32.totalorder %s18, 1
        %s357 = scalar_select %p356, %s18, 1
        %s358 = smul.addr %s357, 2
        %s359 = smul.addr %s358, 8
        %s360 = scalar_lea.vmem %s0, %s359
      $region64: #{scm_forward.1} parent=59 // pred_fallthru
        _
    $region60: #{scm_forward.1} parent=5 // pred_fallthru
      _
    %p361 = scmp.le.s32.totalorder 1, %s18
    %p362 = scmp.lt.s32.totalorder %s18, 3
    %p363 = pnand %p361, %p362
    %p364 = pneg %p363
    // Predicated region
    $region65: #{scm_forward.1} parent=5 // pred_check
      _
    $region66: #{scm_forward.1} parent=5 // pred_check_branch
      %366 = sbr.rel (%p363) target = $region68
    $region67: #{scm_forward.1} parent=5 // pred_region
      %s367 = ssub.s32 %s18, 1
      %p368 = scmp.lt.s32.totalorder %s23, 1
      %s369 = scalar_select %p368, %s23, 1
      %s370 = smul.addr %s369, 2
      %s371 = smul.addr %s370, 8
      %s372 = scalar_lea.vmem %s0, %s371
      %p373 = pneg %p44
      %p374 = pneg %p41
      %p375 = pneg %p65
      %p376 = pneg %p62
      %p377 = pneg %p86
      %p378 = pneg %p83
      %p379 = pneg %p107
      %p380 = pneg %p104
      %p381 = pneg %p128
      %p382 = pneg %p125
      %p383 = pneg %p149
      %p384 = pneg %p146
      %p385 = pneg %p170
      %p386 = pneg %p167
      %p387 = pneg %p191
      %p388 = pneg %p188
      %p389 = pneg %p212
      %p390 = pneg %p209
      %p391 = pneg %p233
      %p392 = pneg %p230
      %p393 = pneg %p254
      %p394 = pneg %p251
      %p395 = pneg %p275
      %p396 = pneg %p272
      %p397 = pneg %p301
      %p398 = pneg %p298
      %p399 = scmp.lt.s32.totalorder %s23, 1
      %s400 = scalar_select %p399, %s23, 1
      %s401 = smul.addr %s400, 8
      %s402 = smul.addr %s401, 8
      %s403 = scalar_lea.vmem %s12, %s402
      %p404 = scmp.lt.s32.totalorder %s23, 1
      %s405 = scalar_select %p404, %s23, 1
      %s406 = smul.addr %s405, 2
      %s407 = smul.addr %s406, 8
      %s408 = scalar_lea.vmem %s0, %s407
      %p409 = scmp.lt.s32.totalorder %s23, 1
      %s410 = scalar_select %p409, %s23, 1
      %s411 = smul.addr %s410, 8
      %s412 = smul.addr %s411, 8
      %s413 = scalar_lea.vmem %s12, %s412
      %v414 = vld [vmem:[%s408] sm:$0xff]
      %v415 = vld [vmem:[%s408 + $0x8] sm:$0xff]
      %v416 = vld [vmem:[%s1] sm:$0xff]
      %v417 = vld [vmem:[%s1 + $0x8] sm:$0xff]
      %v418 = vld [vmem:[%s1 + $0x10] sm:$0xff]
      %v419 = vld [vmem:[%s1 + $0x18] sm:$0xff]
      %v420 = vld [vmem:[%s1 + $0x20] sm:$0xff]
      %v421 = vld [vmem:[%s1 + $0x28] sm:$0xff]
      %v422 = vld [vmem:[%s1 + $0x30] sm:$0xff]
      %v423 = vld [vmem:[%s1 + $0x38] sm:$0xff]
      %vm424 = vcmask 523264
      %v426 = vsel %vm424, %v414, 0
      %v429 = vsel %vm424, %v415, 0
      %431 = vmatprep.subr.mxu0 0.0
      %432 = vmatpush1.msra.mxu0 0.0
      %433 = vmatprep.subr.mxu0 0.0
      %434 = vmatpush1.msra.mxu0 0.0
      %435 = vmatprep.subr.mxu0 0.0
      %436 = vmatpush1.msra.mxu0 0.0
      %437 = vmatprep.subr.mxu0 0.0
      %438 = vmatpush1.msra.mxu0 0.0
      %439 = vmatprep.subr.mxu0 0.0
      %440 = vmatpush1.msra.mxu0 0.0
      %441 = vmatprep.subr.mxu0 0.0
      %442 = vmatpush1.msra.mxu0 0.0
      %443 = vmatprep.subr.mxu0 0.0
      %444 = vmatpush1.msra.mxu0 0.0
      %445 = vmatprep.subr.mxu0 0.0
      %446 = vmatpush1.msra.mxu0 0.0
      %447 = vmatprep.subr.mxu0 0.0
      %448 = vmatpush1.msra.mxu0 %v423
      %449 = vmatprep.subr.mxu0 0.0
      %450 = vmatpush1.msra.mxu0 %v422
      %451 = vmatprep.subr.mxu0 0.0
      %452 = vmatpush1.msra.mxu0 %v421
      %453 = vmatprep.subr.mxu0 0.0
      %454 = vmatpush1.msra.mxu0 %v420
      %455 = vmatprep.subr.mxu0 0.0
      %456 = vmatpush1.msra.mxu0 %v419
      %457 = vmatprep.subr.mxu0 0.0
      %458 = vmatpush1.msra.mxu0 %v418
      %459 = vmatprep.subr.mxu0 0.0
      %460 = vmatpush1.msra.mxu0 %v417
      %461 = vmatprep.subr.mxu0 0.0
      %462 = vmatpush1.msra.mxu0 %v416
      %463 = vmatprep.subr.mxu0 0.0
      %464 = vmatpush2.msra.mxu0 0.0
      %465 = vmatprep.subr.mxu0 0.0
      %466 = vmatpush2.msra.mxu0 0.0
      %467 = vmatprep.subr.mxu0 0.0
      %468 = vmatpush2.msra.mxu0 0.0
      %469 = vmatprep.subr.mxu0 0.0
      %470 = vmatpush2.msra.mxu0 0.0
      %471 = vmatprep.subr.mxu0 0.0
      %472 = vmatpush2.msra.mxu0 0.0
      %473 = vmatprep.subr.mxu0 0.0
      %474 = vmatpush2.msra.mxu0 0.0
      %475 = vmatprep.subr.mxu0 0.0
      %476 = vmatpush2.msra.mxu0 0.0
      %477 = vmatprep.subr.mxu0 0.0
      %478 = vmatpush2.msra.mxu0 0.0
      %479 = vmatprep.subr.mxu0 0.0
      %480 = vmatpush2.msra.mxu0 0.0
      %481 = vmatprep.subr.mxu0 0.0
      %482 = vmatpush2.msra.mxu0 0.0
      %483 = vmatprep.subr.mxu0 0.0
      %484 = vmatpush2.msra.mxu0 0.0
      %485 = vmatprep.subr.mxu0 0.0
      %486 = vmatpush2.msra.mxu0 0.0
      %487 = vmatprep.subr.mxu0 0.0
      %488 = vmatpush2.msra.mxu0 0.0
      %489 = vmatprep.subr.mxu0 0.0
      %490 = vmatpush2.msra.mxu0 0.0
      %491 = vmatprep.subr.mxu0 0.0
      %492 = vmatpush2.msra.mxu0 0.0
      %493 = vmatprep.subr.mxu0 0.0
      %494 = vmatpush2.msra.mxu0 0.0
      %495 = vmatprep.mubr.f32.mxu0 0.0
      %496 = vmatmul.mubr.f32.gmra.mxu0 %v426
      %v497 = vpop.f32.mrf.mxu0
      %v498 = vadd.f32 0.0, %v497
      %v499 = vpop.f32.mrf.mxu0
      %500 = vmatprep.mubr.f32.mxu0 0.0
      %501 = vmatmul.mubr.f32.gmra.mxu0 %v429
      %v502 = vpop.f32.mrf.mxu0
      %v503 = vadd.f32 0.0, %v502
      %v504 = vpop.f32.mrf.mxu0
      %505 = vdwg.mxu0
      %s506 = scalar_lea.vmem %s1, 64
      %v507 = vld [vmem:[%s506] sm:$0xff]
      %v508 = vld [vmem:[%s506 + $0x8] sm:$0xff]
      %v509 = vld [vmem:[%s506 + $0x10] sm:$0xff]
      %v510 = vld [vmem:[%s506 + $0x18] sm:$0xff]
      %v511 = vld [vmem:[%s506 + $0x20] sm:$0xff]
      %v512 = vld [vmem:[%s506 + $0x28] sm:$0xff]
      %v513 = vld [vmem:[%s506 + $0x30] sm:$0xff]
      %v514 = vld [vmem:[%s506 + $0x38] sm:$0xff]
      %515 = vmatprep.subr.mxu0 0.0
      %516 = vmatpush1.msra.mxu0 0.0
      %517 = vmatprep.subr.mxu0 0.0
      %518 = vmatpush1.msra.mxu0 0.0
      %519 = vmatprep.subr.mxu0 0.0
      %520 = vmatpush1.msra.mxu0 0.0
      %521 = vmatprep.subr.mxu0 0.0
      %522 = vmatpush1.msra.mxu0 0.0
      %523 = vmatprep.subr.mxu0 0.0
      %524 = vmatpush1.msra.mxu0 0.0
      %525 = vmatprep.subr.mxu0 0.0
      %526 = vmatpush1.msra.mxu0 0.0
      %527 = vmatprep.subr.mxu0 0.0
      %528 = vmatpush1.msra.mxu0 0.0
      %529 = vmatprep.subr.mxu0 0.0
      %530 = vmatpush1.msra.mxu0 0.0
      %531 = vmatprep.subr.mxu0 0.0
      %532 = vmatpush1.msra.mxu0 %v514
      %533 = vmatprep.subr.mxu0 0.0
      %534 = vmatpush1.msra.mxu0 %v513
      %535 = vmatprep.subr.mxu0 0.0
      %536 = vmatpush1.msra.mxu0 %v512
      %537 = vmatprep.subr.mxu0 0.0
      %538 = vmatpush1.msra.mxu0 %v511
      %539 = vmatprep.subr.mxu0 0.0
      %540 = vmatpush1.msra.mxu0 %v510
      %541 = vmatprep.subr.mxu0 0.0
      %542 = vmatpush1.msra.mxu0 %v509
      %543 = vmatprep.subr.mxu0 0.0
      %544 = vmatpush1.msra.mxu0 %v508
      %545 = vmatprep.subr.mxu0 0.0
      %546 = vmatpush1.msra.mxu0 %v507
      %547 = vmatprep.subr.mxu0 0.0
      %548 = vmatpush2.msra.mxu0 0.0
      %549 = vmatprep.subr.mxu0 0.0
      %550 = vmatpush2.msra.mxu0 0.0
      %551 = vmatprep.subr.mxu0 0.0
      %552 = vmatpush2.msra.mxu0 0.0
      %553 = vmatprep.subr.mxu0 0.0
      %554 = vmatpush2.msra.mxu0 0.0
      %555 = vmatprep.subr.mxu0 0.0
      %556 = vmatpush2.msra.mxu0 0.0
      %557 = vmatprep.subr.mxu0 0.0
      %558 = vmatpush2.msra.mxu0 0.0
      %559 = vmatprep.subr.mxu0 0.0
      %560 = vmatpush2.msra.mxu0 0.0
      %561 = vmatprep.subr.mxu0 0.0
      %562 = vmatpush2.msra.mxu0 0.0
      %563 = vmatprep.subr.mxu0 0.0
      %564 = vmatpush2.msra.mxu0 0.0
      %565 = vmatprep.subr.mxu0 0.0
      %566 = vmatpush2.msra.mxu0 0.0
      %567 = vmatprep.subr.mxu0 0.0
      %568 = vmatpush2.msra.mxu0 0.0
      %569 = vmatprep.subr.mxu0 0.0
      %570 = vmatpush2.msra.mxu0 0.0
      %571 = vmatprep.subr.mxu0 0.0
      %572 = vmatpush2.msra.mxu0 0.0
      %573 = vmatprep.subr.mxu0 0.0
      %574 = vmatpush2.msra.mxu0 0.0
      %575 = vmatprep.subr.mxu0 0.0
      %576 = vmatpush2.msra.mxu0 0.0
      %577 = vmatprep.subr.mxu0 0.0
      %578 = vmatpush2.msra.mxu0 0.0
      %579 = vmatprep.mubr.f32.mxu0 0.0
      %580 = vmatmul.mubr.f32.gmra.mxu0 %v426
      %v581 = vpop.f32.mrf.mxu0
      %v582 = vadd.f32 0.0, %v581
      %v583 = vpop.f32.mrf.mxu0
      %584 = vmatprep.mubr.f32.mxu0 0.0
      %585 = vmatmul.mubr.f32.gmra.mxu0 %v429
      %v586 = vpop.f32.mrf.mxu0
      %v587 = vadd.f32 0.0, %v586
      %v588 = vpop.f32.mrf.mxu0
      %589 = vdwg.mxu0
      %s590 = scalar_lea.vmem %s1, 128
      %v591 = vld [vmem:[%s590] sm:$0xff]
      %v592 = vld [vmem:[%s590 + $0x8] sm:$0xff]
      %v593 = vld [vmem:[%s590 + $0x10] sm:$0xff]
      %v594 = vld [vmem:[%s590 + $0x18] sm:$0xff]
      %v595 = vld [vmem:[%s590 + $0x20] sm:$0xff]
      %v596 = vld [vmem:[%s590 + $0x28] sm:$0xff]
      %v597 = vld [vmem:[%s590 + $0x30] sm:$0xff]
      %v598 = vld [vmem:[%s590 + $0x38] sm:$0xff]
      %599 = vmatprep.subr.mxu0 0.0
      %600 = vmatpush1.msra.mxu0 0.0
      %601 = vmatprep.subr.mxu0 0.0
      %602 = vmatpush1.msra.mxu0 0.0
      %603 = vmatprep.subr.mxu0 0.0
      %604 = vmatpush1.msra.mxu0 0.0
      %605 = vmatprep.subr.mxu0 0.0
      %606 = vmatpush1.msra.mxu0 0.0
      %607 = vmatprep.subr.mxu0 0.0
      %608 = vmatpush1.msra.mxu0 0.0
      %609 = vmatprep.subr.mxu0 0.0
      %610 = vmatpush1.msra.mxu0 0.0
      %611 = vmatprep.subr.mxu0 0.0
      %612 = vmatpush1.msra.mxu0 0.0
      %613 = vmatprep.subr.mxu0 0.0
      %614 = vmatpush1.msra.mxu0 0.0
      %615 = vmatprep.subr.mxu0 0.0
      %616 = vmatpush1.msra.mxu0 %v598
      %617 = vmatprep.subr.mxu0 0.0
      %618 = vmatpush1.msra.mxu0 %v597
      %619 = vmatprep.subr.mxu0 0.0
      %620 = vmatpush1.msra.mxu0 %v596
      %621 = vmatprep.subr.mxu0 0.0
      %622 = vmatpush1.msra.mxu0 %v595
      %623 = vmatprep.subr.mxu0 0.0
      %624 = vmatpush1.msra.mxu0 %v594
      %625 = vmatprep.subr.mxu0 0.0
      %626 = vmatpush1.msra.mxu0 %v593
      %627 = vmatprep.subr.mxu0 0.0
      %628 = vmatpush1.msra.mxu0 %v592
      %629 = vmatprep.subr.mxu0 0.0
      %630 = vmatpush1.msra.mxu0 %v591
      %631 = vmatprep.subr.mxu0 0.0
      %632 = vmatpush2.msra.mxu0 0.0
      %633 = vmatprep.subr.mxu0 0.0
      %634 = vmatpush2.msra.mxu0 0.0
      %635 = vmatprep.subr.mxu0 0.0
      %636 = vmatpush2.msra.mxu0 0.0
      %637 = vmatprep.subr.mxu0 0.0
      %638 = vmatpush2.msra.mxu0 0.0
      %639 = vmatprep.subr.mxu0 0.0
      %640 = vmatpush2.msra.mxu0 0.0
      %641 = vmatprep.subr.mxu0 0.0
      %642 = vmatpush2.msra.mxu0 0.0
      %643 = vmatprep.subr.mxu0 0.0
      %644 = vmatpush2.msra.mxu0 0.0
      %645 = vmatprep.subr.mxu0 0.0
      %646 = vmatpush2.msra.mxu0 0.0
      %647 = vmatprep.subr.mxu0 0.0
      %648 = vmatpush2.msra.mxu0 0.0
      %649 = vmatprep.subr.mxu0 0.0
      %650 = vmatpush2.msra.mxu0 0.0
      %651 = vmatprep.subr.mxu0 0.0
      %652 = vmatpush2.msra.mxu0 0.0
      %653 = vmatprep.subr.mxu0 0.0
      %654 = vmatpush2.msra.mxu0 0.0
      %655 = vmatprep.subr.mxu0 0.0
      %656 = vmatpush2.msra.mxu0 0.0
      %657 = vmatprep.subr.mxu0 0.0
      %658 = vmatpush2.msra.mxu0 0.0
      %659 = vmatprep.subr.mxu0 0.0
      %660 = vmatpush2.msra.mxu0 0.0
      %661 = vmatprep.subr.mxu0 0.0
      %662 = vmatpush2.msra.mxu0 0.0
      %663 = vmatprep.mubr.f32.mxu0 0.0
      %664 = vmatmul.mubr.f32.gmra.mxu0 %v426
      %v665 = vpop.f32.mrf.mxu0
      %v666 = vadd.f32 0.0, %v665
      %v667 = vpop.f32.mrf.mxu0
      %668 = vmatprep.mubr.f32.mxu0 0.0
      %669 = vmatmul.mubr.f32.gmra.mxu0 %v429
      %v670 = vpop.f32.mrf.mxu0
      %v671 = vadd.f32 0.0, %v670
      %v672 = vpop.f32.mrf.mxu0
      %673 = vdwg.mxu0
      %v674 = vlaneseq
      %v675 = vshrl.u32 %v674, 7
      %v676 = vadd.s32 %v675, 8
      %vm677 = vcmp.eq.s32.totalorder %v675, 0
      %vm678 = vcmp.eq.s32.totalorder %v676, 0
      %v679 = vrot.slane %v498, 7
      %v680 = vrot.slane %v503, 7
      %vm681 = vcmp.lt.s32.totalorder %v675, 1
      %v682 = vsel %vm681, %v679, %v680
      %v683 = vsel %vm681, %v680, %v679
      %v684 = vsel %vm677, 0.0, %v683
      %v685 = vsel %vm678, 0.0, %v682
      %vm686 = vcmp.eq.s32.totalorder %v675, 15
      %vm687 = vcmp.eq.s32.totalorder %v676, 15
      %v688 = vrot.slane %v666, 1
      %v689 = vrot.slane %v671, 1
      %vm690 = vcmp.lt.s32.totalorder %v675, 7
      %v691 = vsel %vm690, %v688, %v689
      %v692 = vsel %vm690, %v689, %v688
      %v693 = vsel %vm686, 0.0, %v691
      %v694 = vsel %vm687, 0.0, %v692
      %v695 = vadd.f32 %v684, %v582
      %v696 = vadd.f32 %v685, %v587
      %v697 = vadd.f32 %v695, %v693
      %v698 = vadd.f32 %v696, %v694
      %v699 = vld [vmem:[%s2] sm:$0x1]
      %v701 = vlaneseq
      %v702 = vshrl.u32 %v701, 7
      %v703 = vsub.s32 0, %v702
      %v704 = vrot.slane %v699, %v703
      %v706 = vadd.f32 %v697, %v704
      %v707 = vadd.f32 %v698, %v704
      %v708 = vmax.f32 %v706, 0.0
      %v709 = vmax.f32 %v707, 0.0
      %v710 = vld [vmem:[%s3] sm:$0xff]
      %v711 = vld [vmem:[%s3 + $0x8] sm:$0xff]
      %v712 = vld [vmem:[%s3 + $0x10] sm:$0xff]
      %v713 = vld [vmem:[%s3 + $0x18] sm:$0xff]
      %v714 = vld [vmem:[%s3 + $0x20] sm:$0xff]
      %v715 = vld [vmem:[%s3 + $0x28] sm:$0xff]
      %v716 = vld [vmem:[%s3 + $0x30] sm:$0xff]
      %v717 = vld [vmem:[%s3 + $0x38] sm:$0xff]
      %v718 = vld [vmem:[%s3 + $0x40] sm:$0xff]
      %v719 = vld [vmem:[%s3 + $0x48] sm:$0xff]
      %v720 = vld [vmem:[%s3 + $0x50] sm:$0xff]
      %v721 = vld [vmem:[%s3 + $0x58] sm:$0xff]
      %v722 = vld [vmem:[%s3 + $0x60] sm:$0xff]
      %v723 = vld [vmem:[%s3 + $0x68] sm:$0xff]
      %v724 = vld [vmem:[%s3 + $0x70] sm:$0xff]
      %v725 = vld [vmem:[%s3 + $0x78] sm:$0xff]
      %v726 = vld [vmem:[%s3 + $0x80] sm:$0xff]
      %v727 = vld [vmem:[%s3 + $0x88] sm:$0xff]
      %v728 = vld [vmem:[%s3 + $0x90] sm:$0xff]
      %v729 = vld [vmem:[%s3 + $0x98] sm:$0xff]
      %v730 = vld [vmem:[%s3 + $0xa0] sm:$0xff]
      %v731 = vld [vmem:[%s3 + $0xa8] sm:$0xff]
      %v732 = vld [vmem:[%s3 + $0xb0] sm:$0xff]
      %v733 = vld [vmem:[%s3 + $0xb8] sm:$0xff]
      %v734 = vld [vmem:[%s3 + $0xc0] sm:$0xff]
      %v735 = vld [vmem:[%s3 + $0xc8] sm:$0xff]
      %v736 = vld [vmem:[%s3 + $0xd0] sm:$0xff]
      %v737 = vld [vmem:[%s3 + $0xd8] sm:$0xff]
      %v738 = vld [vmem:[%s3 + $0xe0] sm:$0xff]
      %v739 = vld [vmem:[%s3 + $0xe8] sm:$0xff]
      %v740 = vld [vmem:[%s3 + $0xf0] sm:$0xff]
      %v741 = vld [vmem:[%s3 + $0xf8] sm:$0xff]
      %v742 = vld [vmem:[%s4] sm:$0x3]
      %v744 = vlaneseq
      %v745 = vshrl.u32 %v744, 7
      %v746 = vsub.s32 0, %v745
      %v747 = vrot.slane %v742, %v746
      %v748 = vlaneseq
      %v749 = vshrl.u32 %v748, 7
      %v750 = vsub.s32 1, %v749
      %v751 = vrot.slane %v742, %v750
      %754 = vmatprep.subr.mxu0 %v741
      %755 = vmatpush1.msra.mxu0 %v740
      %756 = vmatprep.subr.mxu0 %v739
      %757 = vmatpush1.msra.mxu0 %v738
      %758 = vmatprep.subr.mxu0 %v737
      %759 = vmatpush1.msra.mxu0 %v736
      %760 = vmatprep.subr.mxu0 %v735
      %761 = vmatpush1.msra.mxu0 %v734
      %762 = vmatprep.subr.mxu0 %v733
      %763 = vmatpush1.msra.mxu0 %v732
      %764 = vmatprep.subr.mxu0 %v731
      %765 = vmatpush1.msra.mxu0 %v730
      %766 = vmatprep.subr.mxu0 %v729
      %767 = vmatpush1.msra.mxu0 %v728
      %768 = vmatprep.subr.mxu0 %v727
      %769 = vmatpush1.msra.mxu0 %v726
      %770 = vmatprep.subr.mxu0 %v725
      %771 = vmatpush1.msra.mxu0 %v724
      %772 = vmatprep.subr.mxu0 %v723
      %773 = vmatpush1.msra.mxu0 %v722
      %774 = vmatprep.subr.mxu0 %v721
      %775 = vmatpush1.msra.mxu0 %v720
      %776 = vmatprep.subr.mxu0 %v719
      %777 = vmatpush1.msra.mxu0 %v718
      %778 = vmatprep.subr.mxu0 %v717
      %779 = vmatpush1.msra.mxu0 %v716
      %780 = vmatprep.subr.mxu0 %v715
      %781 = vmatpush1.msra.mxu0 %v714
      %782 = vmatprep.subr.mxu0 %v713
      %783 = vmatpush1.msra.mxu0 %v712
      %784 = vmatprep.subr.mxu0 %v711
      %785 = vmatpush1.msra.mxu0 %v710
      %786 = vmatprep.subr.mxu0 0.0
      %787 = vmatpush2.msra.mxu0 0.0
      %788 = vmatprep.subr.mxu0 0.0
      %789 = vmatpush2.msra.mxu0 0.0
      %790 = vmatprep.subr.mxu0 0.0
      %791 = vmatpush2.msra.mxu0 0.0
      %792 = vmatprep.subr.mxu0 0.0
      %793 = vmatpush2.msra.mxu0 0.0
      %794 = vmatprep.subr.mxu0 0.0
      %795 = vmatpush2.msra.mxu0 0.0
      %796 = vmatprep.subr.mxu0 0.0
      %797 = vmatpush2.msra.mxu0 0.0
      %798 = vmatprep.subr.mxu0 0.0
      %799 = vmatpush2.msra.mxu0 0.0
      %800 = vmatprep.subr.mxu0 0.0
      %801 = vmatpush2.msra.mxu0 0.0
      %802 = vmatprep.subr.mxu0 0.0
      %803 = vmatpush2.msra.mxu0 0.0
      %804 = vmatprep.subr.mxu0 0.0
      %805 = vmatpush2.msra.mxu0 0.0
      %806 = vmatprep.subr.mxu0 0.0
      %807 = vmatpush2.msra.mxu0 0.0
      %808 = vmatprep.subr.mxu0 0.0
      %809 = vmatpush2.msra.mxu0 0.0
      %810 = vmatprep.subr.mxu0 0.0
      %811 = vmatpush2.msra.mxu0 0.0
      %812 = vmatprep.subr.mxu0 0.0
      %813 = vmatpush2.msra.mxu0 0.0
      %814 = vmatprep.subr.mxu0 0.0
      %815 = vmatpush2.msra.mxu0 0.0
      %816 = vmatprep.subr.mxu0 0.0
      %817 = vmatpush2.msra.mxu0 0.0
      %818 = vmatprep.mubr.f32.mxu0 0.0
      %819 = vmatmul.mubr.f32.gmra.mxu0 %v708
      %v820 = vpop.f32.mrf.mxu0
      %v821 = vadd.f32 %v747, %v820
      %v822 = vpop.f32.mrf.mxu0
      %v823 = vadd.f32 %v751, %v822
      %824 = vmatprep.mubr.f32.mxu0 0.0
      %825 = vmatmul.mubr.f32.gmra.mxu0 %v709
      %v826 = vpop.f32.mrf.mxu0
      %v827 = vadd.f32 %v747, %v826
      %v828 = vpop.f32.mrf.mxu0
      %v829 = vadd.f32 %v751, %v828
      %830 = vdwg.mxu0
      %v831 = vmax.f32 %v821, 0.0
      %v832 = vmax.f32 %v823, 0.0
      %v833 = vmax.f32 %v827, 0.0
      %v834 = vmax.f32 %v829, 0.0
      %v835 = vld [vmem:[%s5] sm:$0xff]
      %v836 = vld [vmem:[%s5 + $0x8] sm:$0xff]
      %v837 = vld [vmem:[%s5 + $0x10] sm:$0xff]
      %v838 = vld [vmem:[%s5 + $0x18] sm:$0xff]
      %v839 = vld [vmem:[%s5 + $0x20] sm:$0xff]
      %v840 = vld [vmem:[%s5 + $0x28] sm:$0xff]
      %v841 = vld [vmem:[%s5 + $0x30] sm:$0xff]
      %v842 = vld [vmem:[%s5 + $0x38] sm:$0xff]
      %v843 = vld [vmem:[%s5 + $0x40] sm:$0xff]
      %v844 = vld [vmem:[%s5 + $0x48] sm:$0xff]
      %v845 = vld [vmem:[%s5 + $0x50] sm:$0xff]
      %v846 = vld [vmem:[%s5 + $0x58] sm:$0xff]
      %v847 = vld [vmem:[%s5 + $0x60] sm:$0xff]
      %v848 = vld [vmem:[%s5 + $0x68] sm:$0xff]
      %v849 = vld [vmem:[%s5 + $0x70] sm:$0xff]
      %v850 = vld [vmem:[%s5 + $0x78] sm:$0xff]
      %v851 = vld [vmem:[%s5 + $0x80] sm:$0xff]
      %v852 = vld [vmem:[%s5 + $0x88] sm:$0xff]
      %v853 = vld [vmem:[%s5 + $0x90] sm:$0xff]
      %v854 = vld [vmem:[%s5 + $0x98] sm:$0xff]
      %v855 = vld [vmem:[%s5 + $0xa0] sm:$0xff]
      %v856 = vld [vmem:[%s5 + $0xa8] sm:$0xff]
      %v857 = vld [vmem:[%s5 + $0xb0] sm:$0xff]
      %v858 = vld [vmem:[%s5 + $0xb8] sm:$0xff]
      %v859 = vld [vmem:[%s5 + $0xc0] sm:$0xff]
      %v860 = vld [vmem:[%s5 + $0xc8] sm:$0xff]
      %v861 = vld [vmem:[%s5 + $0xd0] sm:$0xff]
      %v862 = vld [vmem:[%s5 + $0xd8] sm:$0xff]
      %v863 = vld [vmem:[%s5 + $0xe0] sm:$0xff]
      %v864 = vld [vmem:[%s5 + $0xe8] sm:$0xff]
      %v865 = vld [vmem:[%s5 + $0xf0] sm:$0xff]
      %v866 = vld [vmem:[%s5 + $0xf8] sm:$0xff]
      %v867 = vld [vmem:[%s5 + $0x100] sm:$0xff]
      %v868 = vld [vmem:[%s5 + $0x108] sm:$0xff]
      %v869 = vld [vmem:[%s5 + $0x110] sm:$0xff]
      %v870 = vld [vmem:[%s5 + $0x118] sm:$0xff]
      %v871 = vld [vmem:[%s5 + $0x120] sm:$0xff]
      %v872 = vld [vmem:[%s5 + $0x128] sm:$0xff]
      %v873 = vld [vmem:[%s5 + $0x130] sm:$0xff]
      %v874 = vld [vmem:[%s5 + $0x138] sm:$0xff]
      %v875 = vld [vmem:[%s5 + $0x140] sm:$0xff]
      %v876 = vld [vmem:[%s5 + $0x148] sm:$0xff]
      %v877 = vld [vmem:[%s5 + $0x150] sm:$0xff]
      %v878 = vld [vmem:[%s5 + $0x158] sm:$0xff]
      %v879 = vld [vmem:[%s5 + $0x160] sm:$0xff]
      %v880 = vld [vmem:[%s5 + $0x168] sm:$0xff]
      %v881 = vld [vmem:[%s5 + $0x170] sm:$0xff]
      %v882 = vld [vmem:[%s5 + $0x178] sm:$0xff]
      %v883 = vld [vmem:[%s5 + $0x180] sm:$0xff]
      %v884 = vld [vmem:[%s5 + $0x188] sm:$0xff]
      %v885 = vld [vmem:[%s5 + $0x190] sm:$0xff]
      %v886 = vld [vmem:[%s5 + $0x198] sm:$0xff]
      %v887 = vld [vmem:[%s5 + $0x1a0] sm:$0xff]
      %v888 = vld [vmem:[%s5 + $0x1a8] sm:$0xff]
      %v889 = vld [vmem:[%s5 + $0x1b0] sm:$0xff]
      %v890 = vld [vmem:[%s5 + $0x1b8] sm:$0xff]
      %v891 = vld [vmem:[%s5 + $0x1c0] sm:$0xff]
      %v892 = vld [vmem:[%s5 + $0x1c8] sm:$0xff]
      %v893 = vld [vmem:[%s5 + $0x1d0] sm:$0xff]
      %v894 = vld [vmem:[%s5 + $0x1d8] sm:$0xff]
      %v895 = vld [vmem:[%s5 + $0x1e0] sm:$0xff]
      %v896 = vld [vmem:[%s5 + $0x1e8] sm:$0xff]
      %v897 = vld [vmem:[%s5 + $0x1f0] sm:$0xff]
      %v898 = vld [vmem:[%s5 + $0x1f8] sm:$0xff]
      %899 = vmatprep.subr.mxu0 %v866
      %900 = vmatpush1.msra.mxu0 %v865
      %901 = vmatprep.subr.mxu0 %v864
      %902 = vmatpush1.msra.mxu0 %v863
      %903 = vmatprep.subr.mxu0 %v862
      %904 = vmatpush1.msra.mxu0 %v861
      %905 = vmatprep.subr.mxu0 %v860
      %906 = vmatpush1.msra.mxu0 %v859
      %907 = vmatprep.subr.mxu0 %v858
      %908 = vmatpush1.msra.mxu0 %v857
      %909 = vmatprep.subr.mxu0 %v856
      %910 = vmatpush1.msra.mxu0 %v855
      %911 = vmatprep.subr.mxu0 %v854
      %912 = vmatpush1.msra.mxu0 %v853
      %913 = vmatprep.subr.mxu0 %v852
      %914 = vmatpush1.msra.mxu0 %v851
      %915 = vmatprep.subr.mxu0 %v850
      %916 = vmatpush1.msra.mxu0 %v849
      %917 = vmatprep.subr.mxu0 %v848
      %918 = vmatpush1.msra.mxu0 %v847
      %919 = vmatprep.subr.mxu0 %v846
      %920 = vmatpush1.msra.mxu0 %v845
      %921 = vmatprep.subr.mxu0 %v844
      %922 = vmatpush1.msra.mxu0 %v843
      %923 = vmatprep.subr.mxu0 %v842
      %924 = vmatpush1.msra.mxu0 %v841
      %925 = vmatprep.subr.mxu0 %v840
      %926 = vmatpush1.msra.mxu0 %v839
      %927 = vmatprep.subr.mxu0 %v838
      %928 = vmatpush1.msra.mxu0 %v837
      %929 = vmatprep.subr.mxu0 %v836
      %930 = vmatpush1.msra.mxu0 %v835
      %931 = vmatprep.subr.mxu0 %v898
      %932 = vmatpush2.msra.mxu0 %v897
      %933 = vmatprep.subr.mxu0 %v896
      %934 = vmatpush2.msra.mxu0 %v895
      %935 = vmatprep.subr.mxu0 %v894
      %936 = vmatpush2.msra.mxu0 %v893
      %937 = vmatprep.subr.mxu0 %v892
      %938 = vmatpush2.msra.mxu0 %v891
      %939 = vmatprep.subr.mxu0 %v890
      %940 = vmatpush2.msra.mxu0 %v889
      %941 = vmatprep.subr.mxu0 %v888
      %942 = vmatpush2.msra.mxu0 %v887
      %943 = vmatprep.subr.mxu0 %v886
      %944 = vmatpush2.msra.mxu0 %v885
      %945 = vmatprep.subr.mxu0 %v884
      %946 = vmatpush2.msra.mxu0 %v883
      %947 = vmatprep.subr.mxu0 %v882
      %948 = vmatpush2.msra.mxu0 %v881
      %949 = vmatprep.subr.mxu0 %v880
      %950 = vmatpush2.msra.mxu0 %v879
      %951 = vmatprep.subr.mxu0 %v878
      %952 = vmatpush2.msra.mxu0 %v877
      %953 = vmatprep.subr.mxu0 %v876
      %954 = vmatpush2.msra.mxu0 %v875
      %955 = vmatprep.subr.mxu0 %v874
      %956 = vmatpush2.msra.mxu0 %v873
      %957 = vmatprep.subr.mxu0 %v872
      %958 = vmatpush2.msra.mxu0 %v871
      %959 = vmatprep.subr.mxu0 %v870
      %960 = vmatpush2.msra.mxu0 %v869
      %961 = vmatprep.subr.mxu0 %v868
      %962 = vmatpush2.msra.mxu0 %v867
      %963 = vmatprep.mubr.f32.mxu0 %v832
      %964 = vmatmul.mubr.f32.gmra.mxu0 %v831
      %v965 = vpop.f32.mrf.mxu0
      %v966 = vadd.f32 0.0, %v965
      %v967 = vpop.f32.mrf.mxu0
      %v968 = vadd.f32 0.0, %v967
      %969 = vmatprep.mubr.f32.mxu0 %v834
      %970 = vmatmul.mubr.f32.gmra.mxu0 %v833
      %v971 = vpop.f32.mrf.mxu0
      %v972 = vadd.f32 0.0, %v971
      %v973 = vpop.f32.mrf.mxu0
      %v974 = vadd.f32 0.0, %v973
      %975 = vdwg.mxu0
      %s976 = scalar_lea.vmem %s5, 512
      %v977 = vld [vmem:[%s976] sm:$0xff]
      %v978 = vld [vmem:[%s976 + $0x8] sm:$0xff]
      %v979 = vld [vmem:[%s976 + $0x10] sm:$0xff]
      %v980 = vld [vmem:[%s976 + $0x18] sm:$0xff]
      %v981 = vld [vmem:[%s976 + $0x20] sm:$0xff]
      %v982 = vld [vmem:[%s976 + $0x28] sm:$0xff]
      %v983 = vld [vmem:[%s976 + $0x30] sm:$0xff]
      %v984 = vld [vmem:[%s976 + $0x38] sm:$0xff]
      %v985 = vld [vmem:[%s976 + $0x40] sm:$0xff]
      %v986 = vld [vmem:[%s976 + $0x48] sm:$0xff]
      %v987 = vld [vmem:[%s976 + $0x50] sm:$0xff]
      %v988 = vld [vmem:[%s976 + $0x58] sm:$0xff]
      %v989 = vld [vmem:[%s976 + $0x60] sm:$0xff]
      %v990 = vld [vmem:[%s976 + $0x68] sm:$0xff]
      %v991 = vld [vmem:[%s976 + $0x70] sm:$0xff]
      %v992 = vld [vmem:[%s976 + $0x78] sm:$0xff]
      %v993 = vld [vmem:[%s976 + $0x80] sm:$0xff]
      %v994 = vld [vmem:[%s976 + $0x88] sm:$0xff]
      %v995 = vld [vmem:[%s976 + $0x90] sm:$0xff]
      %v996 = vld [vmem:[%s976 + $0x98] sm:$0xff]
      %v997 = vld [vmem:[%s976 + $0xa0] sm:$0xff]
      %v998 = vld [vmem:[%s976 + $0xa8] sm:$0xff]
      %v999 = vld [vmem:[%s976 + $0xb0] sm:$0xff]
      %v1000 = vld [vmem:[%s976 + $0xb8] sm:$0xff]
      %v1001 = vld [vmem:[%s976 + $0xc0] sm:$0xff]
      %v1002 = vld [vmem:[%s976 + $0xc8] sm:$0xff]
      %v1003 = vld [vmem:[%s976 + $0xd0] sm:$0xff]
      %v1004 = vld [vmem:[%s976 + $0xd8] sm:$0xff]
      %v1005 = vld [vmem:[%s976 + $0xe0] sm:$0xff]
      %v1006 = vld [vmem:[%s976 + $0xe8] sm:$0xff]
      %v1007 = vld [vmem:[%s976 + $0xf0] sm:$0xff]
      %v1008 = vld [vmem:[%s976 + $0xf8] sm:$0xff]
      %v1009 = vld [vmem:[%s976 + $0x100] sm:$0xff]
      %v1010 = vld [vmem:[%s976 + $0x108] sm:$0xff]
      %v1011 = vld [vmem:[%s976 + $0x110] sm:$0xff]
      %v1012 = vld [vmem:[%s976 + $0x118] sm:$0xff]
      %v1013 = vld [vmem:[%s976 + $0x120] sm:$0xff]
      %v1014 = vld [vmem:[%s976 + $0x128] sm:$0xff]
      %v1015 = vld [vmem:[%s976 + $0x130] sm:$0xff]
      %v1016 = vld [vmem:[%s976 + $0x138] sm:$0xff]
      %v1017 = vld [vmem:[%s976 + $0x140] sm:$0xff]
      %v1018 = vld [vmem:[%s976 + $0x148] sm:$0xff]
      %v1019 = vld [vmem:[%s976 + $0x150] sm:$0xff]
      %v1020 = vld [vmem:[%s976 + $0x158] sm:$0xff]
      %v1021 = vld [vmem:[%s976 + $0x160] sm:$0xff]
      %v1022 = vld [vmem:[%s976 + $0x168] sm:$0xff]
      %v1023 = vld [vmem:[%s976 + $0x170] sm:$0xff]
      %v1024 = vld [vmem:[%s976 + $0x178] sm:$0xff]
      %v1025 = vld [vmem:[%s976 + $0x180] sm:$0xff]
      %v1026 = vld [vmem:[%s976 + $0x188] sm:$0xff]
      %v1027 = vld [vmem:[%s976 + $0x190] sm:$0xff]
      %v1028 = vld [vmem:[%s976 + $0x198] sm:$0xff]
      %v1029 = vld [vmem:[%s976 + $0x1a0] sm:$0xff]
      %v1030 = vld [vmem:[%s976 + $0x1a8] sm:$0xff]
      %v1031 = vld [vmem:[%s976 + $0x1b0] sm:$0xff]
      %v1032 = vld [vmem:[%s976 + $0x1b8] sm:$0xff]
      %v1033 = vld [vmem:[%s976 + $0x1c0] sm:$0xff]
      %v1034 = vld [vmem:[%s976 + $0x1c8] sm:$0xff]
      %v1035 = vld [vmem:[%s976 + $0x1d0] sm:$0xff]
      %v1036 = vld [vmem:[%s976 + $0x1d8] sm:$0xff]
      %v1037 = vld [vmem:[%s976 + $0x1e0] sm:$0xff]
      %v1038 = vld [vmem:[%s976 + $0x1e8] sm:$0xff]
      %v1039 = vld [vmem:[%s976 + $0x1f0] sm:$0xff]
      %v1040 = vld [vmem:[%s976 + $0x1f8] sm:$0xff]
      %1041 = vmatprep.subr.mxu0 %v1008
      %1042 = vmatpush1.msra.mxu0 %v1007
      %1043 = vmatprep.subr.mxu0 %v1006
      %1044 = vmatpush1.msra.mxu0 %v1005
      %1045 = vmatprep.subr.mxu0 %v1004
      %1046 = vmatpush1.msra.mxu0 %v1003
      %1047 = vmatprep.subr.mxu0 %v1002
      %1048 = vmatpush1.msra.mxu0 %v1001
      %1049 = vmatprep.subr.mxu0 %v1000
      %1050 = vmatpush1.msra.mxu0 %v999
      %1051 = vmatprep.subr.mxu0 %v998
      %1052 = vmatpush1.msra.mxu0 %v997
      %1053 = vmatprep.subr.mxu0 %v996
      %1054 = vmatpush1.msra.mxu0 %v995
      %1055 = vmatprep.subr.mxu0 %v994
      %1056 = vmatpush1.msra.mxu0 %v993
      %1057 = vmatprep.subr.mxu0 %v992
      %1058 = vmatpush1.msra.mxu0 %v991
      %1059 = vmatprep.subr.mxu0 %v990
      %1060 = vmatpush1.msra.mxu0 %v989
      %1061 = vmatprep.subr.mxu0 %v988
      %1062 = vmatpush1.msra.mxu0 %v987
      %1063 = vmatprep.subr.mxu0 %v986
      %1064 = vmatpush1.msra.mxu0 %v985
      %1065 = vmatprep.subr.mxu0 %v984
      %1066 = vmatpush1.msra.mxu0 %v983
      %1067 = vmatprep.subr.mxu0 %v982
      %1068 = vmatpush1.msra.mxu0 %v981
      %1069 = vmatprep.subr.mxu0 %v980
      %1070 = vmatpush1.msra.mxu0 %v979
      %1071 = vmatprep.subr.mxu0 %v978
      %1072 = vmatpush1.msra.mxu0 %v977
      %1073 = vmatprep.subr.mxu0 %v1040
      %1074 = vmatpush2.msra.mxu0 %v1039
      %1075 = vmatprep.subr.mxu0 %v1038
      %1076 = vmatpush2.msra.mxu0 %v1037
      %1077 = vmatprep.subr.mxu0 %v1036
      %1078 = vmatpush2.msra.mxu0 %v1035
      %1079 = vmatprep.subr.mxu0 %v1034
      %1080 = vmatpush2.msra.mxu0 %v1033
      %1081 = vmatprep.subr.mxu0 %v1032
      %1082 = vmatpush2.msra.mxu0 %v1031
      %1083 = vmatprep.subr.mxu0 %v1030
      %1084 = vmatpush2.msra.mxu0 %v1029
      %1085 = vmatprep.subr.mxu0 %v1028
      %1086 = vmatpush2.msra.mxu0 %v1027
      %1087 = vmatprep.subr.mxu0 %v1026
      %1088 = vmatpush2.msra.mxu0 %v1025
      %1089 = vmatprep.subr.mxu0 %v1024
      %1090 = vmatpush2.msra.mxu0 %v1023
      %1091 = vmatprep.subr.mxu0 %v1022
      %1092 = vmatpush2.msra.mxu0 %v1021
      %1093 = vmatprep.subr.mxu0 %v1020
      %1094 = vmatpush2.msra.mxu0 %v1019
      %1095 = vmatprep.subr.mxu0 %v1018
      %1096 = vmatpush2.msra.mxu0 %v1017
      %1097 = vmatprep.subr.mxu0 %v1016
      %1098 = vmatpush2.msra.mxu0 %v1015
      %1099 = vmatprep.subr.mxu0 %v1014
      %1100 = vmatpush2.msra.mxu0 %v1013
      %1101 = vmatprep.subr.mxu0 %v1012
      %1102 = vmatpush2.msra.mxu0 %v1011
      %1103 = vmatprep.subr.mxu0 %v1010
      %1104 = vmatpush2.msra.mxu0 %v1009
      %1105 = vmatprep.mubr.f32.mxu0 %v832
      %1106 = vmatmul.mubr.f32.gmra.mxu0 %v831
      %v1107 = vpop.f32.mrf.mxu0
      %v1108 = vadd.f32 0.0, %v1107
      %v1109 = vpop.f32.mrf.mxu0
      %v1110 = vadd.f32 0.0, %v1109
      %1111 = vmatprep.mubr.f32.mxu0 %v834
      %1112 = vmatmul.mubr.f32.gmra.mxu0 %v833
      %v1113 = vpop.f32.mrf.mxu0
      %v1114 = vadd.f32 0.0, %v1113
      %v1115 = vpop.f32.mrf.mxu0
      %v1116 = vadd.f32 0.0, %v1115
      %1117 = vdwg.mxu0
      %s1118 = scalar_lea.vmem %s5, 1024
      %v1119 = vld [vmem:[%s1118] sm:$0xff]
      %v1120 = vld [vmem:[%s1118 + $0x8] sm:$0xff]
      %v1121 = vld [vmem:[%s1118 + $0x10] sm:$0xff]
      %v1122 = vld [vmem:[%s1118 + $0x18] sm:$0xff]
      %v1123 = vld [vmem:[%s1118 + $0x20] sm:$0xff]
      %v1124 = vld [vmem:[%s1118 + $0x28] sm:$0xff]
      %v1125 = vld [vmem:[%s1118 + $0x30] sm:$0xff]
      %v1126 = vld [vmem:[%s1118 + $0x38] sm:$0xff]
      %v1127 = vld [vmem:[%s1118 + $0x40] sm:$0xff]
      %v1128 = vld [vmem:[%s1118 + $0x48] sm:$0xff]
      %v1129 = vld [vmem:[%s1118 + $0x50] sm:$0xff]
      %v1130 = vld [vmem:[%s1118 + $0x58] sm:$0xff]
      %v1131 = vld [vmem:[%s1118 + $0x60] sm:$0xff]
      %v1132 = vld [vmem:[%s1118 + $0x68] sm:$0xff]
      %v1133 = vld [vmem:[%s1118 + $0x70] sm:$0xff]
      %v1134 = vld [vmem:[%s1118 + $0x78] sm:$0xff]
      %v1135 = vld [vmem:[%s1118 + $0x80] sm:$0xff]
      %v1136 = vld [vmem:[%s1118 + $0x88] sm:$0xff]
      %v1137 = vld [vmem:[%s1118 + $0x90] sm:$0xff]
      %v1138 = vld [vmem:[%s1118 + $0x98] sm:$0xff]
      %v1139 = vld [vmem:[%s1118 + $0xa0] sm:$0xff]
      %v1140 = vld [vmem:[%s1118 + $0xa8] sm:$0xff]
      %v1141 = vld [vmem:[%s1118 + $0xb0] sm:$0xff]
      %v1142 = vld [vmem:[%s1118 + $0xb8] sm:$0xff]
      %v1143 = vld [vmem:[%s1118 + $0xc0] sm:$0xff]
      %v1144 = vld [vmem:[%s1118 + $0xc8] sm:$0xff]
      %v1145 = vld [vmem:[%s1118 + $0xd0] sm:$0xff]
      %v1146 = vld [vmem:[%s1118 + $0xd8] sm:$0xff]
      %v1147 = vld [vmem:[%s1118 + $0xe0] sm:$0xff]
      %v1148 = vld [vmem:[%s1118 + $0xe8] sm:$0xff]
      %v1149 = vld [vmem:[%s1118 + $0xf0] sm:$0xff]
      %v1150 = vld [vmem:[%s1118 + $0xf8] sm:$0xff]
      %v1151 = vld [vmem:[%s1118 + $0x100] sm:$0xff]
      %v1152 = vld [vmem:[%s1118 + $0x108] sm:$0xff]
      %v1153 = vld [vmem:[%s1118 + $0x110] sm:$0xff]
      %v1154 = vld [vmem:[%s1118 + $0x118] sm:$0xff]
      %v1155 = vld [vmem:[%s1118 + $0x120] sm:$0xff]
      %v1156 = vld [vmem:[%s1118 + $0x128] sm:$0xff]
      %v1157 = vld [vmem:[%s1118 + $0x130] sm:$0xff]
      %v1158 = vld [vmem:[%s1118 + $0x138] sm:$0xff]
      %v1159 = vld [vmem:[%s1118 + $0x140] sm:$0xff]
      %v1160 = vld [vmem:[%s1118 + $0x148] sm:$0xff]
      %v1161 = vld [vmem:[%s1118 + $0x150] sm:$0xff]
      %v1162 = vld [vmem:[%s1118 + $0x158] sm:$0xff]
      %v1163 = vld [vmem:[%s1118 + $0x160] sm:$0xff]
      %v1164 = vld [vmem:[%s1118 + $0x168] sm:$0xff]
      %v1165 = vld [vmem:[%s1118 + $0x170] sm:$0xff]
      %v1166 = vld [vmem:[%s1118 + $0x178] sm:$0xff]
      %v1167 = vld [vmem:[%s1118 + $0x180] sm:$0xff]
      %v1168 = vld [vmem:[%s1118 + $0x188] sm:$0xff]
      %v1169 = vld [vmem:[%s1118 + $0x190] sm:$0xff]
      %v1170 = vld [vmem:[%s1118 + $0x198] sm:$0xff]
      %v1171 = vld [vmem:[%s1118 + $0x1a0] sm:$0xff]
      %v1172 = vld [vmem:[%s1118 + $0x1a8] sm:$0xff]
      %v1173 = vld [vmem:[%s1118 + $0x1b0] sm:$0xff]
      %v1174 = vld [vmem:[%s1118 + $0x1b8] sm:$0xff]
      %v1175 = vld [vmem:[%s1118 + $0x1c0] sm:$0xff]
      %v1176 = vld [vmem:[%s1118 + $0x1c8] sm:$0xff]
      %v1177 = vld [vmem:[%s1118 + $0x1d0] sm:$0xff]
      %v1178 = vld [vmem:[%s1118 + $0x1d8] sm:$0xff]
      %v1179 = vld [vmem:[%s1118 + $0x1e0] sm:$0xff]
      %v1180 = vld [vmem:[%s1118 + $0x1e8] sm:$0xff]
      %v1181 = vld [vmem:[%s1118 + $0x1f0] sm:$0xff]
      %v1182 = vld [vmem:[%s1118 + $0x1f8] sm:$0xff]
      %1183 = vmatprep.subr.mxu0 %v1150
      %1184 = vmatpush1.msra.mxu0 %v1149
      %1185 = vmatprep.subr.mxu0 %v1148
      %1186 = vmatpush1.msra.mxu0 %v1147
      %1187 = vmatprep.subr.mxu0 %v1146
      %1188 = vmatpush1.msra.mxu0 %v1145
      %1189 = vmatprep.subr.mxu0 %v1144
      %1190 = vmatpush1.msra.mxu0 %v1143
      %1191 = vmatprep.subr.mxu0 %v1142
      %1192 = vmatpush1.msra.mxu0 %v1141
      %1193 = vmatprep.subr.mxu0 %v1140
      %1194 = vmatpush1.msra.mxu0 %v1139
      %1195 = vmatprep.subr.mxu0 %v1138
      %1196 = vmatpush1.msra.mxu0 %v1137
      %1197 = vmatprep.subr.mxu0 %v1136
      %1198 = vmatpush1.msra.mxu0 %v1135
      %1199 = vmatprep.subr.mxu0 %v1134
      %1200 = vmatpush1.msra.mxu0 %v1133
      %1201 = vmatprep.subr.mxu0 %v1132
      %1202 = vmatpush1.msra.mxu0 %v1131
      %1203 = vmatprep.subr.mxu0 %v1130
      %1204 = vmatpush1.msra.mxu0 %v1129
      %1205 = vmatprep.subr.mxu0 %v1128
      %1206 = vmatpush1.msra.mxu0 %v1127
      %1207 = vmatprep.subr.mxu0 %v1126
      %1208 = vmatpush1.msra.mxu0 %v1125
      %1209 = vmatprep.subr.mxu0 %v1124
      %1210 = vmatpush1.msra.mxu0 %v1123
      %1211 = vmatprep.subr.mxu0 %v1122
      %1212 = vmatpush1.msra.mxu0 %v1121
      %1213 = vmatprep.subr.mxu0 %v1120
      %1214 = vmatpush1.msra.mxu0 %v1119
      %1215 = vmatprep.subr.mxu0 %v1182
      %1216 = vmatpush2.msra.mxu0 %v1181
      %1217 = vmatprep.subr.mxu0 %v1180
      %1218 = vmatpush2.msra.mxu0 %v1179
      %1219 = vmatprep.subr.mxu0 %v1178
      %1220 = vmatpush2.msra.mxu0 %v1177
      %1221 = vmatprep.subr.mxu0 %v1176
      %1222 = vmatpush2.msra.mxu0 %v1175
      %1223 = vmatprep.subr.mxu0 %v1174
      %1224 = vmatpush2.msra.mxu0 %v1173
      %1225 = vmatprep.subr.mxu0 %v1172
      %1226 = vmatpush2.msra.mxu0 %v1171
      %1227 = vmatprep.subr.mxu0 %v1170
      %1228 = vmatpush2.msra.mxu0 %v1169
      %1229 = vmatprep.subr.mxu0 %v1168
      %1230 = vmatpush2.msra.mxu0 %v1167
      %1231 = vmatprep.subr.mxu0 %v1166
      %1232 = vmatpush2.msra.mxu0 %v1165
      %1233 = vmatprep.subr.mxu0 %v1164
      %1234 = vmatpush2.msra.mxu0 %v1163
      %1235 = vmatprep.subr.mxu0 %v1162
      %1236 = vmatpush2.msra.mxu0 %v1161
      %1237 = vmatprep.subr.mxu0 %v1160
      %1238 = vmatpush2.msra.mxu0 %v1159
      %1239 = vmatprep.subr.mxu0 %v1158
      %1240 = vmatpush2.msra.mxu0 %v1157
      %1241 = vmatprep.subr.mxu0 %v1156
      %1242 = vmatpush2.msra.mxu0 %v1155
      %1243 = vmatprep.subr.mxu0 %v1154
      %1244 = vmatpush2.msra.mxu0 %v1153
      %1245 = vmatprep.subr.mxu0 %v1152
      %1246 = vmatpush2.msra.mxu0 %v1151
      %1247 = vmatprep.mubr.f32.mxu0 %v832
      %1248 = vmatmul.mubr.f32.gmra.mxu0 %v831
      %v1249 = vpop.f32.mrf.mxu0
      %v1250 = vadd.f32 0.0, %v1249
      %v1251 = vpop.f32.mrf.mxu0
      %v1252 = vadd.f32 0.0, %v1251
      %1253 = vmatprep.mubr.f32.mxu0 %v834
      %1254 = vmatmul.mubr.f32.gmra.mxu0 %v833
      %v1255 = vpop.f32.mrf.mxu0
      %v1256 = vadd.f32 0.0, %v1255
      %v1257 = vpop.f32.mrf.mxu0
      %v1258 = vadd.f32 0.0, %v1257
      %1259 = vdwg.mxu0
      %v1260 = vrot.slane %v966, 7
      %v1261 = vrot.slane %v968, 7
      %v1262 = vrot.slane %v972, 7
      %v1263 = vrot.slane %v974, 7
      %v1264 = vsel %vm681, %v1260, %v1262
      %v1265 = vsel %vm681, %v1261, %v1263
      %v1266 = vsel %vm681, %v1262, %v1260
      %v1267 = vsel %vm681, %v1263, %v1261
      %v1268 = vsel %vm677, 0.0, %v1266
      %v1269 = vsel %vm677, 0.0, %v1267
      %v1270 = vsel %vm678, 0.0, %v1264
      %v1271 = vsel %vm678, 0.0, %v1265
      %v1272 = vrot.slane %v1250, 1
      %v1273 = vrot.slane %v1252, 1
      %v1274 = vrot.slane %v1256, 1
      %v1275 = vrot.slane %v1258, 1
      %v1276 = vsel %vm690, %v1272, %v1274
      %v1277 = vsel %vm690, %v1273, %v1275
      %v1278 = vsel %vm690, %v1274, %v1272
      %v1279 = vsel %vm690, %v1275, %v1273
      %v1280 = vsel %vm686, 0.0, %v1276
      %v1281 = vsel %vm686, 0.0, %v1277
      %v1282 = vsel %vm687, 0.0, %v1278
      %v1283 = vsel %vm687, 0.0, %v1279
      %v1284 = vadd.f32 %v1268, %v1108
      %v1285 = vadd.f32 %v1269, %v1110
      %v1286 = vadd.f32 %v1270, %v1114
      %v1287 = vadd.f32 %v1271, %v1116
      %v1288 = vadd.f32 %v1284, %v1280
      %v1289 = vadd.f32 %v1285, %v1281
      %v1290 = vadd.f32 %v1286, %v1282
      %v1291 = vadd.f32 %v1287, %v1283
      %v1292 = vld [vmem:[%s6] sm:$0x3]
      %v1294 = vlaneseq
      %v1295 = vshrl.u32 %v1294, 7
      %v1296 = vsub.s32 0, %v1295
      %v1297 = vrot.slane %v1292, %v1296
      %v1298 = vlaneseq
      %v1299 = vshrl.u32 %v1298, 7
      %v1300 = vsub.s32 1, %v1299
      %v1301 = vrot.slane %v1292, %v1300
      %v1304 = vadd.f32 %v1288, %v1297
      %v1305 = vadd.f32 %v1289, %v1301
      %v1306 = vadd.f32 %v1290, %v1297
      %v1307 = vadd.f32 %v1291, %v1301
      %v1308 = vmax.f32 %v1304, 0.0
      %v1309 = vmax.f32 %v1305, 0.0
      %v1310 = vmax.f32 %v1306, 0.0
      %v1311 = vmax.f32 %v1307, 0.0
      %v1312 = vld [vmem:[%s7] sm:$0xff]
      %v1313 = vld [vmem:[%s7 + $0x8] sm:$0xff]
      %v1314 = vld [vmem:[%s7 + $0x10] sm:$0xff]
      %v1315 = vld [vmem:[%s7 + $0x18] sm:$0xff]
      %v1316 = vld [vmem:[%s7 + $0x20] sm:$0xff]
      %v1317 = vld [vmem:[%s7 + $0x28] sm:$0xff]
      %v1318 = vld [vmem:[%s7 + $0x30] sm:$0xff]
      %v1319 = vld [vmem:[%s7 + $0x38] sm:$0xff]
      %v1320 = vld [vmem:[%s7 + $0x40] sm:$0xff]
      %v1321 = vld [vmem:[%s7 + $0x48] sm:$0xff]
      %v1322 = vld [vmem:[%s7 + $0x50] sm:$0xff]
      %v1323 = vld [vmem:[%s7 + $0x58] sm:$0xff]
      %v1324 = vld [vmem:[%s7 + $0x60] sm:$0xff]
      %v1325 = vld [vmem:[%s7 + $0x68] sm:$0xff]
      %v1326 = vld [vmem:[%s7 + $0x70] sm:$0xff]
      %v1327 = vld [vmem:[%s7 + $0x78] sm:$0xff]
      %v1328 = vld [vmem:[%s7 + $0x80] sm:$0xff]
      %v1329 = vld [vmem:[%s7 + $0x88] sm:$0xff]
      %v1330 = vld [vmem:[%s7 + $0x90] sm:$0xff]
      %v1331 = vld [vmem:[%s7 + $0x98] sm:$0xff]
      %v1332 = vld [vmem:[%s7 + $0xa0] sm:$0xff]
      %v1333 = vld [vmem:[%s7 + $0xa8] sm:$0xff]
      %v1334 = vld [vmem:[%s7 + $0xb0] sm:$0xff]
      %v1335 = vld [vmem:[%s7 + $0xb8] sm:$0xff]
      %v1336 = vld [vmem:[%s7 + $0xc0] sm:$0xff]
      %v1337 = vld [vmem:[%s7 + $0xc8] sm:$0xff]
      %v1338 = vld [vmem:[%s7 + $0xd0] sm:$0xff]
      %v1339 = vld [vmem:[%s7 + $0xd8] sm:$0xff]
      %v1340 = vld [vmem:[%s7 + $0xe0] sm:$0xff]
      %v1341 = vld [vmem:[%s7 + $0xe8] sm:$0xff]
      %v1342 = vld [vmem:[%s7 + $0xf0] sm:$0xff]
      %v1343 = vld [vmem:[%s7 + $0xf8] sm:$0xff]
      %v1344 = vld [vmem:[%s7 + $0x100] sm:$0xff]
      %v1345 = vld [vmem:[%s7 + $0x108] sm:$0xff]
      %v1346 = vld [vmem:[%s7 + $0x110] sm:$0xff]
      %v1347 = vld [vmem:[%s7 + $0x118] sm:$0xff]
      %v1348 = vld [vmem:[%s7 + $0x120] sm:$0xff]
      %v1349 = vld [vmem:[%s7 + $0x128] sm:$0xff]
      %v1350 = vld [vmem:[%s7 + $0x130] sm:$0xff]
      %v1351 = vld [vmem:[%s7 + $0x138] sm:$0xff]
      %v1352 = vld [vmem:[%s7 + $0x140] sm:$0xff]
      %v1353 = vld [vmem:[%s7 + $0x148] sm:$0xff]
      %v1354 = vld [vmem:[%s7 + $0x150] sm:$0xff]
      %v1355 = vld [vmem:[%s7 + $0x158] sm:$0xff]
      %v1356 = vld [vmem:[%s7 + $0x160] sm:$0xff]
      %v1357 = vld [vmem:[%s7 + $0x168] sm:$0xff]
      %v1358 = vld [vmem:[%s7 + $0x170] sm:$0xff]
      %v1359 = vld [vmem:[%s7 + $0x178] sm:$0xff]
      %v1360 = vld [vmem:[%s7 + $0x180] sm:$0xff]
      %v1361 = vld [vmem:[%s7 + $0x188] sm:$0xff]
      %v1362 = vld [vmem:[%s7 + $0x190] sm:$0xff]
      %v1363 = vld [vmem:[%s7 + $0x198] sm:$0xff]
      %v1364 = vld [vmem:[%s7 + $0x1a0] sm:$0xff]
      %v1365 = vld [vmem:[%s7 + $0x1a8] sm:$0xff]
      %v1366 = vld [vmem:[%s7 + $0x1b0] sm:$0xff]
      %v1367 = vld [vmem:[%s7 + $0x1b8] sm:$0xff]
      %v1368 = vld [vmem:[%s7 + $0x1c0] sm:$0xff]
      %v1369 = vld [vmem:[%s7 + $0x1c8] sm:$0xff]
      %v1370 = vld [vmem:[%s7 + $0x1d0] sm:$0xff]
      %v1371 = vld [vmem:[%s7 + $0x1d8] sm:$0xff]
      %v1372 = vld [vmem:[%s7 + $0x1e0] sm:$0xff]
      %v1373 = vld [vmem:[%s7 + $0x1e8] sm:$0xff]
      %v1374 = vld [vmem:[%s7 + $0x1f0] sm:$0xff]
      %v1375 = vld [vmem:[%s7 + $0x1f8] sm:$0xff]
      %v1376 = vld [vmem:[%s7 + $0x200] sm:$0xff]
      %v1377 = vld [vmem:[%s7 + $0x208] sm:$0xff]
      %v1378 = vld [vmem:[%s7 + $0x210] sm:$0xff]
      %v1379 = vld [vmem:[%s7 + $0x218] sm:$0xff]
      %v1380 = vld [vmem:[%s7 + $0x220] sm:$0xff]
      %v1381 = vld [vmem:[%s7 + $0x228] sm:$0xff]
      %v1382 = vld [vmem:[%s7 + $0x230] sm:$0xff]
      %v1383 = vld [vmem:[%s7 + $0x238] sm:$0xff]
      %v1384 = vld [vmem:[%s7 + $0x240] sm:$0xff]
      %v1385 = vld [vmem:[%s7 + $0x248] sm:$0xff]
      %v1386 = vld [vmem:[%s7 + $0x250] sm:$0xff]
      %v1387 = vld [vmem:[%s7 + $0x258] sm:$0xff]
      %v1388 = vld [vmem:[%s7 + $0x260] sm:$0xff]
      %v1389 = vld [vmem:[%s7 + $0x268] sm:$0xff]
      %v1390 = vld [vmem:[%s7 + $0x270] sm:$0xff]
      %v1391 = vld [vmem:[%s7 + $0x278] sm:$0xff]
      %v1392 = vld [vmem:[%s7 + $0x280] sm:$0xff]
      %v1393 = vld [vmem:[%s7 + $0x288] sm:$0xff]
      %v1394 = vld [vmem:[%s7 + $0x290] sm:$0xff]
      %v1395 = vld [vmem:[%s7 + $0x298] sm:$0xff]
      %v1396 = vld [vmem:[%s7 + $0x2a0] sm:$0xff]
      %v1397 = vld [vmem:[%s7 + $0x2a8] sm:$0xff]
      %v1398 = vld [vmem:[%s7 + $0x2b0] sm:$0xff]
      %v1399 = vld [vmem:[%s7 + $0x2b8] sm:$0xff]
      %v1400 = vld [vmem:[%s7 + $0x2c0] sm:$0xff]
      %v1401 = vld [vmem:[%s7 + $0x2c8] sm:$0xff]
      %v1402 = vld [vmem:[%s7 + $0x2d0] sm:$0xff]
      %v1403 = vld [vmem:[%s7 + $0x2d8] sm:$0xff]
      %v1404 = vld [vmem:[%s7 + $0x2e0] sm:$0xff]
      %v1405 = vld [vmem:[%s7 + $0x2e8] sm:$0xff]
      %v1406 = vld [vmem:[%s7 + $0x2f0] sm:$0xff]
      %v1407 = vld [vmem:[%s7 + $0x2f8] sm:$0xff]
      %v1408 = vld [vmem:[%s7 + $0x300] sm:$0xff]
      %v1409 = vld [vmem:[%s7 + $0x308] sm:$0xff]
      %v1410 = vld [vmem:[%s7 + $0x310] sm:$0xff]
      %v1411 = vld [vmem:[%s7 + $0x318] sm:$0xff]
      %v1412 = vld [vmem:[%s7 + $0x320] sm:$0xff]
      %v1413 = vld [vmem:[%s7 + $0x328] sm:$0xff]
      %v1414 = vld [vmem:[%s7 + $0x330] sm:$0xff]
      %v1415 = vld [vmem:[%s7 + $0x338] sm:$0xff]
      %v1416 = vld [vmem:[%s7 + $0x340] sm:$0xff]
      %v1417 = vld [vmem:[%s7 + $0x348] sm:$0xff]
      %v1418 = vld [vmem:[%s7 + $0x350] sm:$0xff]
      %v1419 = vld [vmem:[%s7 + $0x358] sm:$0xff]
      %v1420 = vld [vmem:[%s7 + $0x360] sm:$0xff]
      %v1421 = vld [vmem:[%s7 + $0x368] sm:$0xff]
      %v1422 = vld [vmem:[%s7 + $0x370] sm:$0xff]
      %v1423 = vld [vmem:[%s7 + $0x378] sm:$0xff]
      %v1424 = vld [vmem:[%s7 + $0x380] sm:$0xff]
      %v1425 = vld [vmem:[%s7 + $0x388] sm:$0xff]
      %v1426 = vld [vmem:[%s7 + $0x390] sm:$0xff]
      %v1427 = vld [vmem:[%s7 + $0x398] sm:$0xff]
      %v1428 = vld [vmem:[%s7 + $0x3a0] sm:$0xff]
      %v1429 = vld [vmem:[%s7 + $0x3a8] sm:$0xff]
      %v1430 = vld [vmem:[%s7 + $0x3b0] sm:$0xff]
      %v1431 = vld [vmem:[%s7 + $0x3b8] sm:$0xff]
      %v1432 = vld [vmem:[%s7 + $0x3c0] sm:$0xff]
      %v1433 = vld [vmem:[%s7 + $0x3c8] sm:$0xff]
      %v1434 = vld [vmem:[%s7 + $0x3d0] sm:$0xff]
      %v1435 = vld [vmem:[%s7 + $0x3d8] sm:$0xff]
      %v1436 = vld [vmem:[%s7 + $0x3e0] sm:$0xff]
      %v1437 = vld [vmem:[%s7 + $0x3e8] sm:$0xff]
      %v1438 = vld [vmem:[%s7 + $0x3f0] sm:$0xff]
      %v1439 = vld [vmem:[%s7 + $0x3f8] sm:$0xff]
      %v1440 = vld [vmem:[%s8] sm:$0xf]
      %v1442 = vlaneseq
      %v1443 = vshrl.u32 %v1442, 7
      %v1444 = vsub.s32 0, %v1443
      %v1445 = vrot.slane %v1440, %v1444
      %v1446 = vlaneseq
      %v1447 = vshrl.u32 %v1446, 7
      %v1448 = vsub.s32 1, %v1447
      %v1449 = vrot.slane %v1440, %v1448
      %v1450 = vlaneseq
      %v1451 = vshrl.u32 %v1450, 7
      %v1452 = vsub.s32 2, %v1451
      %v1453 = vrot.slane %v1440, %v1452
      %v1454 = vlaneseq
      %v1455 = vshrl.u32 %v1454, 7
      %v1456 = vsub.s32 3, %v1455
      %v1457 = vrot.slane %v1440, %v1456
      %1462 = vmatprep.subr.mxu0 %v1373
      %1463 = vmatpush1.msra.mxu0 %v1372
      %1464 = vmatprep.subr.mxu0 %v1369
      %1465 = vmatpush1.msra.mxu0 %v1368
      %1466 = vmatprep.subr.mxu0 %v1365
      %1467 = vmatpush1.msra.mxu0 %v1364
      %1468 = vmatprep.subr.mxu0 %v1361
      %1469 = vmatpush1.msra.mxu0 %v1360
      %1470 = vmatprep.subr.mxu0 %v1357
      %1471 = vmatpush1.msra.mxu0 %v1356
      %1472 = vmatprep.subr.mxu0 %v1353
      %1473 = vmatpush1.msra.mxu0 %v1352
      %1474 = vmatprep.subr.mxu0 %v1349
      %1475 = vmatpush1.msra.mxu0 %v1348
      %1476 = vmatprep.subr.mxu0 %v1345
      %1477 = vmatpush1.msra.mxu0 %v1344
      %1478 = vmatprep.subr.mxu0 %v1341
      %1479 = vmatpush1.msra.mxu0 %v1340
      %1480 = vmatprep.subr.mxu0 %v1337
      %1481 = vmatpush1.msra.mxu0 %v1336
      %1482 = vmatprep.subr.mxu0 %v1333
      %1483 = vmatpush1.msra.mxu0 %v1332
      %1484 = vmatprep.subr.mxu0 %v1329
      %1485 = vmatpush1.msra.mxu0 %v1328
      %1486 = vmatprep.subr.mxu0 %v1325
      %1487 = vmatpush1.msra.mxu0 %v1324
      %1488 = vmatprep.subr.mxu0 %v1321
      %1489 = vmatpush1.msra.mxu0 %v1320
      %1490 = vmatprep.subr.mxu0 %v1317
      %1491 = vmatpush1.msra.mxu0 %v1316
      %1492 = vmatprep.subr.mxu0 %v1313
      %1493 = vmatpush1.msra.mxu0 %v1312
      %1494 = vmatprep.subr.mxu0 %v1437
      %1495 = vmatpush2.msra.mxu0 %v1436
      %1496 = vmatprep.subr.mxu0 %v1433
      %1497 = vmatpush2.msra.mxu0 %v1432
      %1498 = vmatprep.subr.mxu0 %v1429
      %1499 = vmatpush2.msra.mxu0 %v1428
      %1500 = vmatprep.subr.mxu0 %v1425
      %1501 = vmatpush2.msra.mxu0 %v1424
      %1502 = vmatprep.subr.mxu0 %v1421
      %1503 = vmatpush2.msra.mxu0 %v1420
      %1504 = vmatprep.subr.mxu0 %v1417
      %1505 = vmatpush2.msra.mxu0 %v1416
      %1506 = vmatprep.subr.mxu0 %v1413
      %1507 = vmatpush2.msra.mxu0 %v1412
      %1508 = vmatprep.subr.mxu0 %v1409
      %1509 = vmatpush2.msra.mxu0 %v1408
      %1510 = vmatprep.subr.mxu0 %v1405
      %1511 = vmatpush2.msra.mxu0 %v1404
      %1512 = vmatprep.subr.mxu0 %v1401
      %1513 = vmatpush2.msra.mxu0 %v1400
      %1514 = vmatprep.subr.mxu0 %v1397
      %1515 = vmatpush2.msra.mxu0 %v1396
      %1516 = vmatprep.subr.mxu0 %v1393
      %1517 = vmatpush2.msra.mxu0 %v1392
      %1518 = vmatprep.subr.mxu0 %v1389
      %1519 = vmatpush2.msra.mxu0 %v1388
      %1520 = vmatprep.subr.mxu0 %v1385
      %1521 = vmatpush2.msra.mxu0 %v1384
      %1522 = vmatprep.subr.mxu0 %v1381
      %1523 = vmatpush2.msra.mxu0 %v1380
      %1524 = vmatprep.subr.mxu0 %v1377
      %1525 = vmatpush2.msra.mxu0 %v1376
      %1526 = vmatprep.mubr.f32.mxu0 %v1309
      %1527 = vmatmul.mubr.f32.gmra.mxu0 %v1308
      %v1528 = vpop.f32.mrf.mxu0
      %v1529 = vadd.f32 %v1445, %v1528
      %v1530 = vpop.f32.mrf.mxu0
      %v1531 = vadd.f32 %v1449, %v1530
      %1532 = vmatprep.mubr.f32.mxu0 %v1311
      %1533 = vmatmul.mubr.f32.gmra.mxu0 %v1310
      %v1534 = vpop.f32.mrf.mxu0
      %v1535 = vadd.f32 %v1445, %v1534
      %v1536 = vpop.f32.mrf.mxu0
      %v1537 = vadd.f32 %v1449, %v1536
      %1538 = vdwg.mxu0
      %1539 = vmatprep.subr.mxu0 %v1375
      %1540 = vmatpush1.msra.mxu0 %v1374
      %1541 = vmatprep.subr.mxu0 %v1371
      %1542 = vmatpush1.msra.mxu0 %v1370
      %1543 = vmatprep.subr.mxu0 %v1367
      %1544 = vmatpush1.msra.mxu0 %v1366
      %1545 = vmatprep.subr.mxu0 %v1363
      %1546 = vmatpush1.msra.mxu0 %v1362
      %1547 = vmatprep.subr.mxu0 %v1359
      %1548 = vmatpush1.msra.mxu0 %v1358
      %1549 = vmatprep.subr.mxu0 %v1355
      %1550 = vmatpush1.msra.mxu0 %v1354
      %1551 = vmatprep.subr.mxu0 %v1351
      %1552 = vmatpush1.msra.mxu0 %v1350
      %1553 = vmatprep.subr.mxu0 %v1347
      %1554 = vmatpush1.msra.mxu0 %v1346
      %1555 = vmatprep.subr.mxu0 %v1343
      %1556 = vmatpush1.msra.mxu0 %v1342
      %1557 = vmatprep.subr.mxu0 %v1339
      %1558 = vmatpush1.msra.mxu0 %v1338
      %1559 = vmatprep.subr.mxu0 %v1335
      %1560 = vmatpush1.msra.mxu0 %v1334
      %1561 = vmatprep.subr.mxu0 %v1331
      %1562 = vmatpush1.msra.mxu0 %v1330
      %1563 = vmatprep.subr.mxu0 %v1327
      %1564 = vmatpush1.msra.mxu0 %v1326
      %1565 = vmatprep.subr.mxu0 %v1323
      %1566 = vmatpush1.msra.mxu0 %v1322
      %1567 = vmatprep.subr.mxu0 %v1319
      %1568 = vmatpush1.msra.mxu0 %v1318
      %1569 = vmatprep.subr.mxu0 %v1315
      %1570 = vmatpush1.msra.mxu0 %v1314
      %1571 = vmatprep.subr.mxu0 %v1439
      %1572 = vmatpush2.msra.mxu0 %v1438
      %1573 = vmatprep.subr.mxu0 %v1435
      %1574 = vmatpush2.msra.mxu0 %v1434
      %1575 = vmatprep.subr.mxu0 %v1431
      %1576 = vmatpush2.msra.mxu0 %v1430
      %1577 = vmatprep.subr.mxu0 %v1427
      %1578 = vmatpush2.msra.mxu0 %v1426
      %1579 = vmatprep.subr.mxu0 %v1423
      %1580 = vmatpush2.msra.mxu0 %v1422
      %1581 = vmatprep.subr.mxu0 %v1419
      %1582 = vmatpush2.msra.mxu0 %v1418
      %1583 = vmatprep.subr.mxu0 %v1415
      %1584 = vmatpush2.msra.mxu0 %v1414
      %1585 = vmatprep.subr.mxu0 %v1411
      %1586 = vmatpush2.msra.mxu0 %v1410
      %1587 = vmatprep.subr.mxu0 %v1407
      %1588 = vmatpush2.msra.mxu0 %v1406
      %1589 = vmatprep.subr.mxu0 %v1403
      %1590 = vmatpush2.msra.mxu0 %v1402
      %1591 = vmatprep.subr.mxu0 %v1399
      %1592 = vmatpush2.msra.mxu0 %v1398
      %1593 = vmatprep.subr.mxu0 %v1395
      %1594 = vmatpush2.msra.mxu0 %v1394
      %1595 = vmatprep.subr.mxu0 %v1391
      %1596 = vmatpush2.msra.mxu0 %v1390
      %1597 = vmatprep.subr.mxu0 %v1387
      %1598 = vmatpush2.msra.mxu0 %v1386
      %1599 = vmatprep.subr.mxu0 %v1383
      %1600 = vmatpush2.msra.mxu0 %v1382
      %1601 = vmatprep.subr.mxu0 %v1379
      %1602 = vmatpush2.msra.mxu0 %v1378
      %1603 = vmatprep.mubr.f32.mxu0 %v1309
      %1604 = vmatmul.mubr.f32.gmra.mxu0 %v1308
      %v1605 = vpop.f32.mrf.mxu0
      %v1606 = vadd.f32 %v1453, %v1605
      %v1607 = vpop.f32.mrf.mxu0
      %v1608 = vadd.f32 %v1457, %v1607
      %1609 = vmatprep.mubr.f32.mxu0 %v1311
      %1610 = vmatmul.mubr.f32.gmra.mxu0 %v1310
      %v1611 = vpop.f32.mrf.mxu0
      %v1612 = vadd.f32 %v1453, %v1611
      %v1613 = vpop.f32.mrf.mxu0
      %v1614 = vadd.f32 %v1457, %v1613
      %1615 = vdwg.mxu0
      %v1616 = vmax.f32 %v1529, 0.0
      %v1617 = vmax.f32 %v1531, 0.0
      %v1618 = vmax.f32 %v1606, 0.0
      %v1619 = vmax.f32 %v1608, 0.0
      %v1620 = vmax.f32 %v1535, 0.0
      %v1621 = vmax.f32 %v1537, 0.0
      %v1622 = vmax.f32 %v1612, 0.0
      %v1623 = vmax.f32 %v1614, 0.0
      %v1624 = vld [vmem:[%s9] sm:$0xff]
      %v1625 = vld [vmem:[%s9 + $0x8] sm:$0xff]
      %v1626 = vld [vmem:[%s9 + $0x10] sm:$0xff]
      %v1627 = vld [vmem:[%s9 + $0x18] sm:$0xff]
      %v1628 = vld [vmem:[%s9 + $0x20] sm:$0xff]
      %v1629 = vld [vmem:[%s9 + $0x28] sm:$0xff]
      %v1630 = vld [vmem:[%s9 + $0x30] sm:$0xff]
      %v1631 = vld [vmem:[%s9 + $0x38] sm:$0xff]
      %v1632 = vld [vmem:[%s9 + $0x40] sm:$0xff]
      %v1633 = vld [vmem:[%s9 + $0x48] sm:$0xff]
      %v1634 = vld [vmem:[%s9 + $0x50] sm:$0xff]
      %v1635 = vld [vmem:[%s9 + $0x58] sm:$0xff]
      %v1636 = vld [vmem:[%s9 + $0x60] sm:$0xff]
      %v1637 = vld [vmem:[%s9 + $0x68] sm:$0xff]
      %v1638 = vld [vmem:[%s9 + $0x70] sm:$0xff]
      %v1639 = vld [vmem:[%s9 + $0x78] sm:$0xff]
      %v1640 = vld [vmem:[%s9 + $0x80] sm:$0xff]
      %v1641 = vld [vmem:[%s9 + $0x88] sm:$0xff]
      %v1642 = vld [vmem:[%s9 + $0x90] sm:$0xff]
      %v1643 = vld [vmem:[%s9 + $0x98] sm:$0xff]
      %v1644 = vld [vmem:[%s9 + $0xa0] sm:$0xff]
      %v1645 = vld [vmem:[%s9 + $0xa8] sm:$0xff]
      %v1646 = vld [vmem:[%s9 + $0xb0] sm:$0xff]
      %v1647 = vld [vmem:[%s9 + $0xb8] sm:$0xff]
      %v1648 = vld [vmem:[%s9 + $0xc0] sm:$0xff]
      %v1649 = vld [vmem:[%s9 + $0xc8] sm:$0xff]
      %v1650 = vld [vmem:[%s9 + $0xd0] sm:$0xff]
      %v1651 = vld [vmem:[%s9 + $0xd8] sm:$0xff]
      %v1652 = vld [vmem:[%s9 + $0xe0] sm:$0xff]
      %v1653 = vld [vmem:[%s9 + $0xe8] sm:$0xff]
      %v1654 = vld [vmem:[%s9 + $0xf0] sm:$0xff]
      %v1655 = vld [vmem:[%s9 + $0xf8] sm:$0xff]
      %v1656 = vld [vmem:[%s10] sm:$0xff]
      %v1657 = vld [vmem:[%s10 + $0x8] sm:$0xff]
      %v1658 = vld [vmem:[%s10 + $0x10] sm:$0xff]
      %v1659 = vld [vmem:[%s10 + $0x18] sm:$0xff]
      %v1660 = vld [vmem:[%s10 + $0x20] sm:$0xff]
      %v1661 = vld [vmem:[%s10 + $0x28] sm:$0xff]
      %v1662 = vld [vmem:[%s10 + $0x30] sm:$0xff]
      %v1663 = vld [vmem:[%s10 + $0x38] sm:$0xff]
      %v1664 = vld [vmem:[%s10 + $0x40] sm:$0xff]
      %v1665 = vld [vmem:[%s10 + $0x48] sm:$0xff]
      %v1666 = vld [vmem:[%s10 + $0x50] sm:$0xff]
      %v1667 = vld [vmem:[%s10 + $0x58] sm:$0xff]
      %v1668 = vld [vmem:[%s10 + $0x60] sm:$0xff]
      %v1669 = vld [vmem:[%s10 + $0x68] sm:$0xff]
      %v1670 = vld [vmem:[%s10 + $0x70] sm:$0xff]
      %v1671 = vld [vmem:[%s10 + $0x78] sm:$0xff]
      %v1672 = vld [vmem:[%s10 + $0x80] sm:$0xff]
      %v1673 = vld [vmem:[%s10 + $0x88] sm:$0xff]
      %v1674 = vld [vmem:[%s10 + $0x90] sm:$0xff]
      %v1675 = vld [vmem:[%s10 + $0x98] sm:$0xff]
      %v1676 = vld [vmem:[%s10 + $0xa0] sm:$0xff]
      %v1677 = vld [vmem:[%s10 + $0xa8] sm:$0xff]
      %v1678 = vld [vmem:[%s10 + $0xb0] sm:$0xff]
      %v1679 = vld [vmem:[%s10 + $0xb8] sm:$0xff]
      %v1680 = vld [vmem:[%s10 + $0xc0] sm:$0xff]
      %v1681 = vld [vmem:[%s10 + $0xc8] sm:$0xff]
      %v1682 = vld [vmem:[%s10 + $0xd0] sm:$0xff]
      %v1683 = vld [vmem:[%s10 + $0xd8] sm:$0xff]
      %v1684 = vld [vmem:[%s10 + $0xe0] sm:$0xff]
      %v1685 = vld [vmem:[%s10 + $0xe8] sm:$0xff]
      %v1686 = vld [vmem:[%s10 + $0xf0] sm:$0xff]
      %v1687 = vld [vmem:[%s10 + $0xf8] sm:$0xff]
      %v1688 = vld [vmem:[%s10 + $0x100] sm:$0xff]
      %v1689 = vld [vmem:[%s10 + $0x108] sm:$0xff]
      %v1690 = vld [vmem:[%s10 + $0x110] sm:$0xff]
      %v1691 = vld [vmem:[%s10 + $0x118] sm:$0xff]
      %v1692 = vld [vmem:[%s10 + $0x120] sm:$0xff]
      %v1693 = vld [vmem:[%s10 + $0x128] sm:$0xff]
      %v1694 = vld [vmem:[%s10 + $0x130] sm:$0xff]
      %v1695 = vld [vmem:[%s10 + $0x138] sm:$0xff]
      %v1696 = vld [vmem:[%s10 + $0x140] sm:$0xff]
      %v1697 = vld [vmem:[%s10 + $0x148] sm:$0xff]
      %v1698 = vld [vmem:[%s10 + $0x150] sm:$0xff]
      %v1699 = vld [vmem:[%s10 + $0x158] sm:$0xff]
      %v1700 = vld [vmem:[%s10 + $0x160] sm:$0xff]
      %v1701 = vld [vmem:[%s10 + $0x168] sm:$0xff]
      %v1702 = vld [vmem:[%s10 + $0x170] sm:$0xff]
      %v1703 = vld [vmem:[%s10 + $0x178] sm:$0xff]
      %v1704 = vld [vmem:[%s10 + $0x180] sm:$0xff]
      %v1705 = vld [vmem:[%s10 + $0x188] sm:$0xff]
      %v1706 = vld [vmem:[%s10 + $0x190] sm:$0xff]
      %v1707 = vld [vmem:[%s10 + $0x198] sm:$0xff]
      %v1708 = vld [vmem:[%s10 + $0x1a0] sm:$0xff]
      %v1709 = vld [vmem:[%s10 + $0x1a8] sm:$0xff]
      %v1710 = vld [vmem:[%s10 + $0x1b0] sm:$0xff]
      %v1711 = vld [vmem:[%s10 + $0x1b8] sm:$0xff]
      %v1712 = vld [vmem:[%s10 + $0x1c0] sm:$0xff]
      %v1713 = vld [vmem:[%s10 + $0x1c8] sm:$0xff]
      %v1714 = vld [vmem:[%s10 + $0x1d0] sm:$0xff]
      %v1715 = vld [vmem:[%s10 + $0x1d8] sm:$0xff]
      %v1716 = vld [vmem:[%s10 + $0x1e0] sm:$0xff]
      %v1717 = vld [vmem:[%s10 + $0x1e8] sm:$0xff]
      %v1718 = vld [vmem:[%s10 + $0x1f0] sm:$0xff]
      %v1719 = vld [vmem:[%s10 + $0x1f8] sm:$0xff]
      %v1720 = vld [vmem:[%s10 + $0x200] sm:$0xff]
      %v1721 = vld [vmem:[%s10 + $0x208] sm:$0xff]
      %v1722 = vld [vmem:[%s10 + $0x210] sm:$0xff]
      %v1723 = vld [vmem:[%s10 + $0x218] sm:$0xff]
      %v1724 = vld [vmem:[%s10 + $0x220] sm:$0xff]
      %v1725 = vld [vmem:[%s10 + $0x228] sm:$0xff]
      %v1726 = vld [vmem:[%s10 + $0x230] sm:$0xff]
      %v1727 = vld [vmem:[%s10 + $0x238] sm:$0xff]
      %v1728 = vld [vmem:[%s10 + $0x240] sm:$0xff]
      %v1729 = vld [vmem:[%s10 + $0x248] sm:$0xff]
      %v1730 = vld [vmem:[%s10 + $0x250] sm:$0xff]
      %v1731 = vld [vmem:[%s10 + $0x258] sm:$0xff]
      %v1732 = vld [vmem:[%s10 + $0x260] sm:$0xff]
      %v1733 = vld [vmem:[%s10 + $0x268] sm:$0xff]
      %v1734 = vld [vmem:[%s10 + $0x270] sm:$0xff]
      %v1735 = vld [vmem:[%s10 + $0x278] sm:$0xff]
      %v1736 = vld [vmem:[%s10 + $0x280] sm:$0xff]
      %v1737 = vld [vmem:[%s10 + $0x288] sm:$0xff]
      %v1738 = vld [vmem:[%s10 + $0x290] sm:$0xff]
      %v1739 = vld [vmem:[%s10 + $0x298] sm:$0xff]
      %v1740 = vld [vmem:[%s10 + $0x2a0] sm:$0xff]
      %v1741 = vld [vmem:[%s10 + $0x2a8] sm:$0xff]
      %v1742 = vld [vmem:[%s10 + $0x2b0] sm:$0xff]
      %v1743 = vld [vmem:[%s10 + $0x2b8] sm:$0xff]
      %v1744 = vld [vmem:[%s10 + $0x2c0] sm:$0xff]
      %v1745 = vld [vmem:[%s10 + $0x2c8] sm:$0xff]
      %v1746 = vld [vmem:[%s10 + $0x2d0] sm:$0xff]
      %v1747 = vld [vmem:[%s10 + $0x2d8] sm:$0xff]
      %v1748 = vld [vmem:[%s10 + $0x2e0] sm:$0xff]
      %v1749 = vld [vmem:[%s10 + $0x2e8] sm:$0xff]
      %v1750 = vld [vmem:[%s10 + $0x2f0] sm:$0xff]
      %v1751 = vld [vmem:[%s10 + $0x2f8] sm:$0xff]
      %v1752 = vld [vmem:[%s10 + $0x300] sm:$0xff]
      %v1753 = vld [vmem:[%s10 + $0x308] sm:$0xff]
      %v1754 = vld [vmem:[%s10 + $0x310] sm:$0xff]
      %v1755 = vld [vmem:[%s10 + $0x318] sm:$0xff]
      %v1756 = vld [vmem:[%s10 + $0x320] sm:$0xff]
      %v1757 = vld [vmem:[%s10 + $0x328] sm:$0xff]
      %v1758 = vld [vmem:[%s10 + $0x330] sm:$0xff]
      %v1759 = vld [vmem:[%s10 + $0x338] sm:$0xff]
      %v1760 = vld [vmem:[%s10 + $0x340] sm:$0xff]
      %v1761 = vld [vmem:[%s10 + $0x348] sm:$0xff]
      %v1762 = vld [vmem:[%s10 + $0x350] sm:$0xff]
      %v1763 = vld [vmem:[%s10 + $0x358] sm:$0xff]
      %v1764 = vld [vmem:[%s10 + $0x360] sm:$0xff]
      %v1765 = vld [vmem:[%s10 + $0x368] sm:$0xff]
      %v1766 = vld [vmem:[%s10 + $0x370] sm:$0xff]
      %v1767 = vld [vmem:[%s10 + $0x378] sm:$0xff]
      %v1768 = vld [vmem:[%s10 + $0x380] sm:$0xff]
      %v1769 = vld [vmem:[%s10 + $0x388] sm:$0xff]
      %v1770 = vld [vmem:[%s10 + $0x390] sm:$0xff]
      %v1771 = vld [vmem:[%s10 + $0x398] sm:$0xff]
      %v1772 = vld [vmem:[%s10 + $0x3a0] sm:$0xff]
      %v1773 = vld [vmem:[%s10 + $0x3a8] sm:$0xff]
      %v1774 = vld [vmem:[%s10 + $0x3b0] sm:$0xff]
      %v1775 = vld [vmem:[%s10 + $0x3b8] sm:$0xff]
      %v1776 = vld [vmem:[%s10 + $0x3c0] sm:$0xff]
      %v1777 = vld [vmem:[%s10 + $0x3c8] sm:$0xff]
      %v1778 = vld [vmem:[%s10 + $0x3d0] sm:$0xff]
      %v1779 = vld [vmem:[%s10 + $0x3d8] sm:$0xff]
      %v1780 = vld [vmem:[%s10 + $0x3e0] sm:$0xff]
      %v1781 = vld [vmem:[%s10 + $0x3e8] sm:$0xff]
      %v1782 = vld [vmem:[%s10 + $0x3f0] sm:$0xff]
      %v1783 = vld [vmem:[%s10 + $0x3f8] sm:$0xff]
      %v1784 = vld [vmem:[%s10 + $0x400] sm:$0xff]
      %v1785 = vld [vmem:[%s10 + $0x408] sm:$0xff]
      %v1786 = vld [vmem:[%s10 + $0x410] sm:$0xff]
      %v1787 = vld [vmem:[%s10 + $0x418] sm:$0xff]
      %v1788 = vld [vmem:[%s10 + $0x420] sm:$0xff]
      %v1789 = vld [vmem:[%s10 + $0x428] sm:$0xff]
      %v1790 = vld [vmem:[%s10 + $0x430] sm:$0xff]
      %v1791 = vld [vmem:[%s10 + $0x438] sm:$0xff]
      %v1792 = vld [vmem:[%s10 + $0x440] sm:$0xff]
      %v1793 = vld [vmem:[%s10 + $0x448] sm:$0xff]
      %v1794 = vld [vmem:[%s10 + $0x450] sm:$0xff]
      %v1795 = vld [vmem:[%s10 + $0x458] sm:$0xff]
      %v1796 = vld [vmem:[%s10 + $0x460] sm:$0xff]
      %v1797 = vld [vmem:[%s10 + $0x468] sm:$0xff]
      %v1798 = vld [vmem:[%s10 + $0x470] sm:$0xff]
      %v1799 = vld [vmem:[%s10 + $0x478] sm:$0xff]
      %v1800 = vld [vmem:[%s10 + $0x480] sm:$0xff]
      %v1801 = vld [vmem:[%s10 + $0x488] sm:$0xff]
      %v1802 = vld [vmem:[%s10 + $0x490] sm:$0xff]
      %v1803 = vld [vmem:[%s10 + $0x498] sm:$0xff]
      %v1804 = vld [vmem:[%s10 + $0x4a0] sm:$0xff]
      %v1805 = vld [vmem:[%s10 + $0x4a8] sm:$0xff]
      %v1806 = vld [vmem:[%s10 + $0x4b0] sm:$0xff]
      %v1807 = vld [vmem:[%s10 + $0x4b8] sm:$0xff]
      %v1808 = vld [vmem:[%s10 + $0x4c0] sm:$0xff]
      %v1809 = vld [vmem:[%s10 + $0x4c8] sm:$0xff]
      %v1810 = vld [vmem:[%s10 + $0x4d0] sm:$0xff]
      %v1811 = vld [vmem:[%s10 + $0x4d8] sm:$0xff]
      %v1812 = vld [vmem:[%s10 + $0x4e0] sm:$0xff]
      %v1813 = vld [vmem:[%s10 + $0x4e8] sm:$0xff]
      %v1814 = vld [vmem:[%s10 + $0x4f0] sm:$0xff]
      %v1815 = vld [vmem:[%s10 + $0x4f8] sm:$0xff]
      %v1816 = vld [vmem:[%s10 + $0x500] sm:$0xff]
      %v1817 = vld [vmem:[%s10 + $0x508] sm:$0xff]
      %v1818 = vld [vmem:[%s10 + $0x510] sm:$0xff]
      %v1819 = vld [vmem:[%s10 + $0x518] sm:$0xff]
      %v1820 = vld [vmem:[%s10 + $0x520] sm:$0xff]
      %v1821 = vld [vmem:[%s10 + $0x528] sm:$0xff]
      %v1822 = vld [vmem:[%s10 + $0x530] sm:$0xff]
      %v1823 = vld [vmem:[%s10 + $0x538] sm:$0xff]
      %v1824 = vld [vmem:[%s10 + $0x540] sm:$0xff]
      %v1825 = vld [vmem:[%s10 + $0x548] sm:$0xff]
      %v1826 = vld [vmem:[%s10 + $0x550] sm:$0xff]
      %v1827 = vld [vmem:[%s10 + $0x558] sm:$0xff]
      %v1828 = vld [vmem:[%s10 + $0x560] sm:$0xff]
      %v1829 = vld [vmem:[%s10 + $0x568] sm:$0xff]
      %v1830 = vld [vmem:[%s10 + $0x570] sm:$0xff]
      %v1831 = vld [vmem:[%s10 + $0x578] sm:$0xff]
      %v1832 = vld [vmem:[%s10 + $0x580] sm:$0xff]
      %v1833 = vld [vmem:[%s10 + $0x588] sm:$0xff]
      %v1834 = vld [vmem:[%s10 + $0x590] sm:$0xff]
      %v1835 = vld [vmem:[%s10 + $0x598] sm:$0xff]
      %v1836 = vld [vmem:[%s10 + $0x5a0] sm:$0xff]
      %v1837 = vld [vmem:[%s10 + $0x5a8] sm:$0xff]
      %v1838 = vld [vmem:[%s10 + $0x5b0] sm:$0xff]
      %v1839 = vld [vmem:[%s10 + $0x5b8] sm:$0xff]
      %v1840 = vld [vmem:[%s10 + $0x5c0] sm:$0xff]
      %v1841 = vld [vmem:[%s10 + $0x5c8] sm:$0xff]
      %v1842 = vld [vmem:[%s10 + $0x5d0] sm:$0xff]
      %v1843 = vld [vmem:[%s10 + $0x5d8] sm:$0xff]
      %v1844 = vld [vmem:[%s10 + $0x5e0] sm:$0xff]
      %v1845 = vld [vmem:[%s10 + $0x5e8] sm:$0xff]
      %v1846 = vld [vmem:[%s10 + $0x5f0] sm:$0xff]
      %v1847 = vld [vmem:[%s10 + $0x5f8] sm:$0xff]
      %v1848 = vld [vmem:[%s10 + $0x600] sm:$0xff]
      %v1849 = vld [vmem:[%s10 + $0x608] sm:$0xff]
      %v1850 = vld [vmem:[%s10 + $0x610] sm:$0xff]
      %v1851 = vld [vmem:[%s10 + $0x618] sm:$0xff]
      %v1852 = vld [vmem:[%s10 + $0x620] sm:$0xff]
      %v1853 = vld [vmem:[%s10 + $0x628] sm:$0xff]
      %v1854 = vld [vmem:[%s10 + $0x630] sm:$0xff]
      %v1855 = vld [vmem:[%s10 + $0x638] sm:$0xff]
      %v1856 = vld [vmem:[%s10 + $0x640] sm:$0xff]
      %v1857 = vld [vmem:[%s10 + $0x648] sm:$0xff]
      %v1858 = vld [vmem:[%s10 + $0x650] sm:$0xff]
      %v1859 = vld [vmem:[%s10 + $0x658] sm:$0xff]
      %v1860 = vld [vmem:[%s10 + $0x660] sm:$0xff]
      %v1861 = vld [vmem:[%s10 + $0x668] sm:$0xff]
      %v1862 = vld [vmem:[%s10 + $0x670] sm:$0xff]
      %v1863 = vld [vmem:[%s10 + $0x678] sm:$0xff]
      %v1864 = vld [vmem:[%s10 + $0x680] sm:$0xff]
      %v1865 = vld [vmem:[%s10 + $0x688] sm:$0xff]
      %v1866 = vld [vmem:[%s10 + $0x690] sm:$0xff]
      %v1867 = vld [vmem:[%s10 + $0x698] sm:$0xff]
      %v1868 = vld [vmem:[%s10 + $0x6a0] sm:$0xff]
      %v1869 = vld [vmem:[%s10 + $0x6a8] sm:$0xff]
      %v1870 = vld [vmem:[%s10 + $0x6b0] sm:$0xff]
      %v1871 = vld [vmem:[%s10 + $0x6b8] sm:$0xff]
      %v1872 = vld [vmem:[%s10 + $0x6c0] sm:$0xff]
      %v1873 = vld [vmem:[%s10 + $0x6c8] sm:$0xff]
      %v1874 = vld [vmem:[%s10 + $0x6d0] sm:$0xff]
      %v1875 = vld [vmem:[%s10 + $0x6d8] sm:$0xff]
      %v1876 = vld [vmem:[%s10 + $0x6e0] sm:$0xff]
      %v1877 = vld [vmem:[%s10 + $0x6e8] sm:$0xff]
      %v1878 = vld [vmem:[%s10 + $0x6f0] sm:$0xff]
      %v1879 = vld [vmem:[%s10 + $0x6f8] sm:$0xff]
      %v1881 = vsel %vm424, %v1619, 0
      %v1884 = vsel %vm424, %v1623, 0
      %1886 = vmatprep.subr.mxu0 %v1717
      %1887 = vmatpush1.msra.mxu0 %v1716
      %1888 = vmatprep.subr.mxu0 %v1713
      %1889 = vmatpush1.msra.mxu0 %v1712
      %1890 = vmatprep.subr.mxu0 %v1709
      %1891 = vmatpush1.msra.mxu0 %v1708
      %1892 = vmatprep.subr.mxu0 %v1705
      %1893 = vmatpush1.msra.mxu0 %v1704
      %1894 = vmatprep.subr.mxu0 %v1701
      %1895 = vmatpush1.msra.mxu0 %v1700
      %1896 = vmatprep.subr.mxu0 %v1697
      %1897 = vmatpush1.msra.mxu0 %v1696
      %1898 = vmatprep.subr.mxu0 %v1693
      %1899 = vmatpush1.msra.mxu0 %v1692
      %1900 = vmatprep.subr.mxu0 %v1689
      %1901 = vmatpush1.msra.mxu0 %v1688
      %1902 = vmatprep.subr.mxu0 %v1685
      %1903 = vmatpush1.msra.mxu0 %v1684
      %1904 = vmatprep.subr.mxu0 %v1681
      %1905 = vmatpush1.msra.mxu0 %v1680
      %1906 = vmatprep.subr.mxu0 %v1677
      %1907 = vmatpush1.msra.mxu0 %v1676
      %1908 = vmatprep.subr.mxu0 %v1673
      %1909 = vmatpush1.msra.mxu0 %v1672
      %1910 = vmatprep.subr.mxu0 %v1669
      %1911 = vmatpush1.msra.mxu0 %v1668
      %1912 = vmatprep.subr.mxu0 %v1665
      %1913 = vmatpush1.msra.mxu0 %v1664
      %1914 = vmatprep.subr.mxu0 %v1661
      %1915 = vmatpush1.msra.mxu0 %v1660
      %1916 = vmatprep.subr.mxu0 %v1657
      %1917 = vmatpush1.msra.mxu0 %v1656
      %1918 = vmatprep.subr.mxu0 %v1781
      %1919 = vmatpush2.msra.mxu0 %v1780
      %1920 = vmatprep.subr.mxu0 %v1777
      %1921 = vmatpush2.msra.mxu0 %v1776
      %1922 = vmatprep.subr.mxu0 %v1773
      %1923 = vmatpush2.msra.mxu0 %v1772
      %1924 = vmatprep.subr.mxu0 %v1769
      %1925 = vmatpush2.msra.mxu0 %v1768
      %1926 = vmatprep.subr.mxu0 %v1765
      %1927 = vmatpush2.msra.mxu0 %v1764
      %1928 = vmatprep.subr.mxu0 %v1761
      %1929 = vmatpush2.msra.mxu0 %v1760
      %1930 = vmatprep.subr.mxu0 %v1757
      %1931 = vmatpush2.msra.mxu0 %v1756
      %1932 = vmatprep.subr.mxu0 %v1753
      %1933 = vmatpush2.msra.mxu0 %v1752
      %1934 = vmatprep.subr.mxu0 %v1749
      %1935 = vmatpush2.msra.mxu0 %v1748
      %1936 = vmatprep.subr.mxu0 %v1745
      %1937 = vmatpush2.msra.mxu0 %v1744
      %1938 = vmatprep.subr.mxu0 %v1741
      %1939 = vmatpush2.msra.mxu0 %v1740
      %1940 = vmatprep.subr.mxu0 %v1737
      %1941 = vmatpush2.msra.mxu0 %v1736
      %1942 = vmatprep.subr.mxu0 %v1733
      %1943 = vmatpush2.msra.mxu0 %v1732
      %1944 = vmatprep.subr.mxu0 %v1729
      %1945 = vmatpush2.msra.mxu0 %v1728
      %1946 = vmatprep.subr.mxu0 %v1725
      %1947 = vmatpush2.msra.mxu0 %v1724
      %1948 = vmatprep.subr.mxu0 %v1721
      %1949 = vmatpush2.msra.mxu0 %v1720
      %1950 = vmatprep.mubr.f32.mxu0 %v1617
      %1951 = vmatmul.mubr.f32.gmra.mxu0 %v1616
      %v1952 = vpop.f32.mrf.mxu0
      %v1953 = vadd.f32 0.0, %v1952
      %v1954 = vpop.f32.mrf.mxu0
      %v1955 = vadd.f32 0.0, %v1954
      %1956 = vmatprep.mubr.f32.mxu0 %v1621
      %1957 = vmatmul.mubr.f32.gmra.mxu0 %v1620
      %v1958 = vpop.f32.mrf.mxu0
      %v1959 = vadd.f32 0.0, %v1958
      %v1960 = vpop.f32.mrf.mxu0
      %v1961 = vadd.f32 0.0, %v1960
      %1962 = vdwg.mxu0
      %1963 = vmatprep.subr.mxu0 %v1845
      %1964 = vmatpush1.msra.mxu0 %v1844
      %1965 = vmatprep.subr.mxu0 %v1841
      %1966 = vmatpush1.msra.mxu0 %v1840
      %1967 = vmatprep.subr.mxu0 %v1837
      %1968 = vmatpush1.msra.mxu0 %v1836
      %1969 = vmatprep.subr.mxu0 %v1833
      %1970 = vmatpush1.msra.mxu0 %v1832
      %1971 = vmatprep.subr.mxu0 %v1829
      %1972 = vmatpush1.msra.mxu0 %v1828
      %1973 = vmatprep.subr.mxu0 %v1825
      %1974 = vmatpush1.msra.mxu0 %v1824
      %1975 = vmatprep.subr.mxu0 %v1821
      %1976 = vmatpush1.msra.mxu0 %v1820
      %1977 = vmatprep.subr.mxu0 %v1817
      %1978 = vmatpush1.msra.mxu0 %v1816
      %1979 = vmatprep.subr.mxu0 %v1813
      %1980 = vmatpush1.msra.mxu0 %v1812
      %1981 = vmatprep.subr.mxu0 %v1809
      %1982 = vmatpush1.msra.mxu0 %v1808
      %1983 = vmatprep.subr.mxu0 %v1805
      %1984 = vmatpush1.msra.mxu0 %v1804
      %1985 = vmatprep.subr.mxu0 %v1801
      %1986 = vmatpush1.msra.mxu0 %v1800
      %1987 = vmatprep.subr.mxu0 %v1797
      %1988 = vmatpush1.msra.mxu0 %v1796
      %1989 = vmatprep.subr.mxu0 %v1793
      %1990 = vmatpush1.msra.mxu0 %v1792
      %1991 = vmatprep.subr.mxu0 %v1789
      %1992 = vmatpush1.msra.mxu0 %v1788
      %1993 = vmatprep.subr.mxu0 %v1785
      %1994 = vmatpush1.msra.mxu0 %v1784
      %1995 = vmatprep.subr.mxu0 0.0
      %1996 = vmatpush2.msra.mxu0 0.0
      %1997 = vmatprep.subr.mxu0 0.0
      %1998 = vmatpush2.msra.mxu0 0.0
      %1999 = vmatprep.subr.mxu0 0.0
      %2000 = vmatpush2.msra.mxu0 0.0
      %2001 = vmatprep.subr.mxu0 0.0
      %2002 = vmatpush2.msra.mxu0 0.0
      %2003 = vmatprep.subr.mxu0 0.0
      %2004 = vmatpush2.msra.mxu0 0.0
      %2005 = vmatprep.subr.mxu0 0.0
      %2006 = vmatpush2.msra.mxu0 0.0
      %2007 = vmatprep.subr.mxu0 0.0
      %2008 = vmatpush2.msra.mxu0 0.0
      %2009 = vmatprep.subr.mxu0 0.0
      %2010 = vmatpush2.msra.mxu0 0.0
      %2011 = vmatprep.subr.mxu0 %v1877
      %2012 = vmatpush2.msra.mxu0 %v1876
      %2013 = vmatprep.subr.mxu0 %v1873
      %2014 = vmatpush2.msra.mxu0 %v1872
      %2015 = vmatprep.subr.mxu0 %v1869
      %2016 = vmatpush2.msra.mxu0 %v1868
      %2017 = vmatprep.subr.mxu0 %v1865
      %2018 = vmatpush2.msra.mxu0 %v1864
      %2019 = vmatprep.subr.mxu0 %v1861
      %2020 = vmatpush2.msra.mxu0 %v1860
      %2021 = vmatprep.subr.mxu0 %v1857
      %2022 = vmatpush2.msra.mxu0 %v1856
      %2023 = vmatprep.subr.mxu0 %v1853
      %2024 = vmatpush2.msra.mxu0 %v1852
      %2025 = vmatprep.subr.mxu0 %v1849
      %2026 = vmatpush2.msra.mxu0 %v1848
      %2027 = vmatprep.mubr.f32.mxu0 %v1881
      %2028 = vmatmul.mubr.f32.gmra.mxu0 %v1618
      %v2029 = vpop.f32.mrf.mxu0
      %v2030 = vadd.f32 %v1953, %v2029
      %v2031 = vpop.f32.mrf.mxu0
      %v2032 = vadd.f32 %v1955, %v2031
      %2033 = vmatprep.mubr.f32.mxu0 %v1884
      %2034 = vmatmul.mubr.f32.gmra.mxu0 %v1622
      %v2035 = vpop.f32.mrf.mxu0
      %v2036 = vadd.f32 %v1959, %v2035
      %v2037 = vpop.f32.mrf.mxu0
      %v2038 = vadd.f32 %v1961, %v2037
      %2039 = vdwg.mxu0
      %2040 = vmatprep.subr.mxu0 %v1719
      %2041 = vmatpush1.msra.mxu0 %v1718
      %2042 = vmatprep.subr.mxu0 %v1715
      %2043 = vmatpush1.msra.mxu0 %v1714
      %2044 = vmatprep.subr.mxu0 %v1711
      %2045 = vmatpush1.msra.mxu0 %v1710
      %2046 = vmatprep.subr.mxu0 %v1707
      %2047 = vmatpush1.msra.mxu0 %v1706
      %2048 = vmatprep.subr.mxu0 %v1703
      %2049 = vmatpush1.msra.mxu0 %v1702
      %2050 = vmatprep.subr.mxu0 %v1699
      %2051 = vmatpush1.msra.mxu0 %v1698
      %2052 = vmatprep.subr.mxu0 %v1695
      %2053 = vmatpush1.msra.mxu0 %v1694
      %2054 = vmatprep.subr.mxu0 %v1691
      %2055 = vmatpush1.msra.mxu0 %v1690
      %2056 = vmatprep.subr.mxu0 %v1687
      %2057 = vmatpush1.msra.mxu0 %v1686
      %2058 = vmatprep.subr.mxu0 %v1683
      %2059 = vmatpush1.msra.mxu0 %v1682
      %2060 = vmatprep.subr.mxu0 %v1679
      %2061 = vmatpush1.msra.mxu0 %v1678
      %2062 = vmatprep.subr.mxu0 %v1675
      %2063 = vmatpush1.msra.mxu0 %v1674
      %2064 = vmatprep.subr.mxu0 %v1671
      %2065 = vmatpush1.msra.mxu0 %v1670
      %2066 = vmatprep.subr.mxu0 %v1667
      %2067 = vmatpush1.msra.mxu0 %v1666
      %2068 = vmatprep.subr.mxu0 %v1663
      %2069 = vmatpush1.msra.mxu0 %v1662
      %2070 = vmatprep.subr.mxu0 %v1659
      %2071 = vmatpush1.msra.mxu0 %v1658
      %2072 = vmatprep.subr.mxu0 %v1783
      %2073 = vmatpush2.msra.mxu0 %v1782
      %2074 = vmatprep.subr.mxu0 %v1779
      %2075 = vmatpush2.msra.mxu0 %v1778
      %2076 = vmatprep.subr.mxu0 %v1775
      %2077 = vmatpush2.msra.mxu0 %v1774
      %2078 = vmatprep.subr.mxu0 %v1771
      %2079 = vmatpush2.msra.mxu0 %v1770
      %2080 = vmatprep.subr.mxu0 %v1767
      %2081 = vmatpush2.msra.mxu0 %v1766
      %2082 = vmatprep.subr.mxu0 %v1763
      %2083 = vmatpush2.msra.mxu0 %v1762
      %2084 = vmatprep.subr.mxu0 %v1759
      %2085 = vmatpush2.msra.mxu0 %v1758
      %2086 = vmatprep.subr.mxu0 %v1755
      %2087 = vmatpush2.msra.mxu0 %v1754
      %2088 = vmatprep.subr.mxu0 %v1751
      %2089 = vmatpush2.msra.mxu0 %v1750
      %2090 = vmatprep.subr.mxu0 %v1747
      %2091 = vmatpush2.msra.mxu0 %v1746
      %2092 = vmatprep.subr.mxu0 %v1743
      %2093 = vmatpush2.msra.mxu0 %v1742
      %2094 = vmatprep.subr.mxu0 %v1739
      %2095 = vmatpush2.msra.mxu0 %v1738
      %2096 = vmatprep.subr.mxu0 %v1735
      %2097 = vmatpush2.msra.mxu0 %v1734
      %2098 = vmatprep.subr.mxu0 %v1731
      %2099 = vmatpush2.msra.mxu0 %v1730
      %2100 = vmatprep.subr.mxu0 %v1727
      %2101 = vmatpush2.msra.mxu0 %v1726
      %2102 = vmatprep.subr.mxu0 %v1723
      %2103 = vmatpush2.msra.mxu0 %v1722
      %2104 = vmatprep.mubr.f32.mxu0 %v1617
      %2105 = vmatmul.mubr.f32.gmra.mxu0 %v1616
      %v2106 = vpop.f32.mrf.mxu0
      %v2107 = vadd.f32 0.0, %v2106
      %v2108 = vpop.f32.mrf.mxu0
      %v2109 = vadd.f32 0.0, %v2108
      %2110 = vmatprep.mubr.f32.mxu0 %v1621
      %2111 = vmatmul.mubr.f32.gmra.mxu0 %v1620
      %v2112 = vpop.f32.mrf.mxu0
      %v2113 = vadd.f32 0.0, %v2112
      %v2114 = vpop.f32.mrf.mxu0
      %v2115 = vadd.f32 0.0, %v2114
      %2116 = vdwg.mxu0
      %2117 = vmatprep.subr.mxu0 %v1847
      %2118 = vmatpush1.msra.mxu0 %v1846
      %2119 = vmatprep.subr.mxu0 %v1843
      %2120 = vmatpush1.msra.mxu0 %v1842
      %2121 = vmatprep.subr.mxu0 %v1839
      %2122 = vmatpush1.msra.mxu0 %v1838
      %2123 = vmatprep.subr.mxu0 %v1835
      %2124 = vmatpush1.msra.mxu0 %v1834
      %2125 = vmatprep.subr.mxu0 %v1831
      %2126 = vmatpush1.msra.mxu0 %v1830
      %2127 = vmatprep.subr.mxu0 %v1827
      %2128 = vmatpush1.msra.mxu0 %v1826
      %2129 = vmatprep.subr.mxu0 %v1823
      %2130 = vmatpush1.msra.mxu0 %v1822
      %2131 = vmatprep.subr.mxu0 %v1819
      %2132 = vmatpush1.msra.mxu0 %v1818
      %2133 = vmatprep.subr.mxu0 %v1815
      %2134 = vmatpush1.msra.mxu0 %v1814
      %2135 = vmatprep.subr.mxu0 %v1811
      %2136 = vmatpush1.msra.mxu0 %v1810
      %2137 = vmatprep.subr.mxu0 %v1807
      %2138 = vmatpush1.msra.mxu0 %v1806
      %2139 = vmatprep.subr.mxu0 %v1803
      %2140 = vmatpush1.msra.mxu0 %v1802
      %2141 = vmatprep.subr.mxu0 %v1799
      %2142 = vmatpush1.msra.mxu0 %v1798
      %2143 = vmatprep.subr.mxu0 %v1795
      %2144 = vmatpush1.msra.mxu0 %v1794
      %2145 = vmatprep.subr.mxu0 %v1791
      %2146 = vmatpush1.msra.mxu0 %v1790
      %2147 = vmatprep.subr.mxu0 %v1787
      %2148 = vmatpush1.msra.mxu0 %v1786
      %2149 = vmatprep.subr.mxu0 0.0
      %2150 = vmatpush2.msra.mxu0 0.0
      %2151 = vmatprep.subr.mxu0 0.0
      %2152 = vmatpush2.msra.mxu0 0.0
      %2153 = vmatprep.subr.mxu0 0.0
      %2154 = vmatpush2.msra.mxu0 0.0
      %2155 = vmatprep.subr.mxu0 0.0
      %2156 = vmatpush2.msra.mxu0 0.0
      %2157 = vmatprep.subr.mxu0 0.0
      %2158 = vmatpush2.msra.mxu0 0.0
      %2159 = vmatprep.subr.mxu0 0.0
      %2160 = vmatpush2.msra.mxu0 0.0
      %2161 = vmatprep.subr.mxu0 0.0
      %2162 = vmatpush2.msra.mxu0 0.0
      %2163 = vmatprep.subr.mxu0 0.0
      %2164 = vmatpush2.msra.mxu0 0.0
      %2165 = vmatprep.subr.mxu0 %v1879
      %2166 = vmatpush2.msra.mxu0 %v1878
      %2167 = vmatprep.subr.mxu0 %v1875
      %2168 = vmatpush2.msra.mxu0 %v1874
      %2169 = vmatprep.subr.mxu0 %v1871
      %2170 = vmatpush2.msra.mxu0 %v1870
      %2171 = vmatprep.subr.mxu0 %v1867
      %2172 = vmatpush2.msra.mxu0 %v1866
      %2173 = vmatprep.subr.mxu0 %v1863
      %2174 = vmatpush2.msra.mxu0 %v1862
      %2175 = vmatprep.subr.mxu0 %v1859
      %2176 = vmatpush2.msra.mxu0 %v1858
      %2177 = vmatprep.subr.mxu0 %v1855
      %2178 = vmatpush2.msra.mxu0 %v1854
      %2179 = vmatprep.subr.mxu0 %v1851
      %2180 = vmatpush2.msra.mxu0 %v1850
      %2181 = vmatprep.mubr.f32.mxu0 %v1881
      %2182 = vmatmul.mubr.f32.gmra.mxu0 %v1618
      %v2183 = vpop.f32.mrf.mxu0
      %v2184 = vadd.f32 %v2107, %v2183
      %v2185 = vpop.f32.mrf.mxu0
      %v2186 = vadd.f32 %v2109, %v2185
      %2187 = vmatprep.mubr.f32.mxu0 %v1884
      %2188 = vmatmul.mubr.f32.gmra.mxu0 %v1622
      %v2189 = vpop.f32.mrf.mxu0
      %v2190 = vadd.f32 %v2113, %v2189
      %v2191 = vpop.f32.mrf.mxu0
      %v2192 = vadd.f32 %v2115, %v2191
      %2193 = vdwg.mxu0
      %2194 = vmatprep.subr.mxu0 0.0
      %2195 = vmatpush1.msra.mxu0 0.0
      %2196 = vmatprep.subr.mxu0 0.0
      %2197 = vmatpush1.msra.mxu0 0.0
      %2198 = vmatprep.subr.mxu0 0.0
      %2199 = vmatpush1.msra.mxu0 0.0
      %2200 = vmatprep.subr.mxu0 0.0
      %2201 = vmatpush1.msra.mxu0 0.0
      %2202 = vmatprep.subr.mxu0 0.0
      %2203 = vmatpush1.msra.mxu0 0.0
      %2204 = vmatprep.subr.mxu0 0.0
      %2205 = vmatpush1.msra.mxu0 0.0
      %2206 = vmatprep.subr.mxu0 0.0
      %2207 = vmatpush1.msra.mxu0 0.0
      %2208 = vmatprep.subr.mxu0 0.0
      %2209 = vmatpush1.msra.mxu0 0.0
      %2210 = vmatprep.subr.mxu0 %v1653
      %2211 = vmatpush1.msra.mxu0 %v1652
      %2212 = vmatprep.subr.mxu0 %v1649
      %2213 = vmatpush1.msra.mxu0 %v1648
      %2214 = vmatprep.subr.mxu0 %v1645
      %2215 = vmatpush1.msra.mxu0 %v1644
      %2216 = vmatprep.subr.mxu0 %v1641
      %2217 = vmatpush1.msra.mxu0 %v1640
      %2218 = vmatprep.subr.mxu0 %v1637
      %2219 = vmatpush1.msra.mxu0 %v1636
      %2220 = vmatprep.subr.mxu0 %v1633
      %2221 = vmatpush1.msra.mxu0 %v1632
      %2222 = vmatprep.subr.mxu0 %v1629
      %2223 = vmatpush1.msra.mxu0 %v1628
      %2224 = vmatprep.subr.mxu0 %v1625
      %2225 = vmatpush1.msra.mxu0 %v1624
      %2226 = vmatprep.subr.mxu0 0.0
      %2227 = vmatpush2.msra.mxu0 0.0
      %2228 = vmatprep.subr.mxu0 0.0
      %2229 = vmatpush2.msra.mxu0 0.0
      %2230 = vmatprep.subr.mxu0 0.0
      %2231 = vmatpush2.msra.mxu0 0.0
      %2232 = vmatprep.subr.mxu0 0.0
      %2233 = vmatpush2.msra.mxu0 0.0
      %2234 = vmatprep.subr.mxu0 0.0
      %2235 = vmatpush2.msra.mxu0 0.0
      %2236 = vmatprep.subr.mxu0 0.0
      %2237 = vmatpush2.msra.mxu0 0.0
      %2238 = vmatprep.subr.mxu0 0.0
      %2239 = vmatpush2.msra.mxu0 0.0
      %2240 = vmatprep.subr.mxu0 0.0
      %2241 = vmatpush2.msra.mxu0 0.0
      %2242 = vmatprep.subr.mxu0 0.0
      %2243 = vmatpush2.msra.mxu0 0.0
      %2244 = vmatprep.subr.mxu0 0.0
      %2245 = vmatpush2.msra.mxu0 0.0
      %2246 = vmatprep.subr.mxu0 0.0
      %2247 = vmatpush2.msra.mxu0 0.0
      %2248 = vmatprep.subr.mxu0 0.0
      %2249 = vmatpush2.msra.mxu0 0.0
      %2250 = vmatprep.subr.mxu0 0.0
      %2251 = vmatpush2.msra.mxu0 0.0
      %2252 = vmatprep.subr.mxu0 0.0
      %2253 = vmatpush2.msra.mxu0 0.0
      %2254 = vmatprep.subr.mxu0 0.0
      %2255 = vmatpush2.msra.mxu0 0.0
      %2256 = vmatprep.subr.mxu0 0.0
      %2257 = vmatpush2.msra.mxu0 0.0
      %2258 = vmatprep.mubr.f32.mxu0 0.0
      %2259 = vmatmul.mubr.f32.gmra.mxu0 %v426
      %v2260 = vpop.f32.mrf.mxu0
      %v2261 = vadd.f32 %v2030, %v2260
      %v2262 = vpop.f32.mrf.mxu0
      %v2263 = vadd.f32 %v2032, %v2262
      %2264 = vmatprep.mubr.f32.mxu0 0.0
      %2265 = vmatmul.mubr.f32.gmra.mxu0 %v429
      %v2266 = vpop.f32.mrf.mxu0
      %v2267 = vadd.f32 %v2036, %v2266
      %v2268 = vpop.f32.mrf.mxu0
      %v2269 = vadd.f32 %v2038, %v2268
      %2270 = vdwg.mxu0
      %2271 = vmatprep.subr.mxu0 0.0
      %2272 = vmatpush1.msra.mxu0 0.0
      %2273 = vmatprep.subr.mxu0 0.0
      %2274 = vmatpush1.msra.mxu0 0.0
      %2275 = vmatprep.subr.mxu0 0.0
      %2276 = vmatpush1.msra.mxu0 0.0
      %2277 = vmatprep.subr.mxu0 0.0
      %2278 = vmatpush1.msra.mxu0 0.0
      %2279 = vmatprep.subr.mxu0 0.0
      %2280 = vmatpush1.msra.mxu0 0.0
      %2281 = vmatprep.subr.mxu0 0.0
      %2282 = vmatpush1.msra.mxu0 0.0
      %2283 = vmatprep.subr.mxu0 0.0
      %2284 = vmatpush1.msra.mxu0 0.0
      %2285 = vmatprep.subr.mxu0 0.0
      %2286 = vmatpush1.msra.mxu0 0.0
      %2287 = vmatprep.subr.mxu0 %v1655
      %2288 = vmatpush1.msra.mxu0 %v1654
      %2289 = vmatprep.subr.mxu0 %v1651
      %2290 = vmatpush1.msra.mxu0 %v1650
      %2291 = vmatprep.subr.mxu0 %v1647
      %2292 = vmatpush1.msra.mxu0 %v1646
      %2293 = vmatprep.subr.mxu0 %v1643
      %2294 = vmatpush1.msra.mxu0 %v1642
      %2295 = vmatprep.subr.mxu0 %v1639
      %2296 = vmatpush1.msra.mxu0 %v1638
      %2297 = vmatprep.subr.mxu0 %v1635
      %2298 = vmatpush1.msra.mxu0 %v1634
      %2299 = vmatprep.subr.mxu0 %v1631
      %2300 = vmatpush1.msra.mxu0 %v1630
      %2301 = vmatprep.subr.mxu0 %v1627
      %2302 = vmatpush1.msra.mxu0 %v1626
      %2303 = vmatprep.subr.mxu0 0.0
      %2304 = vmatpush2.msra.mxu0 0.0
      %2305 = vmatprep.subr.mxu0 0.0
      %2306 = vmatpush2.msra.mxu0 0.0
      %2307 = vmatprep.subr.mxu0 0.0
      %2308 = vmatpush2.msra.mxu0 0.0
      %2309 = vmatprep.subr.mxu0 0.0
      %2310 = vmatpush2.msra.mxu0 0.0
      %2311 = vmatprep.subr.mxu0 0.0
      %2312 = vmatpush2.msra.mxu0 0.0
      %2313 = vmatprep.subr.mxu0 0.0
      %2314 = vmatpush2.msra.mxu0 0.0
      %2315 = vmatprep.subr.mxu0 0.0
      %2316 = vmatpush2.msra.mxu0 0.0
      %2317 = vmatprep.subr.mxu0 0.0
      %2318 = vmatpush2.msra.mxu0 0.0
      %2319 = vmatprep.subr.mxu0 0.0
      %2320 = vmatpush2.msra.mxu0 0.0
      %2321 = vmatprep.subr.mxu0 0.0
      %2322 = vmatpush2.msra.mxu0 0.0
      %2323 = vmatprep.subr.mxu0 0.0
      %2324 = vmatpush2.msra.mxu0 0.0
      %2325 = vmatprep.subr.mxu0 0.0
      %2326 = vmatpush2.msra.mxu0 0.0
      %2327 = vmatprep.subr.mxu0 0.0
      %2328 = vmatpush2.msra.mxu0 0.0
      %2329 = vmatprep.subr.mxu0 0.0
      %2330 = vmatpush2.msra.mxu0 0.0
      %2331 = vmatprep.subr.mxu0 0.0
      %2332 = vmatpush2.msra.mxu0 0.0
      %2333 = vmatprep.subr.mxu0 0.0
      %2334 = vmatpush2.msra.mxu0 0.0
      %2335 = vmatprep.mubr.f32.mxu0 0.0
      %2336 = vmatmul.mubr.f32.gmra.mxu0 %v426
      %v2337 = vpop.f32.mrf.mxu0
      %v2338 = vadd.f32 %v2184, %v2337
      %v2339 = vpop.f32.mrf.mxu0
      %v2340 = vadd.f32 %v2186, %v2339
      %2341 = vmatprep.mubr.f32.mxu0 0.0
      %2342 = vmatmul.mubr.f32.gmra.mxu0 %v429
      %v2343 = vpop.f32.mrf.mxu0
      %v2344 = vadd.f32 %v2190, %v2343
      %v2345 = vpop.f32.mrf.mxu0
      %v2346 = vadd.f32 %v2192, %v2345
      %2347 = vdwg.mxu0
      %v2348 = vld [vmem:[%s11] sm:$0xf]
      %v2350 = vlaneseq
      %v2351 = vshrl.u32 %v2350, 7
      %v2352 = vsub.s32 0, %v2351
      %v2353 = vrot.slane %v2348, %v2352
      %v2354 = vlaneseq
      %v2355 = vshrl.u32 %v2354, 7
      %v2356 = vsub.s32 1, %v2355
      %v2357 = vrot.slane %v2348, %v2356
      %v2358 = vlaneseq
      %v2359 = vshrl.u32 %v2358, 7
      %v2360 = vsub.s32 2, %v2359
      %v2361 = vrot.slane %v2348, %v2360
      %v2362 = vlaneseq
      %v2363 = vshrl.u32 %v2362, 7
      %v2364 = vsub.s32 3, %v2363
      %v2365 = vrot.slane %v2348, %v2364
      %v2370 = vadd.f32 %v2261, %v2353
      %v2371 = vadd.f32 %v2263, %v2357
      %v2372 = vadd.f32 %v2338, %v2361
      %v2373 = vadd.f32 %v2340, %v2365
      %v2374 = vadd.f32 %v2267, %v2353
      %v2375 = vadd.f32 %v2269, %v2357
      %v2376 = vadd.f32 %v2344, %v2361
      %v2377 = vadd.f32 %v2346, %v2365
      %2378 = vst [vmem:[%s413] sm:$0xff] %v2370
      %2379 = vst [vmem:[%s413 + $0x8] sm:$0xff] %v2371
      %2380 = vst [vmem:[%s413 + $0x10] sm:$0xff] %v2372
      %2381 = vst [vmem:[%s413 + $0x18] sm:$0xff] %v2373
      %2382 = vst [vmem:[%s413 + $0x20] sm:$0xff] %v2374
      %2383 = vst [vmem:[%s413 + $0x28] sm:$0xff] %v2375
      %2384 = vst [vmem:[%s413 + $0x30] sm:$0xff] %v2376
      %2385 = vst [vmem:[%s413 + $0x38] sm:$0xff] %v2377
      %p2386 = scmp.lt.s32.totalorder %s23, 1
      %s2387 = scalar_select %p2386, %s23, 1
      %s2388 = smul.addr %s2387, 8
      %s2389 = smul.addr %s2388, 8
      %s2390 = scalar_lea.vmem %s12, %s2389
      // Predicated region
      $region69: #{scm_forward.1} parent=67 // pred_check
        %p2391 = pneg %p298
      $region70: #{scm_forward.1} parent=67 // pred_check_branch
        %2393 = sbr.rel (%p2391) target = $region72
      $region71: #{scm_forward.1} parent=67 // pred_region
        _
      $region72: #{scm_forward.1} parent=67 // pred_fallthru
        _
    $region68: #{scm_forward.1} parent=5 // pred_fallthru
      _
    %p2394 = scmp.le.s32.totalorder 2, %s18
    // Predicated region
    $region73: #{scm_forward.1} parent=5 // pred_check
      %p2395 = pneg %p2394
    $region74: #{scm_forward.1} parent=5 // pred_check_branch
      %2397 = sbr.rel (%p2395) target = $region76
    $region75: #{scm_forward.1} parent=5 // pred_region
      %s2398 = ssub.s32 %s18, 2
      // Predicated region
      $region77: #{scm_forward.1} parent=75 // pred_check
        %p2399 = pneg %p304
      $region78: #{scm_forward.1} parent=75 // pred_check_branch
        %2401 = sbr.rel (%p2399) target = $region80
      $region79: #{scm_forward.1} parent=75 // pred_region
        %p2402 = scmp.lt.s32.totalorder %s24, 1
        %s2403 = scalar_select %p2402, %s24, 1
        %s2404 = smul.addr %s2403, 8
        %s2405 = smul.addr %s2404, 8
        %s2406 = scalar_lea.vmem %s12, %s2405
      $region80: #{scm_forward.1} parent=75 // pred_fallthru
        _
    $region76: #{scm_forward.1} parent=5 // pred_fallthru
      _
  $region6: #{scm_forward.1} parent=0 // loop_footer
    %s22 = sadd.s32 1, %s18
  $region7: #{scm_forward.1} parent=0 // loop_footer_branch
    %17 = sbr.rel target = $region3
  $region8: #{scm_forward.1} parent=0 // loop_exit
    _

</llo_original>
